<compile_context>
chip_gen: v6e
topology: v6e:2x2x1
jax: 0.10.0
libtpu: 0.0.40
codegen_flags: <defaults>
</compile_context>

<pallas_src>
import functools
import math

import jax
import jax.numpy as jnp
from jax.experimental import pallas as pl
from jax.experimental.pallas import tpu as pltpu


def _layernorm(v, g, b, eps=1e-5):
    mu = jnp.mean(v, axis=-1, keepdims=True)
    var = jnp.mean((v - mu) ** 2, axis=-1, keepdims=True)
    return (v - mu) * jax.lax.rsqrt(var + eps) * g + b


def transformer_layer_kernel(
    # inputs
    x_ref, mask_ref,
    ln1g_ref, ln1b_ref,
    wq_ref, bq_ref, wk_ref, bk_ref, wv_ref, bv_ref, wo_ref, bo_ref,
    ln2g_ref, ln2b_ref,
    w1_ref, b1_ref, w2_ref, b2_ref,
    # outputs
    o_ref,
    # scratch
    hf_scr, k_scr, v_scr, q_scr, attn_scr,
    *, num_heads: int, q_tile: int, kv_chunk: int,
    k_transposed: bool, exp_in_bf16: bool,
):
    qi = pl.program_id(1)
    _, S, D = x_ref.shape
    H = num_heads
    Dh = D // H
    TQ = q_tile
    CH = kv_chunk
    scale = 1.0 / math.sqrt(Dh)
    f32, bf16 = jnp.float32, jnp.bfloat16

    # ---- once per batch element: LN1 over full sequence + K/V projections ----
    # Chunked over the sequence so the (S, D) f32 temporaries never exist at
    # once (bounds the VMEM spike of this un-pipelined first step).
    @pl.when(qi == 0)
    def _compute_kv():
        @pl.loop(0, S // CH)
        def _chunk(c):
            c0 = pl.multiple_of(c * CH, CH)
            xc = x_ref[0, pl.ds(c0, CH), :]                          # (CH, D) f32
            hc = _layernorm(xc, ln1g_ref[...], ln1b_ref[...]).astype(bf16)
            hf_scr[pl.ds(c0, CH), :] = hc                            # cached LN1 out
            kc = jnp.dot(hc, wk_ref[...], preferred_element_type=f32) + bk_ref[...]
            vc = jnp.dot(hc, wv_ref[...], preferred_element_type=f32) + bv_ref[...]
            # TODO(synk): replace the per-head slice loops with one grouped
            # relayout (pltpu.einshape 's(hd)->hds') once verified to lower on
            # all target generations.
            for h in range(H):
                hs = slice(h * Dh, (h + 1) * Dh)
                if k_transposed:
                    # K kept pre-transposed: one XLU transpose per (chunk, head),
                    # amortized over all NQ query tiles of this batch element.
                    k_scr[h, :, pl.ds(c0, CH)] = kc[:, hs].T.astype(bf16)
                else:
                    k_scr[h, pl.ds(c0, CH), :] = kc[:, hs].astype(bf16)
                v_scr[h, pl.ds(c0, CH), :] = vc[:, hs].astype(bf16)

    # ---- query tile ----
    q0 = pl.multiple_of(qi * TQ, TQ)
    hq = hf_scr[pl.ds(q0, TQ), :]                                    # (TQ, D) bf16 (cached LN1)
    q2d = jnp.dot(hq, wq_ref[...], preferred_element_type=f32) + bq_ref[...]
    q2d = q2d * scale            # fold 1/sqrt(Dh) into q (TQ*D muls, not H*TQ*S)
    for h in range(H):
        q_scr[h] = q2d[:, h * Dh:(h + 1) * Dh].astype(bf16)          # (H, TQ, Dh)

    # ---- batched-head attention (single MXU streams) ----
    if k_transposed:
        s = jnp.einsum('hqd,hds->hqs', q_scr[...], k_scr[...],
                       preferred_element_type=f32)                   # (H, TQ, S)
    else:
        s = jnp.einsum('hqd,hsd->hqs', q_scr[...], k_scr[...],
                       preferred_element_type=f32)
    # Additive mask bias built in-kernel from the int8 mask tile.
    s = s + mask_ref[0].astype(f32)[None, :, :] * jnp.float32(-1e30)
    s = s - jnp.max(s, axis=-1, keepdims=True)
    if exp_in_bf16:
        # v6e/v7x only: bf16 EUP ~doubles exp throughput; row-sum stays f32.
        p = jnp.exp(s.astype(bf16))
        denom = jnp.sum(p.astype(f32), axis=-1, keepdims=True)
        pn = p * pl.reciprocal(denom, approx=True).astype(bf16)
    else:
        p = jnp.exp(s)
        denom = jnp.sum(p, axis=-1, keepdims=True)
        pn = (p * pl.reciprocal(denom, approx=True)).astype(bf16)
    o3 = jnp.einsum('hqk,hkd->hqd', pn, v_scr[...],
                    preferred_element_type=f32)                      # (H, TQ, Dh) f32

    # Lane-dense bf16 staging of the head concat (half the previous f32 traffic).
    # TODO(synk): replace with lax.dot_general(o3, wo.reshape(H, Dh, D),
    #             dimension_numbers=(((0, 2), (0, 1)), ((), ()))) once Mosaic
    #             supports multi-contracting-dim dot_general.
    for h in range(H):
        attn_scr[:, h * Dh:(h + 1) * Dh] = o3[h].astype(bf16)
    attn = jnp.dot(attn_scr[...], wo_ref[...],
                   preferred_element_type=f32) + bo_ref[...]

    xq = x_ref[0, pl.ds(q0, TQ), :]                                  # (TQ, D) f32 residual
    x1 = xq + attn

    # ---- pre-LN feed-forward ----
    h2 = _layernorm(x1, ln2g_ref[...], ln2b_ref[...])
    f = jnp.dot(h2.astype(bf16), w1_ref[...], preferred_element_type=f32) + b1_ref[...]
    f = jnp.maximum(f, 0.0)
    f = jnp.dot(f.astype(bf16), w2_ref[...], preferred_element_type=f32) + b2_ref[...]

    o_ref[0] = (x1 + f).astype(o_ref.dtype)


def _tpu_generation() -> int:
    """Best-effort TPU generation from device_kind; 0 if unknown."""
    try:
        kind = jax.devices()[0].device_kind.lower()
    except Exception:
        return 0
    for g in (7, 6, 5, 4, 3):
        if f"v{g}" in kind:
            return g
    return 0


def _pick_tile(seq_len: int, target: int) -> int:
    """Largest divisor of seq_len that is <= target and a multiple of 8
    (falls back to the full sequence if none exists)."""
    if seq_len <= target:
        return seq_len
    for t in range(target, 7, -1):
        if seq_len % t == 0 and t % 8 == 0:
            return t
    return seq_len


def transformer_layer(x, attention_mask, params, *, num_heads: int, q_tile=None):
    """x: (B, S, D) f32; attention_mask: (B, S, S) bool (True -> mask)."""
    B, S, D = x.shape
    assert D % num_heads == 0
    Dh = D // num_heads

    gen = _tpu_generation()
    if gen >= 7:
        tq_target, vmem_limit = 128, 56 * 1024 * 1024     # 64 MiB VMEM: headroom
    elif gen in (5, 6):
        tq_target, vmem_limit = 256, 96 * 1024 * 1024     # 128 MiB physical VMEM
    else:
        tq_target, vmem_limit = 256, 64 * 1024 * 1024     # unknown: conservative
    exp_in_bf16 = gen >= 6                                # v5e has no bf16 EUP/VPU

    if q_tile is None:
        q_tile = _pick_tile(S, tq_target)
    assert S % q_tile == 0
    NQ = S // q_tile
    kv_chunk = _pick_tile(S, 512)                         # bounds the qi==0 VMEM spike

    # int8 mask (half the DMA bytes of a bf16 additive bias); expanded in-kernel.
    # TODO(synk): for padding/causal masks, pass per-row key lengths via
    #             scalar-prefetch and build the bias with broadcasted_iota
    #             instead of streaming O(S^2) bytes.
    mask_i8 = attention_mask.astype(jnp.int8)

    bf16 = jnp.bfloat16
    # NOTE: x (and the residual stream) stays f32 to match the reference
    # module's numerics; cast to bf16 here if HBM traffic dominates.
    weight_args = [
        params["ln1_g"], params["ln1_b"],
        params["wq"].astype(bf16), params["bq"],
        params["wk"].astype(bf16), params["bk"],
        params["wv"].astype(bf16), params["bv"],
        params["wo"].astype(bf16), params["bo"],
        params["ln2_g"], params["ln2_b"],
        params["w1"].astype(bf16), params["b1"],
        params["w2"].astype(bf16), params["b2"],
    ]

    def build(single_buffer_weights: bool, k_transposed: bool, bf16_exp: bool):
        def full_spec(shape):
            zeros = (0,) * len(shape)
            if single_buffer_weights:
                # Constant-index blocks: double buffering only wastes VMEM.
                return pl.BlockSpec(shape, lambda b, q: zeros,
                                    pipeline_mode=pl.Buffered(1))
            return pl.BlockSpec(shape, lambda b, q: zeros)

        in_specs = [
            pl.BlockSpec((1, S, D), lambda b, q: (b, 0, 0)),       # x (full seq per batch)
            pl.BlockSpec((1, q_tile, S), lambda b, q: (b, q, 0)),  # int8 mask tile
        ] + [full_spec(w.shape) for w in weight_args]

        k_shape = (num_heads, Dh, S) if k_transposed else (num_heads, S, Dh)

        kernel = functools.partial(
            transformer_layer_kernel,
            num_heads=num_heads, q_tile=q_tile, kv_chunk=kv_chunk,
            k_transposed=k_transposed, exp_in_bf16=bf16_exp)

        return pl.pallas_call(
            kernel,
            out_shape=jax.ShapeDtypeStruct((B, S, D), jnp.float32),
            grid_spec=pltpu.PrefetchScalarGridSpec(
                num_scalar_prefetch=0,
                grid=(B, NQ),
                in_specs=in_specs,
                out_specs=pl.BlockSpec((1, q_tile, D), lambda b, q: (b, q, 0)),
                scratch_shapes=[
                    pltpu.VMEM((S, D), bf16),                      # cached LN1 output
                    pltpu.VMEM(k_shape, bf16),                     # K (pre-transposed)
                    pltpu.VMEM((num_heads, S, Dh), bf16),          # V (head-major)
                    pltpu.VMEM((num_heads, q_tile, Dh), bf16),     # Q tile (head-major)
                    pltpu.VMEM((q_tile, D), bf16),                 # attn head concat
                ],
            ),
            compiler_params=pltpu.CompilerParams(
                dimension_semantics=("parallel", "arbitrary"),
                vmem_limit_bytes=vmem_limit,
            ),
        )

    args = (x, mask_i8, *weight_args)
    try:
        return build(True, True, exp_in_bf16)(*args)
    except Exception:
        # Conservative fallback for jax/Mosaic versions that reject
        # pipeline_mode=Buffered(1), the explicit K transpose, or bf16 exp.
        return build(False, False, False)(*args)


def init_params(key, model_dim, ff_hidden):
    keys = jax.random.split(key, 6)

    def lin(k, fan_in, shape):
        bound = 1.0 / math.sqrt(fan_in)
        return jax.random.uniform(k, shape, jnp.float32, -bound, bound)

    D, F = model_dim, ff_hidden
    return {
        "ln1_g": jnp.ones((1, D), jnp.float32),
        "ln1_b": jnp.zeros((1, D), jnp.float32),
        "wq": lin(keys[0], D, (D, D)), "bq": jnp.zeros((1, D), jnp.float32),
        "wk": lin(keys[1], D, (D, D)), "bk": jnp.zeros((1, D), jnp.float32),
        "wv": lin(keys[2], D, (D, D)), "bv": jnp.zeros((1, D), jnp.float32),
        "wo": lin(keys[3], D, (D, D)), "bo": jnp.zeros((1, D), jnp.float32),
        "ln2_g": jnp.ones((1, D), jnp.float32),
        "ln2_b": jnp.zeros((1, D), jnp.float32),
        "w1": lin(keys[4], D, (D, F)), "b1": jnp.zeros((1, F), jnp.float32),
        "w2": lin(keys[5], F, (F, D)), "b2": jnp.zeros((1, D), jnp.float32),
    }


if __name__ == "__main__":
    B, S, D, H, F = 2, 8, 32, 4, 64   # batch, seq, model_dim, heads, ffn hidden

    key = jax.random.PRNGKey(0)
    k_x, k_m, k_p = jax.random.split(key, 3)

    x = jax.random.normal(k_x, (B, S, D), jnp.float32)
    # random mask (True -> mask); ensure at least one unmasked key per query row
    attention_mask = jax.random.bernoulli(k_m, 0.3, (B, S, S))
    attention_mask = attention_mask.at[:, :, 0].set(False)

    params = init_params(k_p, D, F)

    out = transformer_layer(x, attention_mask, params, num_heads=H)
    jax.block_until_ready(out)
    assert out.shape == (B, S, D) and out.dtype == jnp.float32
    print("KERNEL_OK")
</pallas_src>

<mosaic_0001>
module attributes {stable_mosaic.version = 11 : i64} {
  func.func @transformer_layer_kernel(%arg0: i32, %arg1: i32, %arg2: memref<1x8x32xf32, #tpu.memory_space<vmem>>, %arg3: memref<1x8x8xi8, #tpu.memory_space<vmem>>, %arg4: memref<1x32xf32, #tpu.memory_space<vmem>>, %arg5: memref<1x32xf32, #tpu.memory_space<vmem>>, %arg6: memref<32x32xbf16, #tpu.memory_space<vmem>>, %arg7: memref<1x32xf32, #tpu.memory_space<vmem>>, %arg8: memref<32x32xbf16, #tpu.memory_space<vmem>>, %arg9: memref<1x32xf32, #tpu.memory_space<vmem>>, %arg10: memref<32x32xbf16, #tpu.memory_space<vmem>>, %arg11: memref<1x32xf32, #tpu.memory_space<vmem>>, %arg12: memref<32x32xbf16, #tpu.memory_space<vmem>>, %arg13: memref<1x32xf32, #tpu.memory_space<vmem>>, %arg14: memref<1x32xf32, #tpu.memory_space<vmem>>, %arg15: memref<1x32xf32, #tpu.memory_space<vmem>>, %arg16: memref<32x64xbf16, #tpu.memory_space<vmem>>, %arg17: memref<1x64xf32, #tpu.memory_space<vmem>>, %arg18: memref<64x32xbf16, #tpu.memory_space<vmem>>, %arg19: memref<1x32xf32, #tpu.memory_space<vmem>>, %arg20: memref<1x8x32xf32, #tpu.memory_space<vmem>>, %arg21: memref<8x32xbf16, #tpu.memory_space<vmem>>, %arg22: memref<4x8x8xbf16, #tpu.memory_space<vmem>>, %arg23: memref<4x8x8xbf16, #tpu.memory_space<vmem>>, %arg24: memref<4x8x8xbf16, #tpu.memory_space<vmem>>, %arg25: memref<8x32xbf16, #tpu.memory_space<vmem>>) attributes {dimension_semantics = [#tpu.dimension_semantics<parallel>, #tpu.dimension_semantics<arbitrary>], iteration_bounds = array<i64: 2, 1>, scalar_prefetch = 0 : i64, scratch_operands = 5 : i64, tpu.core_type = #tpu.core_type<tc>, window_params = [{transform_indices = @transform_0, window_bounds = array<i64: 1, 8, 32>}, {transform_indices = @transform_1, window_bounds = array<i64: 1, 8, 8>}, {pipeline_mode = #tpu.pipeline_mode<synchronous>, transform_indices = @transform_2, window_bounds = array<i64: 1, 32>}, {pipeline_mode = #tpu.pipeline_mode<synchronous>, transform_indices = @transform_3, window_bounds = array<i64: 1, 32>}, {pipeline_mode = #tpu.pipeline_mode<synchronous>, transform_indices = @transform_4, window_bounds = array<i64: 32, 32>}, {pipeline_mode = #tpu.pipeline_mode<synchronous>, transform_indices = @transform_5, window_bounds = array<i64: 1, 32>}, {pipeline_mode = #tpu.pipeline_mode<synchronous>, transform_indices = @transform_6, window_bounds = array<i64: 32, 32>}, {pipeline_mode = #tpu.pipeline_mode<synchronous>, transform_indices = @transform_7, window_bounds = array<i64: 1, 32>}, {pipeline_mode = #tpu.pipeline_mode<synchronous>, transform_indices = @transform_8, window_bounds = array<i64: 32, 32>}, {pipeline_mode = #tpu.pipeline_mode<synchronous>, transform_indices = @transform_9, window_bounds = array<i64: 1, 32>}, {pipeline_mode = #tpu.pipeline_mode<synchronous>, transform_indices = @transform_10, window_bounds = array<i64: 32, 32>}, {pipeline_mode = #tpu.pipeline_mode<synchronous>, transform_indices = @transform_11, window_bounds = array<i64: 1, 32>}, {pipeline_mode = #tpu.pipeline_mode<synchronous>, transform_indices = @transform_12, window_bounds = array<i64: 1, 32>}, {pipeline_mode = #tpu.pipeline_mode<synchronous>, transform_indices = @transform_13, window_bounds = array<i64: 1, 32>}, {pipeline_mode = #tpu.pipeline_mode<synchronous>, transform_indices = @transform_14, window_bounds = array<i64: 32, 64>}, {pipeline_mode = #tpu.pipeline_mode<synchronous>, transform_indices = @transform_15, window_bounds = array<i64: 1, 64>}, {pipeline_mode = #tpu.pipeline_mode<synchronous>, transform_indices = @transform_16, window_bounds = array<i64: 64, 32>}, {pipeline_mode = #tpu.pipeline_mode<synchronous>, transform_indices = @transform_17, window_bounds = array<i64: 1, 32>}, {transform_indices = @transform_18, window_bounds = array<i64: 1, 8, 32>}]} {
    %c0_i32 = arith.constant 0 : i32
    %0 = arith.cmpi eq, %arg1, %c0_i32 : i32
    %1 = arith.extui %0 : i1 to i32
    %c0_i32_0 = arith.constant 0 : i32
    %2 = arith.cmpi ne, %1, %c0_i32_0 : i32
    scf.if %2 {
      %c0_i32_69 = arith.constant 0 : i32
      %c1_i32 = arith.constant 1 : i32
      %126 = arith.muli %c0_i32_69, %c1_i32 : i32
      %c0_i32_70 = arith.constant 0 : i32
      %127 = arith.addi %c0_i32_70, %126 : i32
      %c8_i32_71 = arith.constant 8 : i32
      %128 = arith.muli %127, %c8_i32_71 : i32
      %129 = tpu.assume_multiple %128, 8 : i32
      %c0_72 = arith.constant 0 : index
      %130 = arith.index_cast %129 : i32 to index
      %c0_73 = arith.constant 0 : index
      %131 = vector.load %arg2[%c0_72, %130, %c0_73] : memref<1x8x32xf32, #tpu.memory_space<vmem>>, vector<1x8x32xf32>
      %132 = vector.shape_cast %131 : vector<1x8x32xf32> to vector<8x32xf32>
      %c0_74 = arith.constant 0 : index
      %c0_75 = arith.constant 0 : index
      %133 = vector.load %arg4[%c0_74, %c0_75] : memref<1x32xf32, #tpu.memory_space<vmem>>, vector<1x32xf32>
      %c0_76 = arith.constant 0 : index
      %c0_77 = arith.constant 0 : index
      %134 = vector.load %arg5[%c0_76, %c0_77] : memref<1x32xf32, #tpu.memory_space<vmem>>, vector<1x32xf32>
      %cst_78 = arith.constant dense<0.000000e+00> : vector<8xf32>
      %135 = vector.multi_reduction <add>, %132, %cst_78 [1] : vector<8x32xf32> to vector<8xf32>
      %136 = vector.shape_cast %135 : vector<8xf32> to vector<8x1xf32>
      %cst_79 = arith.constant 3.200000e+01 : f32
      %137 = vector.broadcast %cst_79 : f32 to vector<8x1xf32>
      %138 = arith.divf %136, %137 : vector<8x1xf32>
      %139 = vector.broadcast %138 : vector<8x1xf32> to vector<8x32xf32>
      %140 = arith.subf %132, %139 : vector<8x32xf32>
      %141 = arith.mulf %140, %140 : vector<8x32xf32>
      %cst_80 = arith.constant dense<0.000000e+00> : vector<8xf32>
      %142 = vector.multi_reduction <add>, %141, %cst_80 [1] : vector<8x32xf32> to vector<8xf32>
      %143 = vector.shape_cast %142 : vector<8xf32> to vector<8x1xf32>
      %cst_81 = arith.constant 3.200000e+01 : f32
      %144 = vector.broadcast %cst_81 : f32 to vector<8x1xf32>
      %145 = arith.divf %143, %144 : vector<8x1xf32>
      %146 = vector.broadcast %138 : vector<8x1xf32> to vector<8x32xf32>
      %147 = arith.subf %132, %146 : vector<8x32xf32>
      %cst_82 = arith.constant 9.99999974E-6 : f32
      %148 = vector.broadcast %cst_82 : f32 to vector<8x1xf32>
      %149 = arith.addf %145, %148 : vector<8x1xf32>
      %150 = math.rsqrt %149 : vector<8x1xf32>
      %151 = vector.broadcast %150 : vector<8x1xf32> to vector<8x32xf32>
      %152 = arith.mulf %147, %151 : vector<8x32xf32>
      %153 = vector.broadcast %133 : vector<1x32xf32> to vector<8x32xf32>
      %154 = arith.mulf %152, %153 : vector<8x32xf32>
      %155 = vector.broadcast %134 : vector<1x32xf32> to vector<8x32xf32>
      %156 = arith.addf %154, %155 : vector<8x32xf32>
      %157 = arith.truncf %156 : vector<8x32xf32> to vector<8x32xbf16>
      %158 = arith.index_cast %129 : i32 to index
      %c0_83 = arith.constant 0 : index
      %159 = vector.load %arg21[%158, %c0_83] : memref<8x32xbf16, #tpu.memory_space<vmem>>, vector<8x32xbf16>
      tpu.vector_store %arg21[%158, %c0_83], %157 {strides = array<i32>} : memref<8x32xbf16, #tpu.memory_space<vmem>>, vector<8x32xbf16>,
      %c0_84 = arith.constant 0 : index
      %c0_85 = arith.constant 0 : index
      %160 = vector.load %arg8[%c0_84, %c0_85] : memref<32x32xbf16, #tpu.memory_space<vmem>>, vector<32x32xbf16>
      %cst_86 = arith.constant dense<0.000000e+00> : vector<8x32xf32>
      %161 = tpu.matmul %157, %160, %cst_86 {dimension_numbers = #tpu.dot_dimension_numbers<[1], [0], [0], [1], [0, 0, 1, 1], [], []>} : vector<8x32xbf16>, vector<32x32xbf16>, vector<8x32xf32> -> vector<8x32xf32>
      %c0_87 = arith.constant 0 : index
      %c0_88 = arith.constant 0 : index
      %162 = vector.load %arg9[%c0_87, %c0_88] : memref<1x32xf32, #tpu.memory_space<vmem>>, vector<1x32xf32>
      %163 = vector.broadcast %162 : vector<1x32xf32> to vector<8x32xf32>
      %164 = arith.addf %161, %163 : vector<8x32xf32>
      %c0_89 = arith.constant 0 : index
      %c0_90 = arith.constant 0 : index
      %165 = vector.load %arg10[%c0_89, %c0_90] : memref<32x32xbf16, #tpu.memory_space<vmem>>, vector<32x32xbf16>
      %cst_91 = arith.constant dense<0.000000e+00> : vector<8x32xf32>
      %166 = tpu.matmul %157, %165, %cst_91 {dimension_numbers = #tpu.dot_dimension_numbers<[1], [0], [0], [1], [0, 0, 1, 1], [], []>} : vector<8x32xbf16>, vector<32x32xbf16>, vector<8x32xf32> -> vector<8x32xf32>
      %c0_92 = arith.constant 0 : index
      %c0_93 = arith.constant 0 : index
      %167 = vector.load %arg11[%c0_92, %c0_93] : memref<1x32xf32, #tpu.memory_space<vmem>>, vector<1x32xf32>
      %168 = vector.broadcast %167 : vector<1x32xf32> to vector<8x32xf32>
      %169 = arith.addf %166, %168 : vector<8x32xf32>
      %170 = vector.extract_strided_slice %164 {offsets = [0, 0], sizes = [8, 8], strides = [1, 1]} : vector<8x32xf32> to vector<8x8xf32>
      %171 = tpu.transpose %170, [1, 0] : vector<8x8xf32> -> vector<8x8xf32>
      %172 = arith.truncf %171 : vector<8x8xf32> to vector<8x8xbf16>
      %c0_94 = arith.constant 0 : index
      %c0_95 = arith.constant 0 : index
      %173 = arith.index_cast %129 : i32 to index
      %174 = vector.load %arg22[%c0_94, %c0_95, %173] : memref<4x8x8xbf16, #tpu.memory_space<vmem>>, vector<1x8x8xbf16>
      %175 = vector.shape_cast %174 : vector<1x8x8xbf16> to vector<8x8xbf16>
      %176 = vector.shape_cast %172 : vector<8x8xbf16> to vector<1x8x8xbf16>
      tpu.vector_store %arg22[%c0_94, %c0_95, %173], %176 {strides = array<i32>} : memref<4x8x8xbf16, #tpu.memory_space<vmem>>, vector<1x8x8xbf16>,
      %177 = vector.extract_strided_slice %169 {offsets = [0, 0], sizes = [8, 8], strides = [1, 1]} : vector<8x32xf32> to vector<8x8xf32>
      %178 = arith.truncf %177 : vector<8x8xf32> to vector<8x8xbf16>
      %c0_96 = arith.constant 0 : index
      %179 = arith.index_cast %129 : i32 to index
      %c0_97 = arith.constant 0 : index
      %180 = vector.load %arg23[%c0_96, %179, %c0_97] : memref<4x8x8xbf16, #tpu.memory_space<vmem>>, vector<1x8x8xbf16>
      %181 = vector.shape_cast %180 : vector<1x8x8xbf16> to vector<8x8xbf16>
      %182 = vector.shape_cast %178 : vector<8x8xbf16> to vector<1x8x8xbf16>
      tpu.vector_store %arg23[%c0_96, %179, %c0_97], %182 {strides = array<i32>} : memref<4x8x8xbf16, #tpu.memory_space<vmem>>, vector<1x8x8xbf16>,
      %183 = vector.extract_strided_slice %164 {offsets = [0, 8], sizes = [8, 8], strides = [1, 1]} : vector<8x32xf32> to vector<8x8xf32>
      %184 = tpu.transpose %183, [1, 0] : vector<8x8xf32> -> vector<8x8xf32>
      %185 = arith.truncf %184 : vector<8x8xf32> to vector<8x8xbf16>
      %c1_98 = arith.constant 1 : index
      %c0_99 = arith.constant 0 : index
      %186 = arith.index_cast %129 : i32 to index
      %187 = vector.load %arg22[%c1_98, %c0_99, %186] : memref<4x8x8xbf16, #tpu.memory_space<vmem>>, vector<1x8x8xbf16>
      %188 = vector.shape_cast %187 : vector<1x8x8xbf16> to vector<8x8xbf16>
      %189 = vector.shape_cast %185 : vector<8x8xbf16> to vector<1x8x8xbf16>
      tpu.vector_store %arg22[%c1_98, %c0_99, %186], %189 {strides = array<i32>} : memref<4x8x8xbf16, #tpu.memory_space<vmem>>, vector<1x8x8xbf16>,
      %190 = vector.extract_strided_slice %169 {offsets = [0, 8], sizes = [8, 8], strides = [1, 1]} : vector<8x32xf32> to vector<8x8xf32>
      %191 = arith.truncf %190 : vector<8x8xf32> to vector<8x8xbf16>
      %c1_100 = arith.constant 1 : index
      %192 = arith.index_cast %129 : i32 to index
      %c0_101 = arith.constant 0 : index
      %193 = vector.load %arg23[%c1_100, %192, %c0_101] : memref<4x8x8xbf16, #tpu.memory_space<vmem>>, vector<1x8x8xbf16>
      %194 = vector.shape_cast %193 : vector<1x8x8xbf16> to vector<8x8xbf16>
      %195 = vector.shape_cast %191 : vector<8x8xbf16> to vector<1x8x8xbf16>
      tpu.vector_store %arg23[%c1_100, %192, %c0_101], %195 {strides = array<i32>} : memref<4x8x8xbf16, #tpu.memory_space<vmem>>, vector<1x8x8xbf16>,
      %196 = vector.extract_strided_slice %164 {offsets = [0, 16], sizes = [8, 8], strides = [1, 1]} : vector<8x32xf32> to vector<8x8xf32>
      %197 = tpu.transpose %196, [1, 0] : vector<8x8xf32> -> vector<8x8xf32>
      %198 = arith.truncf %197 : vector<8x8xf32> to vector<8x8xbf16>
      %c2_102 = arith.constant 2 : index
      %c0_103 = arith.constant 0 : index
      %199 = arith.index_cast %129 : i32 to index
      %200 = vector.load %arg22[%c2_102, %c0_103, %199] : memref<4x8x8xbf16, #tpu.memory_space<vmem>>, vector<1x8x8xbf16>
      %201 = vector.shape_cast %200 : vector<1x8x8xbf16> to vector<8x8xbf16>
      %202 = vector.shape_cast %198 : vector<8x8xbf16> to vector<1x8x8xbf16>
      tpu.vector_store %arg22[%c2_102, %c0_103, %199], %202 {strides = array<i32>} : memref<4x8x8xbf16, #tpu.memory_space<vmem>>, vector<1x8x8xbf16>,
      %203 = vector.extract_strided_slice %169 {offsets = [0, 16], sizes = [8, 8], strides = [1, 1]} : vector<8x32xf32> to vector<8x8xf32>
      %204 = arith.truncf %203 : vector<8x8xf32> to vector<8x8xbf16>
      %c2_104 = arith.constant 2 : index
      %205 = arith.index_cast %129 : i32 to index
      %c0_105 = arith.constant 0 : index
      %206 = vector.load %arg23[%c2_104, %205, %c0_105] : memref<4x8x8xbf16, #tpu.memory_space<vmem>>, vector<1x8x8xbf16>
      %207 = vector.shape_cast %206 : vector<1x8x8xbf16> to vector<8x8xbf16>
      %208 = vector.shape_cast %204 : vector<8x8xbf16> to vector<1x8x8xbf16>
      tpu.vector_store %arg23[%c2_104, %205, %c0_105], %208 {strides = array<i32>} : memref<4x8x8xbf16, #tpu.memory_space<vmem>>, vector<1x8x8xbf16>,
      %209 = vector.extract_strided_slice %164 {offsets = [0, 24], sizes = [8, 8], strides = [1, 1]} : vector<8x32xf32> to vector<8x8xf32>
      %210 = tpu.transpose %209, [1, 0] : vector<8x8xf32> -> vector<8x8xf32>
      %211 = arith.truncf %210 : vector<8x8xf32> to vector<8x8xbf16>
      %c3_106 = arith.constant 3 : index
      %c0_107 = arith.constant 0 : index
      %212 = arith.index_cast %129 : i32 to index
      %213 = vector.load %arg22[%c3_106, %c0_107, %212] : memref<4x8x8xbf16, #tpu.memory_space<vmem>>, vector<1x8x8xbf16>
      %214 = vector.shape_cast %213 : vector<1x8x8xbf16> to vector<8x8xbf16>
      %215 = vector.shape_cast %211 : vector<8x8xbf16> to vector<1x8x8xbf16>
      tpu.vector_store %arg22[%c3_106, %c0_107, %212], %215 {strides = array<i32>} : memref<4x8x8xbf16, #tpu.memory_space<vmem>>, vector<1x8x8xbf16>,
      %216 = vector.extract_strided_slice %169 {offsets = [0, 24], sizes = [8, 8], strides = [1, 1]} : vector<8x32xf32> to vector<8x8xf32>
      %217 = arith.truncf %216 : vector<8x8xf32> to vector<8x8xbf16>
      %c3_108 = arith.constant 3 : index
      %218 = arith.index_cast %129 : i32 to index
      %c0_109 = arith.constant 0 : index
      %219 = vector.load %arg23[%c3_108, %218, %c0_109] : memref<4x8x8xbf16, #tpu.memory_space<vmem>>, vector<1x8x8xbf16>
      %220 = vector.shape_cast %219 : vector<1x8x8xbf16> to vector<8x8xbf16>
      %221 = vector.shape_cast %217 : vector<8x8xbf16> to vector<1x8x8xbf16>
      tpu.vector_store %arg23[%c3_108, %218, %c0_109], %221 {strides = array<i32>} : memref<4x8x8xbf16, #tpu.memory_space<vmem>>, vector<1x8x8xbf16>,
      %c1_i32_110 = arith.constant 1 : i32
    } else {
    }
    %c8_i32 = arith.constant 8 : i32
    %3 = arith.muli %arg1, %c8_i32 : i32
    %4 = tpu.assume_multiple %3, 8 : i32
    %5 = arith.index_cast %4 : i32 to index
    %c0 = arith.constant 0 : index
    %6 = vector.load %arg21[%5, %c0] : memref<8x32xbf16, #tpu.memory_space<vmem>>, vector<8x32xbf16>
    %c0_1 = arith.constant 0 : index
    %c0_2 = arith.constant 0 : index
    %7 = vector.load %arg6[%c0_1, %c0_2] : memref<32x32xbf16, #tpu.memory_space<vmem>>, vector<32x32xbf16>
    %cst = arith.constant dense<0.000000e+00> : vector<8x32xf32>
    %8 = tpu.matmul %6, %7, %cst {dimension_numbers = #tpu.dot_dimension_numbers<[1], [0], [0], [1], [0, 0, 1, 1], [], []>} : vector<8x32xbf16>, vector<32x32xbf16>, vector<8x32xf32> -> vector<8x32xf32>
    %c0_3 = arith.constant 0 : index
    %c0_4 = arith.constant 0 : index
    %9 = vector.load %arg7[%c0_3, %c0_4] : memref<1x32xf32, #tpu.memory_space<vmem>>, vector<1x32xf32>
    %10 = vector.broadcast %9 : vector<1x32xf32> to vector<8x32xf32>
    %11 = arith.addf %8, %10 : vector<8x32xf32>
    %cst_5 = arith.constant 0.353553385 : f32
    %12 = vector.broadcast %cst_5 : f32 to vector<8x32xf32>
    %13 = arith.mulf %11, %12 : vector<8x32xf32>
    %14 = vector.extract_strided_slice %13 {offsets = [0, 0], sizes = [8, 8], strides = [1, 1]} : vector<8x32xf32> to vector<8x8xf32>
    %15 = arith.truncf %14 : vector<8x8xf32> to vector<8x8xbf16>
    %c0_6 = arith.constant 0 : index
    %c0_7 = arith.constant 0 : index
    %c0_8 = arith.constant 0 : index
    %16 = vector.load %arg24[%c0_6, %c0_7, %c0_8] : memref<4x8x8xbf16, #tpu.memory_space<vmem>>, vector<1x8x8xbf16>
    %17 = vector.shape_cast %16 : vector<1x8x8xbf16> to vector<8x8xbf16>
    %18 = vector.shape_cast %15 : vector<8x8xbf16> to vector<1x8x8xbf16>
    tpu.vector_store %arg24[%c0_6, %c0_7, %c0_8], %18 {strides = array<i32>} : memref<4x8x8xbf16, #tpu.memory_space<vmem>>, vector<1x8x8xbf16>,
    %19 = vector.extract_strided_slice %13 {offsets = [0, 8], sizes = [8, 8], strides = [1, 1]} : vector<8x32xf32> to vector<8x8xf32>
    %20 = arith.truncf %19 : vector<8x8xf32> to vector<8x8xbf16>
    %c1 = arith.constant 1 : index
    %c0_9 = arith.constant 0 : index
    %c0_10 = arith.constant 0 : index
    %21 = vector.load %arg24[%c1, %c0_9, %c0_10] : memref<4x8x8xbf16, #tpu.memory_space<vmem>>, vector<1x8x8xbf16>
    %22 = vector.shape_cast %21 : vector<1x8x8xbf16> to vector<8x8xbf16>
    %23 = vector.shape_cast %20 : vector<8x8xbf16> to vector<1x8x8xbf16>
    tpu.vector_store %arg24[%c1, %c0_9, %c0_10], %23 {strides = array<i32>} : memref<4x8x8xbf16, #tpu.memory_space<vmem>>, vector<1x8x8xbf16>,
    %24 = vector.extract_strided_slice %13 {offsets = [0, 16], sizes = [8, 8], strides = [1, 1]} : vector<8x32xf32> to vector<8x8xf32>
    %25 = arith.truncf %24 : vector<8x8xf32> to vector<8x8xbf16>
    %c2 = arith.constant 2 : index
    %c0_11 = arith.constant 0 : index
    %c0_12 = arith.constant 0 : index
    %26 = vector.load %arg24[%c2, %c0_11, %c0_12] : memref<4x8x8xbf16, #tpu.memory_space<vmem>>, vector<1x8x8xbf16>
    %27 = vector.shape_cast %26 : vector<1x8x8xbf16> to vector<8x8xbf16>
    %28 = vector.shape_cast %25 : vector<8x8xbf16> to vector<1x8x8xbf16>
    tpu.vector_store %arg24[%c2, %c0_11, %c0_12], %28 {strides = array<i32>} : memref<4x8x8xbf16, #tpu.memory_space<vmem>>, vector<1x8x8xbf16>,
    %29 = vector.extract_strided_slice %13 {offsets = [0, 24], sizes = [8, 8], strides = [1, 1]} : vector<8x32xf32> to vector<8x8xf32>
    %30 = arith.truncf %29 : vector<8x8xf32> to vector<8x8xbf16>
    %c3 = arith.constant 3 : index
    %c0_13 = arith.constant 0 : index
    %c0_14 = arith.constant 0 : index
    %31 = vector.load %arg24[%c3, %c0_13, %c0_14] : memref<4x8x8xbf16, #tpu.memory_space<vmem>>, vector<1x8x8xbf16>
    %32 = vector.shape_cast %31 : vector<1x8x8xbf16> to vector<8x8xbf16>
    %33 = vector.shape_cast %30 : vector<8x8xbf16> to vector<1x8x8xbf16>
    tpu.vector_store %arg24[%c3, %c0_13, %c0_14], %33 {strides = array<i32>} : memref<4x8x8xbf16, #tpu.memory_space<vmem>>, vector<1x8x8xbf16>,
    %c0_15 = arith.constant 0 : index
    %c0_16 = arith.constant 0 : index
    %c0_17 = arith.constant 0 : index
    %34 = vector.load %arg24[%c0_15, %c0_16, %c0_17] : memref<4x8x8xbf16, #tpu.memory_space<vmem>>, vector<4x8x8xbf16>
    %c0_18 = arith.constant 0 : index
    %c0_19 = arith.constant 0 : index
    %c0_20 = arith.constant 0 : index
    %35 = vector.load %arg22[%c0_18, %c0_19, %c0_20] : memref<4x8x8xbf16, #tpu.memory_space<vmem>>, vector<4x8x8xbf16>
    "tpu.trace_start"() <{level = 10 : i32, message = "hqd,hds->hqs"}> : () -> ()
    %cst_21 = arith.constant dense<0.000000e+00> : vector<4x8x8xf32>
    %36 = tpu.matmul %34, %35, %cst_21 {dimension_numbers = #tpu.dot_dimension_numbers<[2], [1], [1], [2], [0, 0, 0, 1, 1, 2], [0], [0]>} : vector<4x8x8xbf16>, vector<4x8x8xbf16>, vector<4x8x8xf32> -> vector<4x8x8xf32>
    "tpu.trace_stop"() : () -> ()
    %c0_22 = arith.constant 0 : index
    %c0_23 = arith.constant 0 : index
    %c0_24 = arith.constant 0 : index
    %37 = vector.load %arg3[%c0_22, %c0_23, %c0_24] : memref<1x8x8xi8, #tpu.memory_space<vmem>>, vector<1x8x8xi8>
    %38 = vector.shape_cast %37 : vector<1x8x8xi8> to vector<8x8xi8>
    %39 = arith.sitofp %38 : vector<8x8xi8> to vector<8x8xf32>
    %40 = vector.shape_cast %39 : vector<8x8xf32> to vector<1x8x8xf32>
    %cst_25 = arith.constant -1.000000e+30 : f32
    %41 = vector.broadcast %cst_25 : f32 to vector<1x8x8xf32>
    %42 = arith.mulf %40, %41 : vector<1x8x8xf32>
    %43 = vector.broadcast %42 : vector<1x8x8xf32> to vector<4x8x8xf32>
    %44 = arith.addf %36, %43 : vector<4x8x8xf32>
    %cst_26 = arith.constant dense<0xFF800000> : vector<4x8xf32>
    %45 = vector.multi_reduction <maximumf>, %44, %cst_26 [2] : vector<4x8x8xf32> to vector<4x8xf32>
    %46 = vector.shape_cast %45 : vector<4x8xf32> to vector<4x8x1xf32>
    %47 = vector.broadcast %46 : vector<4x8x1xf32> to vector<4x8x8xf32>
    %48 = arith.subf %44, %47 : vector<4x8x8xf32>
    %49 = math.exp %48 : vector<4x8x8xf32>
    %cst_27 = arith.constant dense<0.000000e+00> : vector<4x8xf32>
    %50 = vector.multi_reduction <add>, %49, %cst_27 [2] : vector<4x8x8xf32> to vector<4x8xf32>
    %51 = vector.shape_cast %50 : vector<4x8xf32> to vector<4x8x1xf32>
    %52 = tpu.reciprocal %51 {approx = true} : vector<4x8x1xf32> -> vector<4x8x1xf32>
    %53 = vector.broadcast %52 : vector<4x8x1xf32> to vector<4x8x8xf32>
    %54 = arith.mulf %49, %53 : vector<4x8x8xf32>
    %55 = arith.truncf %54 : vector<4x8x8xf32> to vector<4x8x8xbf16>
    %c0_28 = arith.constant 0 : index
    %c0_29 = arith.constant 0 : index
    %c0_30 = arith.constant 0 : index
    %56 = vector.load %arg23[%c0_28, %c0_29, %c0_30] : memref<4x8x8xbf16, #tpu.memory_space<vmem>>, vector<4x8x8xbf16>
    "tpu.trace_start"() <{level = 10 : i32, message = "hqk,hkd->hqd"}> : () -> ()
    %cst_31 = arith.constant dense<0.000000e+00> : vector<4x8x8xf32>
    %57 = tpu.matmul %55, %56, %cst_31 {dimension_numbers = #tpu.dot_dimension_numbers<[2], [1], [1], [2], [0, 0, 0, 1, 1, 2], [0], [0]>} : vector<4x8x8xbf16>, vector<4x8x8xbf16>, vector<4x8x8xf32> -> vector<4x8x8xf32>
    "tpu.trace_stop"() : () -> ()
    %58 = vector.extract_strided_slice %57 {offsets = [0, 0, 0], sizes = [1, 8, 8], strides = [1, 1, 1]} : vector<4x8x8xf32> to vector<1x8x8xf32>
    %59 = vector.shape_cast %58 : vector<1x8x8xf32> to vector<8x8xf32>
    %60 = arith.truncf %59 : vector<8x8xf32> to vector<8x8xbf16>
    %c0_32 = arith.constant 0 : index
    %c0_33 = arith.constant 0 : index
    %61 = vector.load %arg25[%c0_32, %c0_33] : memref<8x32xbf16, #tpu.memory_space<vmem>>, vector<8x8xbf16>
    tpu.vector_store %arg25[%c0_32, %c0_33], %60 {strides = array<i32>} : memref<8x32xbf16, #tpu.memory_space<vmem>>, vector<8x8xbf16>,
    %62 = vector.extract_strided_slice %57 {offsets = [1, 0, 0], sizes = [1, 8, 8], strides = [1, 1, 1]} : vector<4x8x8xf32> to vector<1x8x8xf32>
    %63 = vector.shape_cast %62 : vector<1x8x8xf32> to vector<8x8xf32>
    %64 = arith.truncf %63 : vector<8x8xf32> to vector<8x8xbf16>
    %c0_34 = arith.constant 0 : index
    %c8 = arith.constant 8 : index
    %65 = vector.load %arg25[%c0_34, %c8] : memref<8x32xbf16, #tpu.memory_space<vmem>>, vector<8x8xbf16>
    tpu.vector_store %arg25[%c0_34, %c8], %64 {strides = array<i32>} : memref<8x32xbf16, #tpu.memory_space<vmem>>, vector<8x8xbf16>,
    %66 = vector.extract_strided_slice %57 {offsets = [2, 0, 0], sizes = [1, 8, 8], strides = [1, 1, 1]} : vector<4x8x8xf32> to vector<1x8x8xf32>
    %67 = vector.shape_cast %66 : vector<1x8x8xf32> to vector<8x8xf32>
    %68 = arith.truncf %67 : vector<8x8xf32> to vector<8x8xbf16>
    %c0_35 = arith.constant 0 : index
    %c16 = arith.constant 16 : index
    %69 = vector.load %arg25[%c0_35, %c16] : memref<8x32xbf16, #tpu.memory_space<vmem>>, vector<8x8xbf16>
    tpu.vector_store %arg25[%c0_35, %c16], %68 {strides = array<i32>} : memref<8x32xbf16, #tpu.memory_space<vmem>>, vector<8x8xbf16>,
    %70 = vector.extract_strided_slice %57 {offsets = [3, 0, 0], sizes = [1, 8, 8], strides = [1, 1, 1]} : vector<4x8x8xf32> to vector<1x8x8xf32>
    %71 = vector.shape_cast %70 : vector<1x8x8xf32> to vector<8x8xf32>
    %72 = arith.truncf %71 : vector<8x8xf32> to vector<8x8xbf16>
    %c0_36 = arith.constant 0 : index
    %c24 = arith.constant 24 : index
    %73 = vector.load %arg25[%c0_36, %c24] : memref<8x32xbf16, #tpu.memory_space<vmem>>, vector<8x8xbf16>
    tpu.vector_store %arg25[%c0_36, %c24], %72 {strides = array<i32>} : memref<8x32xbf16, #tpu.memory_space<vmem>>, vector<8x8xbf16>,
    %c0_37 = arith.constant 0 : index
    %c0_38 = arith.constant 0 : index
    %74 = vector.load %arg25[%c0_37, %c0_38] : memref<8x32xbf16, #tpu.memory_space<vmem>>, vector<8x32xbf16>
    %c0_39 = arith.constant 0 : index
    %c0_40 = arith.constant 0 : index
    %75 = vector.load %arg12[%c0_39, %c0_40] : memref<32x32xbf16, #tpu.memory_space<vmem>>, vector<32x32xbf16>
    %cst_41 = arith.constant dense<0.000000e+00> : vector<8x32xf32>
    %76 = tpu.matmul %74, %75, %cst_41 {dimension_numbers = #tpu.dot_dimension_numbers<[1], [0], [0], [1], [0, 0, 1, 1], [], []>} : vector<8x32xbf16>, vector<32x32xbf16>, vector<8x32xf32> -> vector<8x32xf32>
    %c0_42 = arith.constant 0 : index
    %c0_43 = arith.constant 0 : index
    %77 = vector.load %arg13[%c0_42, %c0_43] : memref<1x32xf32, #tpu.memory_space<vmem>>, vector<1x32xf32>
    %78 = vector.broadcast %77 : vector<1x32xf32> to vector<8x32xf32>
    %79 = arith.addf %76, %78 : vector<8x32xf32>
    %c0_44 = arith.constant 0 : index
    %80 = arith.index_cast %4 : i32 to index
    %c0_45 = arith.constant 0 : index
    %81 = vector.load %arg2[%c0_44, %80, %c0_45] : memref<1x8x32xf32, #tpu.memory_space<vmem>>, vector<1x8x32xf32>
    %82 = vector.shape_cast %81 : vector<1x8x32xf32> to vector<8x32xf32>
    %83 = arith.addf %82, %79 : vector<8x32xf32>
    %c0_46 = arith.constant 0 : index
    %c0_47 = arith.constant 0 : index
    %84 = vector.load %arg14[%c0_46, %c0_47] : memref<1x32xf32, #tpu.memory_space<vmem>>, vector<1x32xf32>
    %c0_48 = arith.constant 0 : index
    %c0_49 = arith.constant 0 : index
    %85 = vector.load %arg15[%c0_48, %c0_49] : memref<1x32xf32, #tpu.memory_space<vmem>>, vector<1x32xf32>
    %cst_50 = arith.constant dense<0.000000e+00> : vector<8xf32>
    %86 = vector.multi_reduction <add>, %83, %cst_50 [1] : vector<8x32xf32> to vector<8xf32>
    %87 = vector.shape_cast %86 : vector<8xf32> to vector<8x1xf32>
    %cst_51 = arith.constant 3.200000e+01 : f32
    %88 = vector.broadcast %cst_51 : f32 to vector<8x1xf32>
    %89 = arith.divf %87, %88 : vector<8x1xf32>
    %90 = vector.broadcast %89 : vector<8x1xf32> to vector<8x32xf32>
    %91 = arith.subf %83, %90 : vector<8x32xf32>
    %92 = arith.mulf %91, %91 : vector<8x32xf32>
    %cst_52 = arith.constant dense<0.000000e+00> : vector<8xf32>
    %93 = vector.multi_reduction <add>, %92, %cst_52 [1] : vector<8x32xf32> to vector<8xf32>
    %94 = vector.shape_cast %93 : vector<8xf32> to vector<8x1xf32>
    %cst_53 = arith.constant 3.200000e+01 : f32
    %95 = vector.broadcast %cst_53 : f32 to vector<8x1xf32>
    %96 = arith.divf %94, %95 : vector<8x1xf32>
    %97 = vector.broadcast %89 : vector<8x1xf32> to vector<8x32xf32>
    %98 = arith.subf %83, %97 : vector<8x32xf32>
    %cst_54 = arith.constant 9.99999974E-6 : f32
    %99 = vector.broadcast %cst_54 : f32 to vector<8x1xf32>
    %100 = arith.addf %96, %99 : vector<8x1xf32>
    %101 = math.rsqrt %100 : vector<8x1xf32>
    %102 = vector.broadcast %101 : vector<8x1xf32> to vector<8x32xf32>
    %103 = arith.mulf %98, %102 : vector<8x32xf32>
    %104 = vector.broadcast %84 : vector<1x32xf32> to vector<8x32xf32>
    %105 = arith.mulf %103, %104 : vector<8x32xf32>
    %106 = vector.broadcast %85 : vector<1x32xf32> to vector<8x32xf32>
    %107 = arith.addf %105, %106 : vector<8x32xf32>
    %108 = arith.truncf %107 : vector<8x32xf32> to vector<8x32xbf16>
    %c0_55 = arith.constant 0 : index
    %c0_56 = arith.constant 0 : index
    %109 = vector.load %arg16[%c0_55, %c0_56] : memref<32x64xbf16, #tpu.memory_space<vmem>>, vector<32x64xbf16>
    %cst_57 = arith.constant dense<0.000000e+00> : vector<8x64xf32>
    %110 = tpu.matmul %108, %109, %cst_57 {dimension_numbers = #tpu.dot_dimension_numbers<[1], [0], [0], [1], [0, 0, 1, 1], [], []>} : vector<8x32xbf16>, vector<32x64xbf16>, vector<8x64xf32> -> vector<8x64xf32>
    %c0_58 = arith.constant 0 : index
    %c0_59 = arith.constant 0 : index
    %111 = vector.load %arg17[%c0_58, %c0_59] : memref<1x64xf32, #tpu.memory_space<vmem>>, vector<1x64xf32>
    %112 = vector.broadcast %111 : vector<1x64xf32> to vector<8x64xf32>
    %113 = arith.addf %110, %112 : vector<8x64xf32>
    %cst_60 = arith.constant 0.000000e+00 : f32
    %114 = vector.broadcast %cst_60 : f32 to vector<8x64xf32>
    %115 = arith.maximumf %113, %114 : vector<8x64xf32>
    %116 = arith.truncf %115 : vector<8x64xf32> to vector<8x64xbf16>
    %c0_61 = arith.constant 0 : index
    %c0_62 = arith.constant 0 : index
    %117 = vector.load %arg18[%c0_61, %c0_62] : memref<64x32xbf16, #tpu.memory_space<vmem>>, vector<64x32xbf16>
    %cst_63 = arith.constant dense<0.000000e+00> : vector<8x32xf32>
    %118 = tpu.matmul %116, %117, %cst_63 {dimension_numbers = #tpu.dot_dimension_numbers<[1], [0], [0], [1], [0, 0, 1, 1], [], []>} : vector<8x64xbf16>, vector<64x32xbf16>, vector<8x32xf32> -> vector<8x32xf32>
    %c0_64 = arith.constant 0 : index
    %c0_65 = arith.constant 0 : index
    %119 = vector.load %arg19[%c0_64, %c0_65] : memref<1x32xf32, #tpu.memory_space<vmem>>, vector<1x32xf32>
    %120 = vector.broadcast %119 : vector<1x32xf32> to vector<8x32xf32>
    %121 = arith.addf %118, %120 : vector<8x32xf32>
    %122 = arith.addf %83, %121 : vector<8x32xf32>
    %c0_66 = arith.constant 0 : index
    %c0_67 = arith.constant 0 : index
    %c0_68 = arith.constant 0 : index
    %123 = vector.load %arg20[%c0_66, %c0_67, %c0_68] : memref<1x8x32xf32, #tpu.memory_space<vmem>>, vector<1x8x32xf32>
    %124 = vector.shape_cast %123 : vector<1x8x32xf32> to vector<8x32xf32>
    %125 = vector.shape_cast %122 : vector<8x32xf32> to vector<1x8x32xf32>
    tpu.vector_store %arg20[%c0_66, %c0_67, %c0_68], %125 {strides = array<i32>} : memref<1x8x32xf32, #tpu.memory_space<vmem>>, vector<1x8x32xf32>,
    return
  }
  func.func @transform_0(%arg0: i32, %arg1: i32) -> (i32, i32, i32) {
    %c0_i32 = arith.constant 0 : i32
    %c0_i32_0 = arith.constant 0 : i32
    %c0_i32_1 = arith.constant 0 : i32
    return %arg0, %c0_i32, %c0_i32_0 : i32, i32, i32
  }
  func.func @transform_1(%arg0: i32, %arg1: i32) -> (i32, i32, i32) {
    %c0_i32 = arith.constant 0 : i32
    %c0_i32_0 = arith.constant 0 : i32
    return %arg0, %arg1, %c0_i32 : i32, i32, i32
  }
  func.func @transform_2(%arg0: i32, %arg1: i32) -> (i32, i32) {
    %c0_i32 = arith.constant 0 : i32
    %c0_i32_0 = arith.constant 0 : i32
    %c0_i32_1 = arith.constant 0 : i32
    return %c0_i32, %c0_i32_0 : i32, i32
  }
  func.func @transform_3(%arg0: i32, %arg1: i32) -> (i32, i32) {
    %c0_i32 = arith.constant 0 : i32
    %c0_i32_0 = arith.constant 0 : i32
    %c0_i32_1 = arith.constant 0 : i32
    return %c0_i32, %c0_i32_0 : i32, i32
  }
  func.func @transform_4(%arg0: i32, %arg1: i32) -> (i32, i32) {
    %c0_i32 = arith.constant 0 : i32
    %c0_i32_0 = arith.constant 0 : i32
    %c0_i32_1 = arith.constant 0 : i32
    return %c0_i32, %c0_i32_0 : i32, i32
  }
  func.func @transform_5(%arg0: i32, %arg1: i32) -> (i32, i32) {
    %c0_i32 = arith.constant 0 : i32
    %c0_i32_0 = arith.constant 0 : i32
    %c0_i32_1 = arith.constant 0 : i32
    return %c0_i32, %c0_i32_0 : i32, i32
  }
  func.func @transform_6(%arg0: i32, %arg1: i32) -> (i32, i32) {
    %c0_i32 = arith.constant 0 : i32
    %c0_i32_0 = arith.constant 0 : i32
    %c0_i32_1 = arith.constant 0 : i32
    return %c0_i32, %c0_i32_0 : i32, i32
  }
  func.func @transform_7(%arg0: i32, %arg1: i32) -> (i32, i32) {
    %c0_i32 = arith.constant 0 : i32
    %c0_i32_0 = arith.constant 0 : i32
    %c0_i32_1 = arith.constant 0 : i32
    return %c0_i32, %c0_i32_0 : i32, i32
  }
  func.func @transform_8(%arg0: i32, %arg1: i32) -> (i32, i32) {
    %c0_i32 = arith.constant 0 : i32
    %c0_i32_0 = arith.constant 0 : i32
    %c0_i32_1 = arith.constant 0 : i32
    return %c0_i32, %c0_i32_0 : i32, i32
  }
  func.func @transform_9(%arg0: i32, %arg1: i32) -> (i32, i32) {
    %c0_i32 = arith.constant 0 : i32
    %c0_i32_0 = arith.constant 0 : i32
    %c0_i32_1 = arith.constant 0 : i32
    return %c0_i32, %c0_i32_0 : i32, i32
  }
  func.func @transform_10(%arg0: i32, %arg1: i32) -> (i32, i32) {
    %c0_i32 = arith.constant 0 : i32
    %c0_i32_0 = arith.constant 0 : i32
    %c0_i32_1 = arith.constant 0 : i32
    return %c0_i32, %c0_i32_0 : i32, i32
  }
  func.func @transform_11(%arg0: i32, %arg1: i32) -> (i32, i32) {
    %c0_i32 = arith.constant 0 : i32
    %c0_i32_0 = arith.constant 0 : i32
    %c0_i32_1 = arith.constant 0 : i32
    return %c0_i32, %c0_i32_0 : i32, i32
  }
  func.func @transform_12(%arg0: i32, %arg1: i32) -> (i32, i32) {
    %c0_i32 = arith.constant 0 : i32
    %c0_i32_0 = arith.constant 0 : i32
    %c0_i32_1 = arith.constant 0 : i32
    return %c0_i32, %c0_i32_0 : i32, i32
  }
  func.func @transform_13(%arg0: i32, %arg1: i32) -> (i32, i32) {
    %c0_i32 = arith.constant 0 : i32
    %c0_i32_0 = arith.constant 0 : i32
    %c0_i32_1 = arith.constant 0 : i32
    return %c0_i32, %c0_i32_0 : i32, i32
  }
  func.func @transform_14(%arg0: i32, %arg1: i32) -> (i32, i32) {
    %c0_i32 = arith.constant 0 : i32
    %c0_i32_0 = arith.constant 0 : i32
    %c0_i32_1 = arith.constant 0 : i32
    return %c0_i32, %c0_i32_0 : i32, i32
  }
  func.func @transform_15(%arg0: i32, %arg1: i32) -> (i32, i32) {
    %c0_i32 = arith.constant 0 : i32
    %c0_i32_0 = arith.constant 0 : i32
    %c0_i32_1 = arith.constant 0 : i32
    return %c0_i32, %c0_i32_0 : i32, i32
  }
  func.func @transform_16(%arg0: i32, %arg1: i32) -> (i32, i32) {
    %c0_i32 = arith.constant 0 : i32
    %c0_i32_0 = arith.constant 0 : i32
    %c0_i32_1 = arith.constant 0 : i32
    return %c0_i32, %c0_i32_0 : i32, i32
  }
  func.func @transform_17(%arg0: i32, %arg1: i32) -> (i32, i32) {
    %c0_i32 = arith.constant 0 : i32
    %c0_i32_0 = arith.constant 0 : i32
    %c0_i32_1 = arith.constant 0 : i32
    return %c0_i32, %c0_i32_0 : i32, i32
  }
  func.func @transform_18(%arg0: i32, %arg1: i32) -> (i32, i32, i32) {
    %c0_i32 = arith.constant 0 : i32
    %c0_i32_0 = arith.constant 0 : i32
    return %arg0, %arg1, %c0_i32 : i32, i32, i32
  }
}

module attributes {stable_mosaic.version = 11 : i64} {
  func.func @transformer_layer_kernel(%arg0: i32, %arg1: i32, %arg2: memref<1x8x32xf32, #tpu.memory_space<vmem>>, %arg3: memref<1x8x8xi8, #tpu.memory_space<vmem>>, %arg4: memref<1x32xf32, #tpu.memory_space<vmem>>, %arg5: memref<1x32xf32, #tpu.memory_space<vmem>>, %arg6: memref<32x32xbf16, #tpu.memory_space<vmem>>, %arg7: memref<1x32xf32, #tpu.memory_space<vmem>>, %arg8: memref<32x32xbf16, #tpu.memory_space<vmem>>, %arg9: memref<1x32xf32, #tpu.memory_space<vmem>>, %arg10: memref<32x32xbf16, #tpu.memory_space<vmem>>, %arg11: memref<1x32xf32, #tpu.memory_space<vmem>>, %arg12: memref<32x32xbf16, #tpu.memory_space<vmem>>, %arg13: memref<1x32xf32, #tpu.memory_space<vmem>>, %arg14: memref<1x32xf32, #tpu.memory_space<vmem>>, %arg15: memref<1x32xf32, #tpu.memory_space<vmem>>, %arg16: memref<32x64xbf16, #tpu.memory_space<vmem>>, %arg17: memref<1x64xf32, #tpu.memory_space<vmem>>, %arg18: memref<64x32xbf16, #tpu.memory_space<vmem>>, %arg19: memref<1x32xf32, #tpu.memory_space<vmem>>, %arg20: memref<1x8x32xf32, #tpu.memory_space<vmem>>, %arg21: memref<8x32xbf16, #tpu.memory_space<vmem>>, %arg22: memref<4x8x8xbf16, #tpu.memory_space<vmem>>, %arg23: memref<4x8x8xbf16, #tpu.memory_space<vmem>>, %arg24: memref<4x8x8xbf16, #tpu.memory_space<vmem>>, %arg25: memref<8x32xbf16, #tpu.memory_space<vmem>>) attributes {dimension_semantics = [#tpu.dimension_semantics<parallel>, #tpu.dimension_semantics<arbitrary>], iteration_bounds = array<i64: 2, 1>, scalar_prefetch = 0 : i64, scratch_operands = 5 : i64, tpu.core_type = #tpu.core_type<tc>, window_params = [{transform_indices = @transform_0, window_bounds = array<i64: 1, 8, 32>}, {transform_indices = @transform_1, window_bounds = array<i64: 1, 8, 8>}, {pipeline_mode = #tpu.pipeline_mode<synchronous>, transform_indices = @transform_2, window_bounds = array<i64: 1, 32>}, {pipeline_mode = #tpu.pipeline_mode<synchronous>, transform_indices = @transform_3, window_bounds = array<i64: 1, 32>}, {pipeline_mode = #tpu.pipeline_mode<synchronous>, transform_indices = @transform_4, window_bounds = array<i64: 32, 32>}, {pipeline_mode = #tpu.pipeline_mode<synchronous>, transform_indices = @transform_5, window_bounds = array<i64: 1, 32>}, {pipeline_mode = #tpu.pipeline_mode<synchronous>, transform_indices = @transform_6, window_bounds = array<i64: 32, 32>}, {pipeline_mode = #tpu.pipeline_mode<synchronous>, transform_indices = @transform_7, window_bounds = array<i64: 1, 32>}, {pipeline_mode = #tpu.pipeline_mode<synchronous>, transform_indices = @transform_8, window_bounds = array<i64: 32, 32>}, {pipeline_mode = #tpu.pipeline_mode<synchronous>, transform_indices = @transform_9, window_bounds = array<i64: 1, 32>}, {pipeline_mode = #tpu.pipeline_mode<synchronous>, transform_indices = @transform_10, window_bounds = array<i64: 32, 32>}, {pipeline_mode = #tpu.pipeline_mode<synchronous>, transform_indices = @transform_11, window_bounds = array<i64: 1, 32>}, {pipeline_mode = #tpu.pipeline_mode<synchronous>, transform_indices = @transform_12, window_bounds = array<i64: 1, 32>}, {pipeline_mode = #tpu.pipeline_mode<synchronous>, transform_indices = @transform_13, window_bounds = array<i64: 1, 32>}, {pipeline_mode = #tpu.pipeline_mode<synchronous>, transform_indices = @transform_14, window_bounds = array<i64: 32, 64>}, {pipeline_mode = #tpu.pipeline_mode<synchronous>, transform_indices = @transform_15, window_bounds = array<i64: 1, 64>}, {pipeline_mode = #tpu.pipeline_mode<synchronous>, transform_indices = @transform_16, window_bounds = array<i64: 64, 32>}, {pipeline_mode = #tpu.pipeline_mode<synchronous>, transform_indices = @transform_17, window_bounds = array<i64: 1, 32>}, {transform_indices = @transform_18, window_bounds = array<i64: 1, 8, 32>}]} {
    %c0_i32 = arith.constant 0 : i32
    %0 = arith.cmpi eq, %arg1, %c0_i32 : i32
    %1 = arith.extui %0 : i1 to i32
    %c0_i32_0 = arith.constant 0 : i32
    %2 = arith.cmpi ne, %1, %c0_i32_0 : i32
    scf.if %2 {
      %c0_i32_69 = arith.constant 0 : i32
      %c1_i32 = arith.constant 1 : i32
      %126 = arith.muli %c0_i32_69, %c1_i32 : i32
      %c0_i32_70 = arith.constant 0 : i32
      %127 = arith.addi %c0_i32_70, %126 : i32
      %c8_i32_71 = arith.constant 8 : i32
      %128 = arith.muli %127, %c8_i32_71 : i32
      %129 = tpu.assume_multiple %128, 8 : i32
      %c0_72 = arith.constant 0 : index
      %130 = arith.index_cast %129 : i32 to index
      %c0_73 = arith.constant 0 : index
      %131 = vector.load %arg2[%c0_72, %130, %c0_73] : memref<1x8x32xf32, #tpu.memory_space<vmem>>, vector<1x8x32xf32>
      %132 = vector.shape_cast %131 : vector<1x8x32xf32> to vector<8x32xf32>
      %c0_74 = arith.constant 0 : index
      %c0_75 = arith.constant 0 : index
      %133 = vector.load %arg4[%c0_74, %c0_75] : memref<1x32xf32, #tpu.memory_space<vmem>>, vector<1x32xf32>
      %c0_76 = arith.constant 0 : index
      %c0_77 = arith.constant 0 : index
      %134 = vector.load %arg5[%c0_76, %c0_77] : memref<1x32xf32, #tpu.memory_space<vmem>>, vector<1x32xf32>
      %cst_78 = arith.constant dense<0.000000e+00> : vector<8xf32>
      %135 = vector.multi_reduction <add>, %132, %cst_78 [1] : vector<8x32xf32> to vector<8xf32>
      %136 = vector.shape_cast %135 : vector<8xf32> to vector<8x1xf32>
      %cst_79 = arith.constant 3.200000e+01 : f32
      %137 = vector.broadcast %cst_79 : f32 to vector<8x1xf32>
      %138 = arith.divf %136, %137 : vector<8x1xf32>
      %139 = vector.broadcast %138 : vector<8x1xf32> to vector<8x32xf32>
      %140 = arith.subf %132, %139 : vector<8x32xf32>
      %141 = arith.mulf %140, %140 : vector<8x32xf32>
      %cst_80 = arith.constant dense<0.000000e+00> : vector<8xf32>
      %142 = vector.multi_reduction <add>, %141, %cst_80 [1] : vector<8x32xf32> to vector<8xf32>
      %143 = vector.shape_cast %142 : vector<8xf32> to vector<8x1xf32>
      %cst_81 = arith.constant 3.200000e+01 : f32
      %144 = vector.broadcast %cst_81 : f32 to vector<8x1xf32>
      %145 = arith.divf %143, %144 : vector<8x1xf32>
      %146 = vector.broadcast %138 : vector<8x1xf32> to vector<8x32xf32>
      %147 = arith.subf %132, %146 : vector<8x32xf32>
      %cst_82 = arith.constant 9.99999974E-6 : f32
      %148 = vector.broadcast %cst_82 : f32 to vector<8x1xf32>
      %149 = arith.addf %145, %148 : vector<8x1xf32>
      %150 = math.rsqrt %149 : vector<8x1xf32>
      %151 = vector.broadcast %150 : vector<8x1xf32> to vector<8x32xf32>
      %152 = arith.mulf %147, %151 : vector<8x32xf32>
      %153 = vector.broadcast %133 : vector<1x32xf32> to vector<8x32xf32>
      %154 = arith.mulf %152, %153 : vector<8x32xf32>
      %155 = vector.broadcast %134 : vector<1x32xf32> to vector<8x32xf32>
      %156 = arith.addf %154, %155 : vector<8x32xf32>
      %157 = arith.truncf %156 : vector<8x32xf32> to vector<8x32xbf16>
      %158 = arith.index_cast %129 : i32 to index
      %c0_83 = arith.constant 0 : index
      %159 = vector.load %arg21[%158, %c0_83] : memref<8x32xbf16, #tpu.memory_space<vmem>>, vector<8x32xbf16>
      tpu.vector_store %arg21[%158, %c0_83], %157 {strides = array<i32>} : memref<8x32xbf16, #tpu.memory_space<vmem>>, vector<8x32xbf16>,
      %c0_84 = arith.constant 0 : index
      %c0_85 = arith.constant 0 : index
      %160 = vector.load %arg8[%c0_84, %c0_85] : memref<32x32xbf16, #tpu.memory_space<vmem>>, vector<32x32xbf16>
      %cst_86 = arith.constant dense<0.000000e+00> : vector<8x32xf32>
      %161 = tpu.matmul %157, %160, %cst_86 {dimension_numbers = #tpu.dot_dimension_numbers<[1], [0], [0], [1], [0, 0, 1, 1], [], []>} : vector<8x32xbf16>, vector<32x32xbf16>, vector<8x32xf32> -> vector<8x32xf32>
      %c0_87 = arith.constant 0 : index
      %c0_88 = arith.constant 0 : index
      %162 = vector.load %arg9[%c0_87, %c0_88] : memref<1x32xf32, #tpu.memory_space<vmem>>, vector<1x32xf32>
      %163 = vector.broadcast %162 : vector<1x32xf32> to vector<8x32xf32>
      %164 = arith.addf %161, %163 : vector<8x32xf32>
      %c0_89 = arith.constant 0 : index
      %c0_90 = arith.constant 0 : index
      %165 = vector.load %arg10[%c0_89, %c0_90] : memref<32x32xbf16, #tpu.memory_space<vmem>>, vector<32x32xbf16>
      %cst_91 = arith.constant dense<0.000000e+00> : vector<8x32xf32>
      %166 = tpu.matmul %157, %165, %cst_91 {dimension_numbers = #tpu.dot_dimension_numbers<[1], [0], [0], [1], [0, 0, 1, 1], [], []>} : vector<8x32xbf16>, vector<32x32xbf16>, vector<8x32xf32> -> vector<8x32xf32>
      %c0_92 = arith.constant 0 : index
      %c0_93 = arith.constant 0 : index
      %167 = vector.load %arg11[%c0_92, %c0_93] : memref<1x32xf32, #tpu.memory_space<vmem>>, vector<1x32xf32>
      %168 = vector.broadcast %167 : vector<1x32xf32> to vector<8x32xf32>
      %169 = arith.addf %166, %168 : vector<8x32xf32>
      %170 = vector.extract_strided_slice %164 {offsets = [0, 0], sizes = [8, 8], strides = [1, 1]} : vector<8x32xf32> to vector<8x8xf32>
      %171 = arith.truncf %170 : vector<8x8xf32> to vector<8x8xbf16>
      %c0_94 = arith.constant 0 : index
      %172 = arith.index_cast %129 : i32 to index
      %c0_95 = arith.constant 0 : index
      %173 = vector.load %arg22[%c0_94, %172, %c0_95] : memref<4x8x8xbf16, #tpu.memory_space<vmem>>, vector<1x8x8xbf16>
      %174 = vector.shape_cast %173 : vector<1x8x8xbf16> to vector<8x8xbf16>
      %175 = vector.shape_cast %171 : vector<8x8xbf16> to vector<1x8x8xbf16>
      tpu.vector_store %arg22[%c0_94, %172, %c0_95], %175 {strides = array<i32>} : memref<4x8x8xbf16, #tpu.memory_space<vmem>>, vector<1x8x8xbf16>,
      %176 = vector.extract_strided_slice %169 {offsets = [0, 0], sizes = [8, 8], strides = [1, 1]} : vector<8x32xf32> to vector<8x8xf32>
      %177 = arith.truncf %176 : vector<8x8xf32> to vector<8x8xbf16>
      %c0_96 = arith.constant 0 : index
      %178 = arith.index_cast %129 : i32 to index
      %c0_97 = arith.constant 0 : index
      %179 = vector.load %arg23[%c0_96, %178, %c0_97] : memref<4x8x8xbf16, #tpu.memory_space<vmem>>, vector<1x8x8xbf16>
      %180 = vector.shape_cast %179 : vector<1x8x8xbf16> to vector<8x8xbf16>
      %181 = vector.shape_cast %177 : vector<8x8xbf16> to vector<1x8x8xbf16>
      tpu.vector_store %arg23[%c0_96, %178, %c0_97], %181 {strides = array<i32>} : memref<4x8x8xbf16, #tpu.memory_space<vmem>>, vector<1x8x8xbf16>,
      %182 = vector.extract_strided_slice %164 {offsets = [0, 8], sizes = [8, 8], strides = [1, 1]} : vector<8x32xf32> to vector<8x8xf32>
      %183 = arith.truncf %182 : vector<8x8xf32> to vector<8x8xbf16>
      %c1_98 = arith.constant 1 : index
      %184 = arith.index_cast %129 : i32 to index
      %c0_99 = arith.constant 0 : index
      %185 = vector.load %arg22[%c1_98, %184, %c0_99] : memref<4x8x8xbf16, #tpu.memory_space<vmem>>, vector<1x8x8xbf16>
      %186 = vector.shape_cast %185 : vector<1x8x8xbf16> to vector<8x8xbf16>
      %187 = vector.shape_cast %183 : vector<8x8xbf16> to vector<1x8x8xbf16>
      tpu.vector_store %arg22[%c1_98, %184, %c0_99], %187 {strides = array<i32>} : memref<4x8x8xbf16, #tpu.memory_space<vmem>>, vector<1x8x8xbf16>,
      %188 = vector.extract_strided_slice %169 {offsets = [0, 8], sizes = [8, 8], strides = [1, 1]} : vector<8x32xf32> to vector<8x8xf32>
      %189 = arith.truncf %188 : vector<8x8xf32> to vector<8x8xbf16>
      %c1_100 = arith.constant 1 : index
      %190 = arith.index_cast %129 : i32 to index
      %c0_101 = arith.constant 0 : index
      %191 = vector.load %arg23[%c1_100, %190, %c0_101] : memref<4x8x8xbf16, #tpu.memory_space<vmem>>, vector<1x8x8xbf16>
      %192 = vector.shape_cast %191 : vector<1x8x8xbf16> to vector<8x8xbf16>
      %193 = vector.shape_cast %189 : vector<8x8xbf16> to vector<1x8x8xbf16>
      tpu.vector_store %arg23[%c1_100, %190, %c0_101], %193 {strides = array<i32>} : memref<4x8x8xbf16, #tpu.memory_space<vmem>>, vector<1x8x8xbf16>,
      %194 = vector.extract_strided_slice %164 {offsets = [0, 16], sizes = [8, 8], strides = [1, 1]} : vector<8x32xf32> to vector<8x8xf32>
      %195 = arith.truncf %194 : vector<8x8xf32> to vector<8x8xbf16>
      %c2_102 = arith.constant 2 : index
      %196 = arith.index_cast %129 : i32 to index
      %c0_103 = arith.constant 0 : index
      %197 = vector.load %arg22[%c2_102, %196, %c0_103] : memref<4x8x8xbf16, #tpu.memory_space<vmem>>, vector<1x8x8xbf16>
      %198 = vector.shape_cast %197 : vector<1x8x8xbf16> to vector<8x8xbf16>
      %199 = vector.shape_cast %195 : vector<8x8xbf16> to vector<1x8x8xbf16>
      tpu.vector_store %arg22[%c2_102, %196, %c0_103], %199 {strides = array<i32>} : memref<4x8x8xbf16, #tpu.memory_space<vmem>>, vector<1x8x8xbf16>,
      %200 = vector.extract_strided_slice %169 {offsets = [0, 16], sizes = [8, 8], strides = [1, 1]} : vector<8x32xf32> to vector<8x8xf32>
      %201 = arith.truncf %200 : vector<8x8xf32> to vector<8x8xbf16>
      %c2_104 = arith.constant 2 : index
      %202 = arith.index_cast %129 : i32 to index
      %c0_105 = arith.constant 0 : index
      %203 = vector.load %arg23[%c2_104, %202, %c0_105] : memref<4x8x8xbf16, #tpu.memory_space<vmem>>, vector<1x8x8xbf16>
      %204 = vector.shape_cast %203 : vector<1x8x8xbf16> to vector<8x8xbf16>
      %205 = vector.shape_cast %201 : vector<8x8xbf16> to vector<1x8x8xbf16>
      tpu.vector_store %arg23[%c2_104, %202, %c0_105], %205 {strides = array<i32>} : memref<4x8x8xbf16, #tpu.memory_space<vmem>>, vector<1x8x8xbf16>,
      %206 = vector.extract_strided_slice %164 {offsets = [0, 24], sizes = [8, 8], strides = [1, 1]} : vector<8x32xf32> to vector<8x8xf32>
      %207 = arith.truncf %206 : vector<8x8xf32> to vector<8x8xbf16>
      %c3_106 = arith.constant 3 : index
      %208 = arith.index_cast %129 : i32 to index
      %c0_107 = arith.constant 0 : index
      %209 = vector.load %arg22[%c3_106, %208, %c0_107] : memref<4x8x8xbf16, #tpu.memory_space<vmem>>, vector<1x8x8xbf16>
      %210 = vector.shape_cast %209 : vector<1x8x8xbf16> to vector<8x8xbf16>
      %211 = vector.shape_cast %207 : vector<8x8xbf16> to vector<1x8x8xbf16>
      tpu.vector_store %arg22[%c3_106, %208, %c0_107], %211 {strides = array<i32>} : memref<4x8x8xbf16, #tpu.memory_space<vmem>>, vector<1x8x8xbf16>,
      %212 = vector.extract_strided_slice %169 {offsets = [0, 24], sizes = [8, 8], strides = [1, 1]} : vector<8x32xf32> to vector<8x8xf32>
      %213 = arith.truncf %212 : vector<8x8xf32> to vector<8x8xbf16>
      %c3_108 = arith.constant 3 : index
      %214 = arith.index_cast %129 : i32 to index
      %c0_109 = arith.constant 0 : index
      %215 = vector.load %arg23[%c3_108, %214, %c0_109] : memref<4x8x8xbf16, #tpu.memory_space<vmem>>, vector<1x8x8xbf16>
      %216 = vector.shape_cast %215 : vector<1x8x8xbf16> to vector<8x8xbf16>
      %217 = vector.shape_cast %213 : vector<8x8xbf16> to vector<1x8x8xbf16>
      tpu.vector_store %arg23[%c3_108, %214, %c0_109], %217 {strides = array<i32>} : memref<4x8x8xbf16, #tpu.memory_space<vmem>>, vector<1x8x8xbf16>,
      %c1_i32_110 = arith.constant 1 : i32
    } else {
    }
    %c8_i32 = arith.constant 8 : i32
    %3 = arith.muli %arg1, %c8_i32 : i32
    %4 = tpu.assume_multiple %3, 8 : i32
    %5 = arith.index_cast %4 : i32 to index
    %c0 = arith.constant 0 : index
    %6 = vector.load %arg21[%5, %c0] : memref<8x32xbf16, #tpu.memory_space<vmem>>, vector<8x32xbf16>
    %c0_1 = arith.constant 0 : index
    %c0_2 = arith.constant 0 : index
    %7 = vector.load %arg6[%c0_1, %c0_2] : memref<32x32xbf16, #tpu.memory_space<vmem>>, vector<32x32xbf16>
    %cst = arith.constant dense<0.000000e+00> : vector<8x32xf32>
    %8 = tpu.matmul %6, %7, %cst {dimension_numbers = #tpu.dot_dimension_numbers<[1], [0], [0], [1], [0, 0, 1, 1], [], []>} : vector<8x32xbf16>, vector<32x32xbf16>, vector<8x32xf32> -> vector<8x32xf32>
    %c0_3 = arith.constant 0 : index
    %c0_4 = arith.constant 0 : index
    %9 = vector.load %arg7[%c0_3, %c0_4] : memref<1x32xf32, #tpu.memory_space<vmem>>, vector<1x32xf32>
    %10 = vector.broadcast %9 : vector<1x32xf32> to vector<8x32xf32>
    %11 = arith.addf %8, %10 : vector<8x32xf32>
    %cst_5 = arith.constant 0.353553385 : f32
    %12 = vector.broadcast %cst_5 : f32 to vector<8x32xf32>
    %13 = arith.mulf %11, %12 : vector<8x32xf32>
    %14 = vector.extract_strided_slice %13 {offsets = [0, 0], sizes = [8, 8], strides = [1, 1]} : vector<8x32xf32> to vector<8x8xf32>
    %15 = arith.truncf %14 : vector<8x8xf32> to vector<8x8xbf16>
    %c0_6 = arith.constant 0 : index
    %c0_7 = arith.constant 0 : index
    %c0_8 = arith.constant 0 : index
    %16 = vector.load %arg24[%c0_6, %c0_7, %c0_8] : memref<4x8x8xbf16, #tpu.memory_space<vmem>>, vector<1x8x8xbf16>
    %17 = vector.shape_cast %16 : vector<1x8x8xbf16> to vector<8x8xbf16>
    %18 = vector.shape_cast %15 : vector<8x8xbf16> to vector<1x8x8xbf16>
    tpu.vector_store %arg24[%c0_6, %c0_7, %c0_8], %18 {strides = array<i32>} : memref<4x8x8xbf16, #tpu.memory_space<vmem>>, vector<1x8x8xbf16>,
    %19 = vector.extract_strided_slice %13 {offsets = [0, 8], sizes = [8, 8], strides = [1, 1]} : vector<8x32xf32> to vector<8x8xf32>
    %20 = arith.truncf %19 : vector<8x8xf32> to vector<8x8xbf16>
    %c1 = arith.constant 1 : index
    %c0_9 = arith.constant 0 : index
    %c0_10 = arith.constant 0 : index
    %21 = vector.load %arg24[%c1, %c0_9, %c0_10] : memref<4x8x8xbf16, #tpu.memory_space<vmem>>, vector<1x8x8xbf16>
    %22 = vector.shape_cast %21 : vector<1x8x8xbf16> to vector<8x8xbf16>
    %23 = vector.shape_cast %20 : vector<8x8xbf16> to vector<1x8x8xbf16>
    tpu.vector_store %arg24[%c1, %c0_9, %c0_10], %23 {strides = array<i32>} : memref<4x8x8xbf16, #tpu.memory_space<vmem>>, vector<1x8x8xbf16>,
    %24 = vector.extract_strided_slice %13 {offsets = [0, 16], sizes = [8, 8], strides = [1, 1]} : vector<8x32xf32> to vector<8x8xf32>
    %25 = arith.truncf %24 : vector<8x8xf32> to vector<8x8xbf16>
    %c2 = arith.constant 2 : index
    %c0_11 = arith.constant 0 : index
    %c0_12 = arith.constant 0 : index
    %26 = vector.load %arg24[%c2, %c0_11, %c0_12] : memref<4x8x8xbf16, #tpu.memory_space<vmem>>, vector<1x8x8xbf16>
    %27 = vector.shape_cast %26 : vector<1x8x8xbf16> to vector<8x8xbf16>
    %28 = vector.shape_cast %25 : vector<8x8xbf16> to vector<1x8x8xbf16>
    tpu.vector_store %arg24[%c2, %c0_11, %c0_12], %28 {strides = array<i32>} : memref<4x8x8xbf16, #tpu.memory_space<vmem>>, vector<1x8x8xbf16>,
    %29 = vector.extract_strided_slice %13 {offsets = [0, 24], sizes = [8, 8], strides = [1, 1]} : vector<8x32xf32> to vector<8x8xf32>
    %30 = arith.truncf %29 : vector<8x8xf32> to vector<8x8xbf16>
    %c3 = arith.constant 3 : index
    %c0_13 = arith.constant 0 : index
    %c0_14 = arith.constant 0 : index
    %31 = vector.load %arg24[%c3, %c0_13, %c0_14] : memref<4x8x8xbf16, #tpu.memory_space<vmem>>, vector<1x8x8xbf16>
    %32 = vector.shape_cast %31 : vector<1x8x8xbf16> to vector<8x8xbf16>
    %33 = vector.shape_cast %30 : vector<8x8xbf16> to vector<1x8x8xbf16>
    tpu.vector_store %arg24[%c3, %c0_13, %c0_14], %33 {strides = array<i32>} : memref<4x8x8xbf16, #tpu.memory_space<vmem>>, vector<1x8x8xbf16>,
    %c0_15 = arith.constant 0 : index
    %c0_16 = arith.constant 0 : index
    %c0_17 = arith.constant 0 : index
    %34 = vector.load %arg24[%c0_15, %c0_16, %c0_17] : memref<4x8x8xbf16, #tpu.memory_space<vmem>>, vector<4x8x8xbf16>
    %c0_18 = arith.constant 0 : index
    %c0_19 = arith.constant 0 : index
    %c0_20 = arith.constant 0 : index
    %35 = vector.load %arg22[%c0_18, %c0_19, %c0_20] : memref<4x8x8xbf16, #tpu.memory_space<vmem>>, vector<4x8x8xbf16>
    "tpu.trace_start"() <{level = 10 : i32, message = "hqd,hsd->hqs"}> : () -> ()
    %cst_21 = arith.constant dense<0.000000e+00> : vector<4x8x8xf32>
    %36 = tpu.matmul %34, %35, %cst_21 {dimension_numbers = #tpu.dot_dimension_numbers<[2], [2], [1], [1], [0, 0, 0, 1, 1, 1], [0], [0]>} : vector<4x8x8xbf16>, vector<4x8x8xbf16>, vector<4x8x8xf32> -> vector<4x8x8xf32>
    "tpu.trace_stop"() : () -> ()
    %c0_22 = arith.constant 0 : index
    %c0_23 = arith.constant 0 : index
    %c0_24 = arith.constant 0 : index
    %37 = vector.load %arg3[%c0_22, %c0_23, %c0_24] : memref<1x8x8xi8, #tpu.memory_space<vmem>>, vector<1x8x8xi8>
    %38 = vector.shape_cast %37 : vector<1x8x8xi8> to vector<8x8xi8>
    %39 = arith.sitofp %38 : vector<8x8xi8> to vector<8x8xf32>
    %40 = vector.shape_cast %39 : vector<8x8xf32> to vector<1x8x8xf32>
    %cst_25 = arith.constant -1.000000e+30 : f32
    %41 = vector.broadcast %cst_25 : f32 to vector<1x8x8xf32>
    %42 = arith.mulf %40, %41 : vector<1x8x8xf32>
    %43 = vector.broadcast %42 : vector<1x8x8xf32> to vector<4x8x8xf32>
    %44 = arith.addf %36, %43 : vector<4x8x8xf32>
    %cst_26 = arith.constant dense<0xFF800000> : vector<4x8xf32>
    %45 = vector.multi_reduction <maximumf>, %44, %cst_26 [2] : vector<4x8x8xf32> to vector<4x8xf32>
    %46 = vector.shape_cast %45 : vector<4x8xf32> to vector<4x8x1xf32>
    %47 = vector.broadcast %46 : vector<4x8x1xf32> to vector<4x8x8xf32>
    %48 = arith.subf %44, %47 : vector<4x8x8xf32>
    %49 = math.exp %48 : vector<4x8x8xf32>
    %cst_27 = arith.constant dense<0.000000e+00> : vector<4x8xf32>
    %50 = vector.multi_reduction <add>, %49, %cst_27 [2] : vector<4x8x8xf32> to vector<4x8xf32>
    %51 = vector.shape_cast %50 : vector<4x8xf32> to vector<4x8x1xf32>
    %52 = tpu.reciprocal %51 {approx = true} : vector<4x8x1xf32> -> vector<4x8x1xf32>
    %53 = vector.broadcast %52 : vector<4x8x1xf32> to vector<4x8x8xf32>
    %54 = arith.mulf %49, %53 : vector<4x8x8xf32>
    %55 = arith.truncf %54 : vector<4x8x8xf32> to vector<4x8x8xbf16>
    %c0_28 = arith.constant 0 : index
    %c0_29 = arith.constant 0 : index
    %c0_30 = arith.constant 0 : index
    %56 = vector.load %arg23[%c0_28, %c0_29, %c0_30] : memref<4x8x8xbf16, #tpu.memory_space<vmem>>, vector<4x8x8xbf16>
    "tpu.trace_start"() <{level = 10 : i32, message = "hqk,hkd->hqd"}> : () -> ()
    %cst_31 = arith.constant dense<0.000000e+00> : vector<4x8x8xf32>
    %57 = tpu.matmul %55, %56, %cst_31 {dimension_numbers = #tpu.dot_dimension_numbers<[2], [1], [1], [2], [0, 0, 0, 1, 1, 2], [0], [0]>} : vector<4x8x8xbf16>, vector<4x8x8xbf16>, vector<4x8x8xf32> -> vector<4x8x8xf32>
    "tpu.trace_stop"() : () -> ()
    %58 = vector.extract_strided_slice %57 {offsets = [0, 0, 0], sizes = [1, 8, 8], strides = [1, 1, 1]} : vector<4x8x8xf32> to vector<1x8x8xf32>
    %59 = vector.shape_cast %58 : vector<1x8x8xf32> to vector<8x8xf32>
    %60 = arith.truncf %59 : vector<8x8xf32> to vector<8x8xbf16>
    %c0_32 = arith.constant 0 : index
    %c0_33 = arith.constant 0 : index
    %61 = vector.load %arg25[%c0_32, %c0_33] : memref<8x32xbf16, #tpu.memory_space<vmem>>, vector<8x8xbf16>
    tpu.vector_store %arg25[%c0_32, %c0_33], %60 {strides = array<i32>} : memref<8x32xbf16, #tpu.memory_space<vmem>>, vector<8x8xbf16>,
    %62 = vector.extract_strided_slice %57 {offsets = [1, 0, 0], sizes = [1, 8, 8], strides = [1, 1, 1]} : vector<4x8x8xf32> to vector<1x8x8xf32>
    %63 = vector.shape_cast %62 : vector<1x8x8xf32> to vector<8x8xf32>
    %64 = arith.truncf %63 : vector<8x8xf32> to vector<8x8xbf16>
    %c0_34 = arith.constant 0 : index
    %c8 = arith.constant 8 : index
    %65 = vector.load %arg25[%c0_34, %c8] : memref<8x32xbf16, #tpu.memory_space<vmem>>, vector<8x8xbf16>
    tpu.vector_store %arg25[%c0_34, %c8], %64 {strides = array<i32>} : memref<8x32xbf16, #tpu.memory_space<vmem>>, vector<8x8xbf16>,
    %66 = vector.extract_strided_slice %57 {offsets = [2, 0, 0], sizes = [1, 8, 8], strides = [1, 1, 1]} : vector<4x8x8xf32> to vector<1x8x8xf32>
    %67 = vector.shape_cast %66 : vector<1x8x8xf32> to vector<8x8xf32>
    %68 = arith.truncf %67 : vector<8x8xf32> to vector<8x8xbf16>
    %c0_35 = arith.constant 0 : index
    %c16 = arith.constant 16 : index
    %69 = vector.load %arg25[%c0_35, %c16] : memref<8x32xbf16, #tpu.memory_space<vmem>>, vector<8x8xbf16>
    tpu.vector_store %arg25[%c0_35, %c16], %68 {strides = array<i32>} : memref<8x32xbf16, #tpu.memory_space<vmem>>, vector<8x8xbf16>,
    %70 = vector.extract_strided_slice %57 {offsets = [3, 0, 0], sizes = [1, 8, 8], strides = [1, 1, 1]} : vector<4x8x8xf32> to vector<1x8x8xf32>
    %71 = vector.shape_cast %70 : vector<1x8x8xf32> to vector<8x8xf32>
    %72 = arith.truncf %71 : vector<8x8xf32> to vector<8x8xbf16>
    %c0_36 = arith.constant 0 : index
    %c24 = arith.constant 24 : index
    %73 = vector.load %arg25[%c0_36, %c24] : memref<8x32xbf16, #tpu.memory_space<vmem>>, vector<8x8xbf16>
    tpu.vector_store %arg25[%c0_36, %c24], %72 {strides = array<i32>} : memref<8x32xbf16, #tpu.memory_space<vmem>>, vector<8x8xbf16>,
    %c0_37 = arith.constant 0 : index
    %c0_38 = arith.constant 0 : index
    %74 = vector.load %arg25[%c0_37, %c0_38] : memref<8x32xbf16, #tpu.memory_space<vmem>>, vector<8x32xbf16>
    %c0_39 = arith.constant 0 : index
    %c0_40 = arith.constant 0 : index
    %75 = vector.load %arg12[%c0_39, %c0_40] : memref<32x32xbf16, #tpu.memory_space<vmem>>, vector<32x32xbf16>
    %cst_41 = arith.constant dense<0.000000e+00> : vector<8x32xf32>
    %76 = tpu.matmul %74, %75, %cst_41 {dimension_numbers = #tpu.dot_dimension_numbers<[1], [0], [0], [1], [0, 0, 1, 1], [], []>} : vector<8x32xbf16>, vector<32x32xbf16>, vector<8x32xf32> -> vector<8x32xf32>
    %c0_42 = arith.constant 0 : index
    %c0_43 = arith.constant 0 : index
    %77 = vector.load %arg13[%c0_42, %c0_43] : memref<1x32xf32, #tpu.memory_space<vmem>>, vector<1x32xf32>
    %78 = vector.broadcast %77 : vector<1x32xf32> to vector<8x32xf32>
    %79 = arith.addf %76, %78 : vector<8x32xf32>
    %c0_44 = arith.constant 0 : index
    %80 = arith.index_cast %4 : i32 to index
    %c0_45 = arith.constant 0 : index
    %81 = vector.load %arg2[%c0_44, %80, %c0_45] : memref<1x8x32xf32, #tpu.memory_space<vmem>>, vector<1x8x32xf32>
    %82 = vector.shape_cast %81 : vector<1x8x32xf32> to vector<8x32xf32>
    %83 = arith.addf %82, %79 : vector<8x32xf32>
    %c0_46 = arith.constant 0 : index
    %c0_47 = arith.constant 0 : index
    %84 = vector.load %arg14[%c0_46, %c0_47] : memref<1x32xf32, #tpu.memory_space<vmem>>, vector<1x32xf32>
    %c0_48 = arith.constant 0 : index
    %c0_49 = arith.constant 0 : index
    %85 = vector.load %arg15[%c0_48, %c0_49] : memref<1x32xf32, #tpu.memory_space<vmem>>, vector<1x32xf32>
    %cst_50 = arith.constant dense<0.000000e+00> : vector<8xf32>
    %86 = vector.multi_reduction <add>, %83, %cst_50 [1] : vector<8x32xf32> to vector<8xf32>
    %87 = vector.shape_cast %86 : vector<8xf32> to vector<8x1xf32>
    %cst_51 = arith.constant 3.200000e+01 : f32
    %88 = vector.broadcast %cst_51 : f32 to vector<8x1xf32>
    %89 = arith.divf %87, %88 : vector<8x1xf32>
    %90 = vector.broadcast %89 : vector<8x1xf32> to vector<8x32xf32>
    %91 = arith.subf %83, %90 : vector<8x32xf32>
    %92 = arith.mulf %91, %91 : vector<8x32xf32>
    %cst_52 = arith.constant dense<0.000000e+00> : vector<8xf32>
    %93 = vector.multi_reduction <add>, %92, %cst_52 [1] : vector<8x32xf32> to vector<8xf32>
    %94 = vector.shape_cast %93 : vector<8xf32> to vector<8x1xf32>
    %cst_53 = arith.constant 3.200000e+01 : f32
    %95 = vector.broadcast %cst_53 : f32 to vector<8x1xf32>
    %96 = arith.divf %94, %95 : vector<8x1xf32>
    %97 = vector.broadcast %89 : vector<8x1xf32> to vector<8x32xf32>
    %98 = arith.subf %83, %97 : vector<8x32xf32>
    %cst_54 = arith.constant 9.99999974E-6 : f32
    %99 = vector.broadcast %cst_54 : f32 to vector<8x1xf32>
    %100 = arith.addf %96, %99 : vector<8x1xf32>
    %101 = math.rsqrt %100 : vector<8x1xf32>
    %102 = vector.broadcast %101 : vector<8x1xf32> to vector<8x32xf32>
    %103 = arith.mulf %98, %102 : vector<8x32xf32>
    %104 = vector.broadcast %84 : vector<1x32xf32> to vector<8x32xf32>
    %105 = arith.mulf %103, %104 : vector<8x32xf32>
    %106 = vector.broadcast %85 : vector<1x32xf32> to vector<8x32xf32>
    %107 = arith.addf %105, %106 : vector<8x32xf32>
    %108 = arith.truncf %107 : vector<8x32xf32> to vector<8x32xbf16>
    %c0_55 = arith.constant 0 : index
    %c0_56 = arith.constant 0 : index
    %109 = vector.load %arg16[%c0_55, %c0_56] : memref<32x64xbf16, #tpu.memory_space<vmem>>, vector<32x64xbf16>
    %cst_57 = arith.constant dense<0.000000e+00> : vector<8x64xf32>
    %110 = tpu.matmul %108, %109, %cst_57 {dimension_numbers = #tpu.dot_dimension_numbers<[1], [0], [0], [1], [0, 0, 1, 1], [], []>} : vector<8x32xbf16>, vector<32x64xbf16>, vector<8x64xf32> -> vector<8x64xf32>
    %c0_58 = arith.constant 0 : index
    %c0_59 = arith.constant 0 : index
    %111 = vector.load %arg17[%c0_58, %c0_59] : memref<1x64xf32, #tpu.memory_space<vmem>>, vector<1x64xf32>
    %112 = vector.broadcast %111 : vector<1x64xf32> to vector<8x64xf32>
    %113 = arith.addf %110, %112 : vector<8x64xf32>
    %cst_60 = arith.constant 0.000000e+00 : f32
    %114 = vector.broadcast %cst_60 : f32 to vector<8x64xf32>
    %115 = arith.maximumf %113, %114 : vector<8x64xf32>
    %116 = arith.truncf %115 : vector<8x64xf32> to vector<8x64xbf16>
    %c0_61 = arith.constant 0 : index
    %c0_62 = arith.constant 0 : index
    %117 = vector.load %arg18[%c0_61, %c0_62] : memref<64x32xbf16, #tpu.memory_space<vmem>>, vector<64x32xbf16>
    %cst_63 = arith.constant dense<0.000000e+00> : vector<8x32xf32>
    %118 = tpu.matmul %116, %117, %cst_63 {dimension_numbers = #tpu.dot_dimension_numbers<[1], [0], [0], [1], [0, 0, 1, 1], [], []>} : vector<8x64xbf16>, vector<64x32xbf16>, vector<8x32xf32> -> vector<8x32xf32>
    %c0_64 = arith.constant 0 : index
    %c0_65 = arith.constant 0 : index
    %119 = vector.load %arg19[%c0_64, %c0_65] : memref<1x32xf32, #tpu.memory_space<vmem>>, vector<1x32xf32>
    %120 = vector.broadcast %119 : vector<1x32xf32> to vector<8x32xf32>
    %121 = arith.addf %118, %120 : vector<8x32xf32>
    %122 = arith.addf %83, %121 : vector<8x32xf32>
    %c0_66 = arith.constant 0 : index
    %c0_67 = arith.constant 0 : index
    %c0_68 = arith.constant 0 : index
    %123 = vector.load %arg20[%c0_66, %c0_67, %c0_68] : memref<1x8x32xf32, #tpu.memory_space<vmem>>, vector<1x8x32xf32>
    %124 = vector.shape_cast %123 : vector<1x8x32xf32> to vector<8x32xf32>
    %125 = vector.shape_cast %122 : vector<8x32xf32> to vector<1x8x32xf32>
    tpu.vector_store %arg20[%c0_66, %c0_67, %c0_68], %125 {strides = array<i32>} : memref<1x8x32xf32, #tpu.memory_space<vmem>>, vector<1x8x32xf32>,
    return
  }
  func.func @transform_0(%arg0: i32, %arg1: i32) -> (i32, i32, i32) {
    %c0_i32 = arith.constant 0 : i32
    %c0_i32_0 = arith.constant 0 : i32
    %c0_i32_1 = arith.constant 0 : i32
    return %arg0, %c0_i32, %c0_i32_0 : i32, i32, i32
  }
  func.func @transform_1(%arg0: i32, %arg1: i32) -> (i32, i32, i32) {
    %c0_i32 = arith.constant 0 : i32
    %c0_i32_0 = arith.constant 0 : i32
    return %arg0, %arg1, %c0_i32 : i32, i32, i32
  }
  func.func @transform_2(%arg0: i32, %arg1: i32) -> (i32, i32) {
    %c0_i32 = arith.constant 0 : i32
    %c0_i32_0 = arith.constant 0 : i32
    %c0_i32_1 = arith.constant 0 : i32
    return %c0_i32, %c0_i32_0 : i32, i32
  }
  func.func @transform_3(%arg0: i32, %arg1: i32) -> (i32, i32) {
    %c0_i32 = arith.constant 0 : i32
    %c0_i32_0 = arith.constant 0 : i32
    %c0_i32_1 = arith.constant 0 : i32
    return %c0_i32, %c0_i32_0 : i32, i32
  }
  func.func @transform_4(%arg0: i32, %arg1: i32) -> (i32, i32) {
    %c0_i32 = arith.constant 0 : i32
    %c0_i32_0 = arith.constant 0 : i32
    %c0_i32_1 = arith.constant 0 : i32
    return %c0_i32, %c0_i32_0 : i32, i32
  }
  func.func @transform_5(%arg0: i32, %arg1: i32) -> (i32, i32) {
    %c0_i32 = arith.constant 0 : i32
    %c0_i32_0 = arith.constant 0 : i32
    %c0_i32_1 = arith.constant 0 : i32
    return %c0_i32, %c0_i32_0 : i32, i32
  }
  func.func @transform_6(%arg0: i32, %arg1: i32) -> (i32, i32) {
    %c0_i32 = arith.constant 0 : i32
    %c0_i32_0 = arith.constant 0 : i32
    %c0_i32_1 = arith.constant 0 : i32
    return %c0_i32, %c0_i32_0 : i32, i32
  }
  func.func @transform_7(%arg0: i32, %arg1: i32) -> (i32, i32) {
    %c0_i32 = arith.constant 0 : i32
    %c0_i32_0 = arith.constant 0 : i32
    %c0_i32_1 = arith.constant 0 : i32
    return %c0_i32, %c0_i32_0 : i32, i32
  }
  func.func @transform_8(%arg0: i32, %arg1: i32) -> (i32, i32) {
    %c0_i32 = arith.constant 0 : i32
    %c0_i32_0 = arith.constant 0 : i32
    %c0_i32_1 = arith.constant 0 : i32
    return %c0_i32, %c0_i32_0 : i32, i32
  }
  func.func @transform_9(%arg0: i32, %arg1: i32) -> (i32, i32) {
    %c0_i32 = arith.constant 0 : i32
    %c0_i32_0 = arith.constant 0 : i32
    %c0_i32_1 = arith.constant 0 : i32
    return %c0_i32, %c0_i32_0 : i32, i32
  }
  func.func @transform_10(%arg0: i32, %arg1: i32) -> (i32, i32) {
    %c0_i32 = arith.constant 0 : i32
    %c0_i32_0 = arith.constant 0 : i32
    %c0_i32_1 = arith.constant 0 : i32
    return %c0_i32, %c0_i32_0 : i32, i32
  }
  func.func @transform_11(%arg0: i32, %arg1: i32) -> (i32, i32) {
    %c0_i32 = arith.constant 0 : i32
    %c0_i32_0 = arith.constant 0 : i32
    %c0_i32_1 = arith.constant 0 : i32
    return %c0_i32, %c0_i32_0 : i32, i32
  }
  func.func @transform_12(%arg0: i32, %arg1: i32) -> (i32, i32) {
    %c0_i32 = arith.constant 0 : i32
    %c0_i32_0 = arith.constant 0 : i32
    %c0_i32_1 = arith.constant 0 : i32
    return %c0_i32, %c0_i32_0 : i32, i32
  }
  func.func @transform_13(%arg0: i32, %arg1: i32) -> (i32, i32) {
    %c0_i32 = arith.constant 0 : i32
    %c0_i32_0 = arith.constant 0 : i32
    %c0_i32_1 = arith.constant 0 : i32
    return %c0_i32, %c0_i32_0 : i32, i32
  }
  func.func @transform_14(%arg0: i32, %arg1: i32) -> (i32, i32) {
    %c0_i32 = arith.constant 0 : i32
    %c0_i32_0 = arith.constant 0 : i32
    %c0_i32_1 = arith.constant 0 : i32
    return %c0_i32, %c0_i32_0 : i32, i32
  }
  func.func @transform_15(%arg0: i32, %arg1: i32) -> (i32, i32) {
    %c0_i32 = arith.constant 0 : i32
    %c0_i32_0 = arith.constant 0 : i32
    %c0_i32_1 = arith.constant 0 : i32
    return %c0_i32, %c0_i32_0 : i32, i32
  }
  func.func @transform_16(%arg0: i32, %arg1: i32) -> (i32, i32) {
    %c0_i32 = arith.constant 0 : i32
    %c0_i32_0 = arith.constant 0 : i32
    %c0_i32_1 = arith.constant 0 : i32
    return %c0_i32, %c0_i32_0 : i32, i32
  }
  func.func @transform_17(%arg0: i32, %arg1: i32) -> (i32, i32) {
    %c0_i32 = arith.constant 0 : i32
    %c0_i32_0 = arith.constant 0 : i32
    %c0_i32_1 = arith.constant 0 : i32
    return %c0_i32, %c0_i32_0 : i32, i32
  }
  func.func @transform_18(%arg0: i32, %arg1: i32) -> (i32, i32, i32) {
    %c0_i32 = arith.constant 0 : i32
    %c0_i32_0 = arith.constant 0 : i32
    return %arg0, %arg1, %c0_i32 : i32, i32, i32
  }
}

</mosaic_0001>

<llo_original>
// kernel: tpu_custom_call.1
$region0: #{tpu_custom_call.1}
  #allocation0 [shape = 'u32[]', space=smem, size = 0x4, offset = 0x4, fixed_abs, tag = 'smem constant byte address 0x4 - core index']
  #allocation1 [shape = 'u32[144,128]{1,0:T(1,128)}', space=vmem, size = 0x12000, scoped, tag = 'internal scratch']
  #allocation2 [shape = 'bf16[8,32]{1,0:T(8,128)(2,1)}', space=vmem, size = 0x800, scoped, tag = 'scratch operand']
  #allocation3 [shape = 'bf16[4,8,8]{2,1,0:T(8,128)(2,1)}', space=vmem, size = 0x2000, scoped, tag = 'scratch operand']
  #allocation4 [shape = 'bf16[4,8,8]{2,1,0:T(8,128)(2,1)}', space=vmem, size = 0x2000, scoped, tag = 'scratch operand']
  #allocation5 [shape = 'bf16[4,8,8]{2,1,0:T(8,128)(2,1)}', space=vmem, size = 0x2000, scoped, tag = 'scratch operand']
  #allocation6 [shape = 'bf16[8,32]{1,0:T(8,128)(2,1)}', space=vmem, size = 0x800, scoped, tag = 'scratch operand']
  %s0 = inlined_call_operand.vmem [shape: f32[2,8,32], index: 0, kind: input, shape index: {}]
  %s1 = inlined_call_operand.hbm [shape: s8[2,8,8], index: 1, kind: input, shape index: {}]
  %s2 = inlined_call_operand.hbm [shape: f32[1,32], index: 2, kind: input, shape index: {}]
  %s3 = inlined_call_operand.hbm [shape: f32[1,32], index: 3, kind: input, shape index: {}]
  %s4 = inlined_call_operand.vmem [shape: bf16[32,32], index: 4, kind: input, shape index: {}]
  %s5 = inlined_call_operand.hbm [shape: f32[1,32], index: 5, kind: input, shape index: {}]
  %s6 = inlined_call_operand.vmem [shape: bf16[32,32], index: 6, kind: input, shape index: {}]
  %s7 = inlined_call_operand.hbm [shape: f32[1,32], index: 7, kind: input, shape index: {}]
  %s8 = inlined_call_operand.hbm [shape: bf16[32,32], index: 8, kind: input, shape index: {}]
  %s9 = inlined_call_operand.hbm [shape: f32[1,32], index: 9, kind: input, shape index: {}]
  %s10 = inlined_call_operand.vmem [shape: bf16[32,32], index: 10, kind: input, shape index: {}]
  %s11 = inlined_call_operand.vmem [shape: f32[1,32], index: 11, kind: input, shape index: {}]
  %s12 = inlined_call_operand.vmem [shape: f32[1,32], index: 12, kind: input, shape index: {}]
  %s13 = inlined_call_operand.vmem [shape: f32[1,32], index: 13, kind: input, shape index: {}]
  %s14 = inlined_call_operand.hbm [shape: bf16[32,64], index: 14, kind: input, shape index: {}]
  %s15 = inlined_call_operand.vmem [shape: f32[1,64], index: 15, kind: input, shape index: {}]
  %s16 = inlined_call_operand.vmem [shape: bf16[64,32], index: 16, kind: input, shape index: {}]
  %s17 = inlined_call_operand.vmem [shape: f32[1,32], index: 17, kind: input, shape index: {}]
  %s18 = inlined_call_operand.hbm [shape: f32[2,8,32], index: 18, kind: output, shape index: {}]
  %s19 = sld [smem:[#allocation0]]
  $region141: #{tpu_custom_call.1} parent=0
    _
  %s21 = ssub.s32 1, %s19
  %s22 = scalar_select 0, %s21, %s19
  $region1: #{tpu_custom_call.1} parent=0
    #allocation7 [shape = 'u8[2048]{0}', space=vmem, size = 0x800, scoped, tag = 'input window, operand 1']
    #allocation8 [shape = 's32[2]{0}', space=sflag, size = 0x8, scoped, tag = 'scoped memory for tpu_custom_call.1']
    #allocation9 [shape = 's32[2]{0}', space=sflag, size = 0x8, scoped, tag = 'scoped memory for tpu_custom_call.1']
    #allocation10 [shape = 'u8[512]{0}', space=vmem, size = 0x400, scoped, tag = 'input window, operand 2, single buffered']
    #allocation11 [shape = 's32[1]{0}', space=sflag, size = 0x4, scoped, tag = 'scoped memory for tpu_custom_call.1']
    #allocation12 [shape = 'u8[512]{0}', space=vmem, size = 0x400, scoped, tag = 'input window, operand 3, single buffered']
    #allocation13 [shape = 'u8[512]{0}', space=vmem, size = 0x400, scoped, tag = 'input window, operand 5, single buffered']
    #allocation14 [shape = 's32[1]{0}', space=sflag, size = 0x4, scoped, tag = 'scoped memory for tpu_custom_call.1']
    #allocation15 [shape = 'u8[512]{0}', space=vmem, size = 0x400, scoped, tag = 'input window, operand 7, single buffered']
    #allocation16 [shape = 'u8[8192]{0}', space=vmem, size = 0x2000, scoped, tag = 'input window, operand 8, single buffered']
    #allocation17 [shape = 's32[1]{0}', space=sflag, size = 0x4, scoped, tag = 'scoped memory for tpu_custom_call.1']
    #allocation18 [shape = 'u8[512]{0}', space=vmem, size = 0x400, scoped, tag = 'input window, operand 9, single buffered']
    #allocation19 [shape = 'u8[8192]{0}', space=vmem, size = 0x2000, scoped, tag = 'input window, operand 14, single buffered']
    #allocation20 [shape = 's32[1]{0}', space=sflag, size = 0x4, scoped, tag = 'scoped memory for tpu_custom_call.1']
    #allocation21 [shape = 'u8[8192]{0}', space=vmem, size = 0x2000, scoped, tag = 'output window, operand 0']
    %23 = vsyncpa [#allocation8], 0
    %s24 = scalar_lea.sflag [#allocation8], 1
    %25 = vsyncpa %s24, 0
    %26 = vsyncpa [#allocation11], 0
    %27 = vsyncpa [#allocation14], 0
    %28 = vsyncpa [#allocation17], 0
    %29 = vsyncpa [#allocation20], 0
    %30 = vsyncpa [#allocation9], 0
    %s31 = scalar_lea.sflag [#allocation9], 1
    %32 = vsyncpa %s31, 0
    loop: start=0, step=1, limit=4
    $region2: #{tpu_custom_call.1} parent=1 // loop_pre_header
      _
    $region3: #{tpu_custom_call.1} parent=1 // loop_header
      %s34 = sphi 0, %s38
      %p35 = scmp.ge.s32.totalorder %s34, 4
      %s41 = sphi 0, %s53
      %s42 = sphi 0, %s49
      %s43 = sphi 0, %s41
      %s44 = sphi 0, %s42
      %s45 = sphi 0, %s43
      %s46 = sphi 0, %s44
      %s56 = sphi 0, %s58
      %s59 = sphi 0, %s56
      %s60 = sphi 0, %s59
      %s76 = sphi 0, %s60
      %s84 = sphi 0, %s86
      %s87 = sphi 0, %s84
      %s88 = sphi 0, %s87
      %s104 = sphi 0, %s88
      %s108 = sphi 0, %s108
      %s110 = sphi 0, %s108
      %s111 = sphi 0, %s110
      %s125 = sphi 0, %s111
      %s129 = sphi 0, %s129
      %s131 = sphi 0, %s129
      %s132 = sphi 0, %s131
      %s146 = sphi 0, %s132
      %s150 = sphi 0, %s150
      %s152 = sphi 0, %s150
      %s153 = sphi 0, %s152
      %s167 = sphi 0, %s153
      %s171 = sphi 0, %s171
      %s173 = sphi 0, %s171
      %s174 = sphi 0, %s173
      %s188 = sphi 0, %s174
      %s192 = sphi 0, %s192
      %s194 = sphi 0, %s192
      %s195 = sphi 0, %s194
      %s209 = sphi 0, %s195
      %s213 = sphi 0, %s213
      %s215 = sphi 0, %s213
      %s216 = sphi 0, %s215
      %s230 = sphi 0, %s216
      %s234 = sphi 0, %s234
      %s236 = sphi 0, %s234
      %s237 = sphi 0, %s236
      %s251 = sphi 0, %s237
      %s255 = sphi 0, %s255
      %s257 = sphi 0, %s255
      %s258 = sphi 0, %s257
      %s272 = sphi 0, %s258
      %s276 = sphi 0, %s276
      %s278 = sphi 0, %s276
      %s279 = sphi 0, %s278
      %s293 = sphi 0, %s279
      %s297 = sphi 0, %s297
      %s299 = sphi 0, %s297
      %s300 = sphi 0, %s299
      %s314 = sphi 0, %s300
      %s318 = sphi 0, %s318
      %s320 = sphi 0, %s318
      %s321 = sphi 0, %s320
      %s335 = sphi 0, %s321
      %s339 = sphi 0, %s339
      %s341 = sphi 0, %s339
      %s342 = sphi 0, %s341
      %s356 = sphi 0, %s342
      %s360 = sphi 0, %s360
      %s362 = sphi 0, %s360
      %s363 = sphi 0, %s362
      %s377 = sphi 0, %s363
      %s381 = sphi 0, %s381
      %s383 = sphi 0, %s381
      %s384 = sphi 0, %s383
      %s398 = sphi 0, %s384
      %s402 = sphi 0, %s402
      %s404 = sphi 0, %s402
      %s405 = sphi 0, %s404
      %s419 = sphi 0, %s405
      %s423 = sphi 0, %s423
      %s425 = sphi 0, %s423
      %s426 = sphi 0, %s425
      %s440 = sphi 0, %s426
      %s448 = sphi 0, %s450
      %s451 = sphi 0, %s448
      %s452 = sphi 0, %s451
      %s468 = sphi 0, %s452
    $region4: #{tpu_custom_call.1} parent=1 // loop_header_branch
      %37 = sbr.rel (%p35) target = $region8
    $region5: #{tpu_custom_call.1} parent=1 // loop_body
      %s39 = ssub.s32 %s34, 1
      %s40 = ssub.s32 %s34, 2
      %s47 = sadd.s32 1, %s42
      %p48 = scmp.ge.s32.totalorder %s47, 1
      %s49 = scalar_select %p48, 0, %s47
      %s50 = sadd.s32 1, %s41
      %s51 = scalar_select %p48, %s50, %s41
      %p52 = scmp.ge.s32.totalorder %s51, 2
      %s53 = scalar_select %p52, 0, %s51
      %s54 = ssub.s32 %s41, %s53
      %p55 = scmp.eq.s32.totalorder %s54, 0
      %s57 = sadd.s32 %s56, 1
      %s58 = scalar_select %p55, %s56, %s57
      %p61 = pneg %p55
      %p62 = scmp.eq.s32.totalorder %s34, 1
      %p63 = por %p61, %p62
      %p64 = scmp.ne.s32.totalorder %s56, %s59
      %p65 = scmp.eq.s32.totalorder %s34, 0
      %p66 = por %p64, %p65
      %p67 = scmp.ne.s32.totalorder %s56, %s59
      %p68 = scmp.eq.s32.totalorder %s39, 1
      %p69 = por %p67, %p68
      %p70 = scmp.ne.s32.totalorder %s59, %s60
      %p71 = scmp.eq.s32.totalorder %s39, 0
      %p72 = por %p70, %p71
      %p73 = scmp.ne.s32.totalorder %s59, %s60
      %p74 = scmp.eq.s32.totalorder %s40, 1
      %p75 = por %p73, %p74
      %p77 = scmp.ne.s32.totalorder %s60, %s76
      %p78 = scmp.eq.s32.totalorder %s40, 0
      %p79 = por %p77, %p78
      %s80 = ssub.s32 %s41, %s53
      %s81 = ssub.s32 %s42, %s49
      %s82 = sor.u32 %s80, %s81
      %p83 = scmp.eq.s32.totalorder %s82, 0
      %s85 = sadd.s32 %s84, 1
      %s86 = scalar_select %p83, %s84, %s85
      %p89 = pneg %p83
      %p90 = scmp.eq.s32.totalorder %s34, 1
      %p91 = por %p89, %p90
      %p92 = scmp.ne.s32.totalorder %s84, %s87
      %p93 = scmp.eq.s32.totalorder %s34, 0
      %p94 = por %p92, %p93
      %p95 = scmp.ne.s32.totalorder %s84, %s87
      %p96 = scmp.eq.s32.totalorder %s39, 1
      %p97 = por %p95, %p96
      %p98 = scmp.ne.s32.totalorder %s87, %s88
      %p99 = scmp.eq.s32.totalorder %s39, 0
      %p100 = por %p98, %p99
      %p101 = scmp.ne.s32.totalorder %s87, %s88
      %p102 = scmp.eq.s32.totalorder %s40, 1
      %p103 = por %p101, %p102
      %p105 = scmp.ne.s32.totalorder %s88, %s104
      %p106 = scmp.eq.s32.totalorder %s40, 0
      %p107 = por %p105, %p106
      %s109 = sadd.s32 %s108, 1
      %p112 = scmp.eq.s32.totalorder %s34, 1
      %p113 = scmp.ne.s32.totalorder %s108, %s110
      %p114 = scmp.eq.s32.totalorder %s34, 0
      %p115 = por %p113, %p114
      %p116 = scmp.ne.s32.totalorder %s108, %s110
      %p117 = scmp.eq.s32.totalorder %s39, 1
      %p118 = por %p116, %p117
      %p119 = scmp.ne.s32.totalorder %s110, %s111
      %p120 = scmp.eq.s32.totalorder %s39, 0
      %p121 = por %p119, %p120
      %p122 = scmp.ne.s32.totalorder %s110, %s111
      %p123 = scmp.eq.s32.totalorder %s40, 1
      %p124 = por %p122, %p123
      %p126 = scmp.ne.s32.totalorder %s111, %s125
      %p127 = scmp.eq.s32.totalorder %s40, 0
      %p128 = por %p126, %p127
      %s130 = sadd.s32 %s129, 1
      %p133 = scmp.eq.s32.totalorder %s34, 1
      %p134 = scmp.ne.s32.totalorder %s129, %s131
      %p135 = scmp.eq.s32.totalorder %s34, 0
      %p136 = por %p134, %p135
      %p137 = scmp.ne.s32.totalorder %s129, %s131
      %p138 = scmp.eq.s32.totalorder %s39, 1
      %p139 = por %p137, %p138
      %p140 = scmp.ne.s32.totalorder %s131, %s132
      %p141 = scmp.eq.s32.totalorder %s39, 0
      %p142 = por %p140, %p141
      %p143 = scmp.ne.s32.totalorder %s131, %s132
      %p144 = scmp.eq.s32.totalorder %s40, 1
      %p145 = por %p143, %p144
      %p147 = scmp.ne.s32.totalorder %s132, %s146
      %p148 = scmp.eq.s32.totalorder %s40, 0
      %p149 = por %p147, %p148
      %s151 = sadd.s32 %s150, 1
      %p154 = scmp.eq.s32.totalorder %s34, 1
      %p155 = scmp.ne.s32.totalorder %s150, %s152
      %p156 = scmp.eq.s32.totalorder %s34, 0
      %p157 = por %p155, %p156
      %p158 = scmp.ne.s32.totalorder %s150, %s152
      %p159 = scmp.eq.s32.totalorder %s39, 1
      %p160 = por %p158, %p159
      %p161 = scmp.ne.s32.totalorder %s152, %s153
      %p162 = scmp.eq.s32.totalorder %s39, 0
      %p163 = por %p161, %p162
      %p164 = scmp.ne.s32.totalorder %s152, %s153
      %p165 = scmp.eq.s32.totalorder %s40, 1
      %p166 = por %p164, %p165
      %p168 = scmp.ne.s32.totalorder %s153, %s167
      %p169 = scmp.eq.s32.totalorder %s40, 0
      %p170 = por %p168, %p169
      %s172 = sadd.s32 %s171, 1
      %p175 = scmp.eq.s32.totalorder %s34, 1
      %p176 = scmp.ne.s32.totalorder %s171, %s173
      %p177 = scmp.eq.s32.totalorder %s34, 0
      %p178 = por %p176, %p177
      %p179 = scmp.ne.s32.totalorder %s171, %s173
      %p180 = scmp.eq.s32.totalorder %s39, 1
      %p181 = por %p179, %p180
      %p182 = scmp.ne.s32.totalorder %s173, %s174
      %p183 = scmp.eq.s32.totalorder %s39, 0
      %p184 = por %p182, %p183
      %p185 = scmp.ne.s32.totalorder %s173, %s174
      %p186 = scmp.eq.s32.totalorder %s40, 1
      %p187 = por %p185, %p186
      %p189 = scmp.ne.s32.totalorder %s174, %s188
      %p190 = scmp.eq.s32.totalorder %s40, 0
      %p191 = por %p189, %p190
      %s193 = sadd.s32 %s192, 1
      %p196 = scmp.eq.s32.totalorder %s34, 1
      %p197 = scmp.ne.s32.totalorder %s192, %s194
      %p198 = scmp.eq.s32.totalorder %s34, 0
      %p199 = por %p197, %p198
      %p200 = scmp.ne.s32.totalorder %s192, %s194
      %p201 = scmp.eq.s32.totalorder %s39, 1
      %p202 = por %p200, %p201
      %p203 = scmp.ne.s32.totalorder %s194, %s195
      %p204 = scmp.eq.s32.totalorder %s39, 0
      %p205 = por %p203, %p204
      %p206 = scmp.ne.s32.totalorder %s194, %s195
      %p207 = scmp.eq.s32.totalorder %s40, 1
      %p208 = por %p206, %p207
      %p210 = scmp.ne.s32.totalorder %s195, %s209
      %p211 = scmp.eq.s32.totalorder %s40, 0
      %p212 = por %p210, %p211
      %s214 = sadd.s32 %s213, 1
      %p217 = scmp.eq.s32.totalorder %s34, 1
      %p218 = scmp.ne.s32.totalorder %s213, %s215
      %p219 = scmp.eq.s32.totalorder %s34, 0
      %p220 = por %p218, %p219
      %p221 = scmp.ne.s32.totalorder %s213, %s215
      %p222 = scmp.eq.s32.totalorder %s39, 1
      %p223 = por %p221, %p222
      %p224 = scmp.ne.s32.totalorder %s215, %s216
      %p225 = scmp.eq.s32.totalorder %s39, 0
      %p226 = por %p224, %p225
      %p227 = scmp.ne.s32.totalorder %s215, %s216
      %p228 = scmp.eq.s32.totalorder %s40, 1
      %p229 = por %p227, %p228
      %p231 = scmp.ne.s32.totalorder %s216, %s230
      %p232 = scmp.eq.s32.totalorder %s40, 0
      %p233 = por %p231, %p232
      %s235 = sadd.s32 %s234, 1
      %p238 = scmp.eq.s32.totalorder %s34, 1
      %p239 = scmp.ne.s32.totalorder %s234, %s236
      %p240 = scmp.eq.s32.totalorder %s34, 0
      %p241 = por %p239, %p240
      %p242 = scmp.ne.s32.totalorder %s234, %s236
      %p243 = scmp.eq.s32.totalorder %s39, 1
      %p244 = por %p242, %p243
      %p245 = scmp.ne.s32.totalorder %s236, %s237
      %p246 = scmp.eq.s32.totalorder %s39, 0
      %p247 = por %p245, %p246
      %p248 = scmp.ne.s32.totalorder %s236, %s237
      %p249 = scmp.eq.s32.totalorder %s40, 1
      %p250 = por %p248, %p249
      %p252 = scmp.ne.s32.totalorder %s237, %s251
      %p253 = scmp.eq.s32.totalorder %s40, 0
      %p254 = por %p252, %p253
      %s256 = sadd.s32 %s255, 1
      %p259 = scmp.eq.s32.totalorder %s34, 1
      %p260 = scmp.ne.s32.totalorder %s255, %s257
      %p261 = scmp.eq.s32.totalorder %s34, 0
      %p262 = por %p260, %p261
      %p263 = scmp.ne.s32.totalorder %s255, %s257
      %p264 = scmp.eq.s32.totalorder %s39, 1
      %p265 = por %p263, %p264
      %p266 = scmp.ne.s32.totalorder %s257, %s258
      %p267 = scmp.eq.s32.totalorder %s39, 0
      %p268 = por %p266, %p267
      %p269 = scmp.ne.s32.totalorder %s257, %s258
      %p270 = scmp.eq.s32.totalorder %s40, 1
      %p271 = por %p269, %p270
      %p273 = scmp.ne.s32.totalorder %s258, %s272
      %p274 = scmp.eq.s32.totalorder %s40, 0
      %p275 = por %p273, %p274
      %s277 = sadd.s32 %s276, 1
      %p280 = scmp.eq.s32.totalorder %s34, 1
      %p281 = scmp.ne.s32.totalorder %s276, %s278
      %p282 = scmp.eq.s32.totalorder %s34, 0
      %p283 = por %p281, %p282
      %p284 = scmp.ne.s32.totalorder %s276, %s278
      %p285 = scmp.eq.s32.totalorder %s39, 1
      %p286 = por %p284, %p285
      %p287 = scmp.ne.s32.totalorder %s278, %s279
      %p288 = scmp.eq.s32.totalorder %s39, 0
      %p289 = por %p287, %p288
      %p290 = scmp.ne.s32.totalorder %s278, %s279
      %p291 = scmp.eq.s32.totalorder %s40, 1
      %p292 = por %p290, %p291
      %p294 = scmp.ne.s32.totalorder %s279, %s293
      %p295 = scmp.eq.s32.totalorder %s40, 0
      %p296 = por %p294, %p295
      %s298 = sadd.s32 %s297, 1
      %p301 = scmp.eq.s32.totalorder %s34, 1
      %p302 = scmp.ne.s32.totalorder %s297, %s299
      %p303 = scmp.eq.s32.totalorder %s34, 0
      %p304 = por %p302, %p303
      %p305 = scmp.ne.s32.totalorder %s297, %s299
      %p306 = scmp.eq.s32.totalorder %s39, 1
      %p307 = por %p305, %p306
      %p308 = scmp.ne.s32.totalorder %s299, %s300
      %p309 = scmp.eq.s32.totalorder %s39, 0
      %p310 = por %p308, %p309
      %p311 = scmp.ne.s32.totalorder %s299, %s300
      %p312 = scmp.eq.s32.totalorder %s40, 1
      %p313 = por %p311, %p312
      %p315 = scmp.ne.s32.totalorder %s300, %s314
      %p316 = scmp.eq.s32.totalorder %s40, 0
      %p317 = por %p315, %p316
      %s319 = sadd.s32 %s318, 1
      %p322 = scmp.eq.s32.totalorder %s34, 1
      %p323 = scmp.ne.s32.totalorder %s318, %s320
      %p324 = scmp.eq.s32.totalorder %s34, 0
      %p325 = por %p323, %p324
      %p326 = scmp.ne.s32.totalorder %s318, %s320
      %p327 = scmp.eq.s32.totalorder %s39, 1
      %p328 = por %p326, %p327
      %p329 = scmp.ne.s32.totalorder %s320, %s321
      %p330 = scmp.eq.s32.totalorder %s39, 0
      %p331 = por %p329, %p330
      %p332 = scmp.ne.s32.totalorder %s320, %s321
      %p333 = scmp.eq.s32.totalorder %s40, 1
      %p334 = por %p332, %p333
      %p336 = scmp.ne.s32.totalorder %s321, %s335
      %p337 = scmp.eq.s32.totalorder %s40, 0
      %p338 = por %p336, %p337
      %s340 = sadd.s32 %s339, 1
      %p343 = scmp.eq.s32.totalorder %s34, 1
      %p344 = scmp.ne.s32.totalorder %s339, %s341
      %p345 = scmp.eq.s32.totalorder %s34, 0
      %p346 = por %p344, %p345
      %p347 = scmp.ne.s32.totalorder %s339, %s341
      %p348 = scmp.eq.s32.totalorder %s39, 1
      %p349 = por %p347, %p348
      %p350 = scmp.ne.s32.totalorder %s341, %s342
      %p351 = scmp.eq.s32.totalorder %s39, 0
      %p352 = por %p350, %p351
      %p353 = scmp.ne.s32.totalorder %s341, %s342
      %p354 = scmp.eq.s32.totalorder %s40, 1
      %p355 = por %p353, %p354
      %p357 = scmp.ne.s32.totalorder %s342, %s356
      %p358 = scmp.eq.s32.totalorder %s40, 0
      %p359 = por %p357, %p358
      %s361 = sadd.s32 %s360, 1
      %p364 = scmp.eq.s32.totalorder %s34, 1
      %p365 = scmp.ne.s32.totalorder %s360, %s362
      %p366 = scmp.eq.s32.totalorder %s34, 0
      %p367 = por %p365, %p366
      %p368 = scmp.ne.s32.totalorder %s360, %s362
      %p369 = scmp.eq.s32.totalorder %s39, 1
      %p370 = por %p368, %p369
      %p371 = scmp.ne.s32.totalorder %s362, %s363
      %p372 = scmp.eq.s32.totalorder %s39, 0
      %p373 = por %p371, %p372
      %p374 = scmp.ne.s32.totalorder %s362, %s363
      %p375 = scmp.eq.s32.totalorder %s40, 1
      %p376 = por %p374, %p375
      %p378 = scmp.ne.s32.totalorder %s363, %s377
      %p379 = scmp.eq.s32.totalorder %s40, 0
      %p380 = por %p378, %p379
      %s382 = sadd.s32 %s381, 1
      %p385 = scmp.eq.s32.totalorder %s34, 1
      %p386 = scmp.ne.s32.totalorder %s381, %s383
      %p387 = scmp.eq.s32.totalorder %s34, 0
      %p388 = por %p386, %p387
      %p389 = scmp.ne.s32.totalorder %s381, %s383
      %p390 = scmp.eq.s32.totalorder %s39, 1
      %p391 = por %p389, %p390
      %p392 = scmp.ne.s32.totalorder %s383, %s384
      %p393 = scmp.eq.s32.totalorder %s39, 0
      %p394 = por %p392, %p393
      %p395 = scmp.ne.s32.totalorder %s383, %s384
      %p396 = scmp.eq.s32.totalorder %s40, 1
      %p397 = por %p395, %p396
      %p399 = scmp.ne.s32.totalorder %s384, %s398
      %p400 = scmp.eq.s32.totalorder %s40, 0
      %p401 = por %p399, %p400
      %s403 = sadd.s32 %s402, 1
      %p406 = scmp.eq.s32.totalorder %s34, 1
      %p407 = scmp.ne.s32.totalorder %s402, %s404
      %p408 = scmp.eq.s32.totalorder %s34, 0
      %p409 = por %p407, %p408
      %p410 = scmp.ne.s32.totalorder %s402, %s404
      %p411 = scmp.eq.s32.totalorder %s39, 1
      %p412 = por %p410, %p411
      %p413 = scmp.ne.s32.totalorder %s404, %s405
      %p414 = scmp.eq.s32.totalorder %s39, 0
      %p415 = por %p413, %p414
      %p416 = scmp.ne.s32.totalorder %s404, %s405
      %p417 = scmp.eq.s32.totalorder %s40, 1
      %p418 = por %p416, %p417
      %p420 = scmp.ne.s32.totalorder %s405, %s419
      %p421 = scmp.eq.s32.totalorder %s40, 0
      %p422 = por %p420, %p421
      %s424 = sadd.s32 %s423, 1
      %p427 = scmp.eq.s32.totalorder %s34, 1
      %p428 = scmp.ne.s32.totalorder %s423, %s425
      %p429 = scmp.eq.s32.totalorder %s34, 0
      %p430 = por %p428, %p429
      %p431 = scmp.ne.s32.totalorder %s423, %s425
      %p432 = scmp.eq.s32.totalorder %s39, 1
      %p433 = por %p431, %p432
      %p434 = scmp.ne.s32.totalorder %s425, %s426
      %p435 = scmp.eq.s32.totalorder %s39, 0
      %p436 = por %p434, %p435
      %p437 = scmp.ne.s32.totalorder %s425, %s426
      %p438 = scmp.eq.s32.totalorder %s40, 1
      %p439 = por %p437, %p438
      %p441 = scmp.ne.s32.totalorder %s426, %s440
      %p442 = scmp.eq.s32.totalorder %s40, 0
      %p443 = por %p441, %p442
      %s444 = ssub.s32 %s41, %s53
      %s445 = ssub.s32 %s42, %s49
      %s446 = sor.u32 %s444, %s445
      %p447 = scmp.eq.s32.totalorder %s446, 0
      %s449 = sadd.s32 %s448, 1
      %s450 = scalar_select %p447, %s448, %s449
      %p453 = pneg %p447
      %p454 = scmp.eq.s32.totalorder %s34, 1
      %p455 = por %p453, %p454
      %p456 = scmp.ne.s32.totalorder %s448, %s451
      %p457 = scmp.eq.s32.totalorder %s34, 0
      %p458 = por %p456, %p457
      %p459 = scmp.ne.s32.totalorder %s448, %s451
      %p460 = scmp.eq.s32.totalorder %s39, 1
      %p461 = por %p459, %p460
      %p462 = scmp.ne.s32.totalorder %s451, %s452
      %p463 = scmp.eq.s32.totalorder %s39, 0
      %p464 = por %p462, %p463
      %p465 = scmp.ne.s32.totalorder %s451, %s452
      %p466 = scmp.eq.s32.totalorder %s40, 1
      %p467 = por %p465, %p466
      %p469 = scmp.ne.s32.totalorder %s452, %s468
      %p470 = scmp.eq.s32.totalorder %s40, 0
      %p471 = por %p469, %p470
      %p472 = scmp.le.s32.totalorder 1, %s34
      %p473 = scmp.lt.s32.totalorder %s34, 3
      %p474 = pnand %p472, %p473
      %p475 = pneg %p474
      // Predicated region
      $region9: #{tpu_custom_call.1} parent=5 // pred_check
        _
      $region10: #{tpu_custom_call.1} parent=5 // pred_check_branch
        %477 = sbr.rel (%p474) target = $region12
      $region11: #{tpu_custom_call.1} parent=5 // pred_region
        %s478 = ssub.s32 %s34, 1
        // Predicated region
        $region13: #{tpu_custom_call.1} parent=11 // pred_check
          %p479 = pneg %p121
        $region14: #{tpu_custom_call.1} parent=11 // pred_check_branch
          %481 = sbr.rel (%p479) target = $region16
        $region15: #{tpu_custom_call.1} parent=11 // pred_region
          %s483 = ssub.s32 16, 16
          %484 = vsyncadd [#allocation11], %s483
          %s486 = sshll.u32 [#allocation10], 4
          %s487 = int_to_ptr.vmem [resolvable:$true] %s486
          %489 = dma.hbm_to_vmem [thread:$0]  %s2, 16, %s487, [#allocation11]
        $region16: #{tpu_custom_call.1} parent=11 // pred_fallthru
          _
        // Predicated region
        $region17: #{tpu_custom_call.1} parent=11 // pred_check
          %p490 = pneg %p142
        $region18: #{tpu_custom_call.1} parent=11 // pred_check_branch
          %492 = sbr.rel (%p490) target = $region20
        $region19: #{tpu_custom_call.1} parent=11 // pred_region
          %s494 = ssub.s32 16, 16
          %495 = vsyncadd [#allocation11], %s494
          %s497 = sshll.u32 [#allocation12], 4
          %s498 = int_to_ptr.vmem [resolvable:$true] %s497
          %500 = dma.hbm_to_vmem [thread:$0]  %s3, 16, %s498, [#allocation11]
        $region20: #{tpu_custom_call.1} parent=11 // pred_fallthru
          _
        // Predicated region
        $region21: #{tpu_custom_call.1} parent=11 // pred_check
          %p501 = pneg %p163
        $region22: #{tpu_custom_call.1} parent=11 // pred_check_branch
          %503 = sbr.rel (%p501) target = $region24
        $region23: #{tpu_custom_call.1} parent=11 // pred_region
          _
        $region24: #{tpu_custom_call.1} parent=11 // pred_fallthru
          _
        // Predicated region
        $region25: #{tpu_custom_call.1} parent=11 // pred_check
          %p504 = pneg %p184
        $region26: #{tpu_custom_call.1} parent=11 // pred_check_branch
          %506 = sbr.rel (%p504) target = $region28
        $region27: #{tpu_custom_call.1} parent=11 // pred_region
          %s508 = ssub.s32 16, 16
          %509 = vsyncadd [#allocation14], %s508
          %s511 = sshll.u32 [#allocation13], 4
          %s512 = int_to_ptr.vmem [resolvable:$true] %s511
          %514 = dma.hbm_to_vmem [thread:$0]  %s5, 16, %s512, [#allocation14]
        $region28: #{tpu_custom_call.1} parent=11 // pred_fallthru
          _
        // Predicated region
        $region29: #{tpu_custom_call.1} parent=11 // pred_check
          %p515 = pneg %p205
        $region30: #{tpu_custom_call.1} parent=11 // pred_check_branch
          %517 = sbr.rel (%p515) target = $region32
        $region31: #{tpu_custom_call.1} parent=11 // pred_region
          _
        $region32: #{tpu_custom_call.1} parent=11 // pred_fallthru
          _
        // Predicated region
        $region33: #{tpu_custom_call.1} parent=11 // pred_check
          %p518 = pneg %p226
        $region34: #{tpu_custom_call.1} parent=11 // pred_check_branch
          %520 = sbr.rel (%p518) target = $region36
        $region35: #{tpu_custom_call.1} parent=11 // pred_region
          %s522 = ssub.s32 16, 16
          %523 = vsyncadd [#allocation14], %s522
          %s525 = sshll.u32 [#allocation15], 4
          %s526 = int_to_ptr.vmem [resolvable:$true] %s525
          %528 = dma.hbm_to_vmem [thread:$0]  %s7, 16, %s526, [#allocation14]
        $region36: #{tpu_custom_call.1} parent=11 // pred_fallthru
          _
        // Predicated region
        $region37: #{tpu_custom_call.1} parent=11 // pred_check
          %p529 = pneg %p247
        $region38: #{tpu_custom_call.1} parent=11 // pred_check_branch
          %531 = sbr.rel (%p529) target = $region40
        $region39: #{tpu_custom_call.1} parent=11 // pred_region
          %s533 = ssub.s32 256, 256
          %534 = vsyncadd [#allocation17], %s533
          %s535 = sshll.u32 [#allocation16], 4
          %s536 = int_to_ptr.vmem [resolvable:$true] %s535
          %541 = dma.hbm_to_vmem [thread:$0]  %s8, 256, %s536, [#allocation17], 64, 64, 4
        $region40: #{tpu_custom_call.1} parent=11 // pred_fallthru
          _
        // Predicated region
        $region41: #{tpu_custom_call.1} parent=11 // pred_check
          %p542 = pneg %p268
        $region42: #{tpu_custom_call.1} parent=11 // pred_check_branch
          %544 = sbr.rel (%p542) target = $region44
        $region43: #{tpu_custom_call.1} parent=11 // pred_region
          %s546 = ssub.s32 16, 16
          %547 = vsyncadd [#allocation17], %s546
          %s549 = sshll.u32 [#allocation18], 4
          %s550 = int_to_ptr.vmem [resolvable:$true] %s549
          %552 = dma.hbm_to_vmem [thread:$0]  %s9, 16, %s550, [#allocation17]
        $region44: #{tpu_custom_call.1} parent=11 // pred_fallthru
          _
        // Predicated region
        $region45: #{tpu_custom_call.1} parent=11 // pred_check
          %p553 = pneg %p289
        $region46: #{tpu_custom_call.1} parent=11 // pred_check_branch
          %555 = sbr.rel (%p553) target = $region48
        $region47: #{tpu_custom_call.1} parent=11 // pred_region
          _
        $region48: #{tpu_custom_call.1} parent=11 // pred_fallthru
          _
        // Predicated region
        $region49: #{tpu_custom_call.1} parent=11 // pred_check
          %p556 = pneg %p310
        $region50: #{tpu_custom_call.1} parent=11 // pred_check_branch
          %558 = sbr.rel (%p556) target = $region52
        $region51: #{tpu_custom_call.1} parent=11 // pred_region
          _
        $region52: #{tpu_custom_call.1} parent=11 // pred_fallthru
          _
        // Predicated region
        $region53: #{tpu_custom_call.1} parent=11 // pred_check
          %p559 = pneg %p331
        $region54: #{tpu_custom_call.1} parent=11 // pred_check_branch
          %561 = sbr.rel (%p559) target = $region56
        $region55: #{tpu_custom_call.1} parent=11 // pred_region
          _
        $region56: #{tpu_custom_call.1} parent=11 // pred_fallthru
          _
        // Predicated region
        $region57: #{tpu_custom_call.1} parent=11 // pred_check
          %p562 = pneg %p352
        $region58: #{tpu_custom_call.1} parent=11 // pred_check_branch
          %564 = sbr.rel (%p562) target = $region60
        $region59: #{tpu_custom_call.1} parent=11 // pred_region
          _
        $region60: #{tpu_custom_call.1} parent=11 // pred_fallthru
          _
        // Predicated region
        $region61: #{tpu_custom_call.1} parent=11 // pred_check
          %p565 = pneg %p373
        $region62: #{tpu_custom_call.1} parent=11 // pred_check_branch
          %567 = sbr.rel (%p565) target = $region64
        $region63: #{tpu_custom_call.1} parent=11 // pred_region
          %s569 = ssub.s32 256, 256
          %570 = vsyncadd [#allocation20], %s569
          %s571 = sshll.u32 [#allocation19], 4
          %s572 = int_to_ptr.vmem [resolvable:$true] %s571
          %577 = dma.hbm_to_vmem [thread:$0]  %s14, 256, %s572, [#allocation20], 64, 64, 4
        $region64: #{tpu_custom_call.1} parent=11 // pred_fallthru
          _
        // Predicated region
        $region65: #{tpu_custom_call.1} parent=11 // pred_check
          %p578 = pneg %p394
        $region66: #{tpu_custom_call.1} parent=11 // pred_check_branch
          %580 = sbr.rel (%p578) target = $region68
        $region67: #{tpu_custom_call.1} parent=11 // pred_region
          _
        $region68: #{tpu_custom_call.1} parent=11 // pred_fallthru
          _
        // Predicated region
        $region69: #{tpu_custom_call.1} parent=11 // pred_check
          %p581 = pneg %p415
        $region70: #{tpu_custom_call.1} parent=11 // pred_check_branch
          %583 = sbr.rel (%p581) target = $region72
        $region71: #{tpu_custom_call.1} parent=11 // pred_region
          _
        $region72: #{tpu_custom_call.1} parent=11 // pred_fallthru
          _
        // Predicated region
        $region73: #{tpu_custom_call.1} parent=11 // pred_check
          %p584 = pneg %p436
        $region74: #{tpu_custom_call.1} parent=11 // pred_check_branch
          %586 = sbr.rel (%p584) target = $region76
        $region75: #{tpu_custom_call.1} parent=11 // pred_region
          _
        $region76: #{tpu_custom_call.1} parent=11 // pred_fallthru
          _
      $region12: #{tpu_custom_call.1} parent=5 // pred_fallthru
        _
      %p587 = scmp.lt.s32.totalorder %s34, 2
      // Predicated region
      $region77: #{tpu_custom_call.1} parent=5 // pred_check
        %p588 = pneg %p587
      $region78: #{tpu_custom_call.1} parent=5 // pred_check_branch
        %590 = sbr.rel (%p588) target = $region80
      $region79: #{tpu_custom_call.1} parent=5 // pred_region
        // Predicated region
        $region81: #{tpu_custom_call.1} parent=79 // pred_check
          %p591 = pneg %p66
        $region82: #{tpu_custom_call.1} parent=79 // pred_check_branch
          %593 = sbr.rel (%p591) target = $region84
        $region83: #{tpu_custom_call.1} parent=79 // pred_region
          %p594 = scmp.lt.s32.totalorder %s41, 1
          %s595 = scalar_select %p594, %s41, 1
          %s596 = smul.addr %s595, 8
          %s597 = scalar_lea.vmem %s0, %s596
        $region84: #{tpu_custom_call.1} parent=79 // pred_fallthru
          _
        // Predicated region
        $region85: #{tpu_custom_call.1} parent=79 // pred_check
          %p598 = pneg %p94
        $region86: #{tpu_custom_call.1} parent=79 // pred_check_branch
          %600 = sbr.rel (%p598) target = $region88
        $region87: #{tpu_custom_call.1} parent=79 // pred_region
          %s601 = sand.u32 %s84, 1
          %s602 = scalar_lea.sflag [#allocation8], %s601
          %s603 = sand.u32 %s84, 1
          %s604 = smul.addr %s603, 2
          %s605 = scalar_lea.vmem [#allocation7], %s604
          %s607 = ssub.s32 32, 32
          %608 = vsyncadd %s602, %s607
          %s609 = sadd.s32 %s42, %s41
          %s610 = smul.addr %s609, 32
          %s611 = scalar_lea.hbm %s1, %s610
          %s613 = sshll.u32 %s605, 4
          %s614 = int_to_ptr.vmem [resolvable:$true] %s613
          %616 = dma.hbm_to_vmem [thread:$0]  %s611, 32, %s614, %s602
        $region88: #{tpu_custom_call.1} parent=79 // pred_fallthru
          _
      $region80: #{tpu_custom_call.1} parent=5 // pred_fallthru
        _
      %p617 = scmp.le.s32.totalorder 1, %s34
      %p618 = scmp.lt.s32.totalorder %s34, 3
      %p619 = pnand %p617, %p618
      %p620 = pneg %p619
      // Predicated region
      $region89: #{tpu_custom_call.1} parent=5 // pred_check
        _
      $region90: #{tpu_custom_call.1} parent=5 // pred_check_branch
        %622 = sbr.rel (%p619) target = $region92
      $region91: #{tpu_custom_call.1} parent=5 // pred_region
        %s623 = ssub.s32 %s34, 1
        %s624 = sand.u32 %s87, 1
        %s625 = scalar_lea.sflag [#allocation8], %s624
        %s626 = sand.u32 %s87, 1
        %s627 = smul.addr %s626, 2
        %s628 = scalar_lea.vmem [#allocation7], %s627
        // Predicated region
        $region93: #{tpu_custom_call.1} parent=91 // pred_check
          %p629 = pneg %p100
        $region94: #{tpu_custom_call.1} parent=91 // pred_check_branch
          %631 = sbr.rel (%p629) target = $region96
        $region95: #{tpu_custom_call.1} parent=91 // pred_region
          %632 = dma.done %s625, 32
        $region96: #{tpu_custom_call.1} parent=91 // pred_fallthru
          _
        // Predicated region
        $region97: #{tpu_custom_call.1} parent=91 // pred_check
          %p633 = pneg %p121
        $region98: #{tpu_custom_call.1} parent=91 // pred_check_branch
          %635 = sbr.rel (%p633) target = $region100
        $region99: #{tpu_custom_call.1} parent=91 // pred_region
          %636 = dma.done [#allocation11], 16
        $region100: #{tpu_custom_call.1} parent=91 // pred_fallthru
          _
        // Predicated region
        $region101: #{tpu_custom_call.1} parent=91 // pred_check
          %p637 = pneg %p142
        $region102: #{tpu_custom_call.1} parent=91 // pred_check_branch
          %639 = sbr.rel (%p637) target = $region104
        $region103: #{tpu_custom_call.1} parent=91 // pred_region
          %640 = dma.done [#allocation11], 16
        $region104: #{tpu_custom_call.1} parent=91 // pred_fallthru
          _
        // Predicated region
        $region105: #{tpu_custom_call.1} parent=91 // pred_check
          %p641 = pneg %p184
        $region106: #{tpu_custom_call.1} parent=91 // pred_check_branch
          %643 = sbr.rel (%p641) target = $region108
        $region107: #{tpu_custom_call.1} parent=91 // pred_region
          %644 = dma.done [#allocation14], 16
        $region108: #{tpu_custom_call.1} parent=91 // pred_fallthru
          _
        // Predicated region
        $region109: #{tpu_custom_call.1} parent=91 // pred_check
          %p645 = pneg %p226
        $region110: #{tpu_custom_call.1} parent=91 // pred_check_branch
          %647 = sbr.rel (%p645) target = $region112
        $region111: #{tpu_custom_call.1} parent=91 // pred_region
          %648 = dma.done [#allocation14], 16
        $region112: #{tpu_custom_call.1} parent=91 // pred_fallthru
          _
        // Predicated region
        $region113: #{tpu_custom_call.1} parent=91 // pred_check
          %p649 = pneg %p247
        $region114: #{tpu_custom_call.1} parent=91 // pred_check_branch
          %651 = sbr.rel (%p649) target = $region116
        $region115: #{tpu_custom_call.1} parent=91 // pred_region
          %652 = dma.done [#allocation17], 256
        $region116: #{tpu_custom_call.1} parent=91 // pred_fallthru
          _
        // Predicated region
        $region117: #{tpu_custom_call.1} parent=91 // pred_check
          %p653 = pneg %p268
        $region118: #{tpu_custom_call.1} parent=91 // pred_check_branch
          %655 = sbr.rel (%p653) target = $region120
        $region119: #{tpu_custom_call.1} parent=91 // pred_region
          %656 = dma.done [#allocation17], 16
        $region120: #{tpu_custom_call.1} parent=91 // pred_fallthru
          _
        // Predicated region
        $region121: #{tpu_custom_call.1} parent=91 // pred_check
          %p657 = pneg %p373
        $region122: #{tpu_custom_call.1} parent=91 // pred_check_branch
          %659 = sbr.rel (%p657) target = $region124
        $region123: #{tpu_custom_call.1} parent=91 // pred_region
          %660 = dma.done [#allocation20], 256
        $region124: #{tpu_custom_call.1} parent=91 // pred_fallthru
          _
        %p661 = scmp.lt.s32.totalorder %s43, 1
        %s662 = scalar_select %p661, %s43, 1
        %s663 = smul.addr %s662, 8
        %s664 = scalar_lea.vmem %s0, %s663
        %p665 = pneg %p72
        %p666 = pneg %p69
        %s667 = sand.u32 %s87, 1
        %s668 = scalar_lea.sflag [#allocation8], %s667
        %s669 = sand.u32 %s87, 1
        %s670 = smul.addr %s669, 2
        %s671 = scalar_lea.vmem [#allocation7], %s670
        %p672 = pneg %p100
        %p673 = pneg %p97
        %p674 = pneg %p121
        %p675 = pneg %p118
        %p676 = pneg %p142
        %p677 = pneg %p139
        %p678 = pneg %p163
        %p679 = pneg %p160
        %p680 = pneg %p184
        %p681 = pneg %p181
        %p682 = pneg %p205
        %p683 = pneg %p202
        %p684 = pneg %p226
        %p685 = pneg %p223
        %p686 = pneg %p247
        %p687 = pneg %p244
        %p688 = pneg %p268
        %p689 = pneg %p265
        %p690 = pneg %p289
        %p691 = pneg %p286
        %p692 = pneg %p310
        %p693 = pneg %p307
        %p694 = pneg %p331
        %p695 = pneg %p328
        %p696 = pneg %p352
        %p697 = pneg %p349
        %p698 = pneg %p373
        %p699 = pneg %p370
        %p700 = pneg %p394
        %p701 = pneg %p391
        %p702 = pneg %p415
        %p703 = pneg %p412
        %p704 = pneg %p436
        %p705 = pneg %p433
        %p706 = pneg %p464
        %p707 = pneg %p461
        %s708 = sand.u32 %s451, 1
        %s709 = scalar_lea.sflag [#allocation9], %s708
        %s710 = sand.u32 %s451, 1
        %s711 = smul.addr %s710, 8
        %s712 = scalar_lea.vmem [#allocation21], %s711
        %p713 = scmp.lt.s32.totalorder %s43, 1
        %s714 = scalar_select %p713, %s43, 1
        %s715 = smul.addr %s714, 8
        %s716 = scalar_lea.vmem %s0, %s715
        %p718 = scmp.eq.s32.totalorder %s44, 0
        // Predicated region
        $region125: #{tpu_custom_call.1} parent=91 // pred_check
          %p719 = pneg %p718
        $region126: #{tpu_custom_call.1} parent=91 // pred_check_branch
          %721 = sbr.rel (%p719) target = $region128
        $region127: #{tpu_custom_call.1} parent=91 // pred_region
          %v722 = vld [vmem:[%s716] sm:$0xff]
          %v723 = vld [vmem:[#allocation10] sm:$0x1]
          %v724 = vld [vmem:[#allocation12] sm:$0x1]
          %vm725 = vcmask 261120
          %v726 = vsel %vm725, %v722, 0.0
          %727 = vadd.xlane.f32.xlu0 %v726
          %v728 = vpop.xlane.xlu0 %727
          %v729 = vrcp.pop 32.0
          %v730 = vmul.f32 %v728, %v729
          %v731 = vsub.f32 %v722, %v730
          %v732 = vmul.f32 %v731, %v731
          %v733 = vsel %vm725, %v732, 0.0
          %734 = vadd.xlane.f32.xlu0 %v733
          %v735 = vpop.xlane.xlu0 %734
          %v736 = vmul.f32 %v735, %v729
          %v737 = vadd.f32 %v736, 1e-05
          %v738 = vrsqrt.pop %v737
          %v739 = vmul.f32 %v731, %v738
          %v741 = vlaneseq
          %v742 = vshrl.u32 %v741, 7
          %v743 = vsub.s32 0, %v742
          %v744 = vrot.slane %v723, %v743
          %v746 = vmul.f32 %v739, %v744
          %v748 = vlaneseq
          %v749 = vshrl.u32 %v748, 7
          %v750 = vsub.s32 0, %v749
          %v751 = vrot.slane %v724, %v750
          %v753 = vadd.f32 %v746, %v751
          %v754 = vpack.c.bf16 %v753, %v753
          %vm755 = vcmask 257024
          %756 = vst.msk [vmem:[#allocation2] sm:$0xf] %vm755, %v754
          %v757 = vld [vmem:[%s6] sm:$0xf]
          %v758 = vld [vmem:[%s6 + $0x4] sm:$0xf]
          %v759 = vld [vmem:[%s6 + $0x8] sm:$0xf]
          %v760 = vld [vmem:[%s6 + $0xc] sm:$0xf]
          %v761 = vld [vmem:[#allocation15] sm:$0x1]
          %v763 = vlaneseq
          %v764 = vshrl.u32 %v763, 7
          %v765 = vsub.s32 0, %v764
          %v766 = vrot.slane %v761, %v765
          %v772 = vunpack.c.l.b16 %v757
          %v773 = vunpack.c.l.b16 %v758
          %v774 = vunpack.c.l.b16 %v759
          %v775 = vunpack.c.l.b16 %v760
          %v776 = vpack.c.b16 %v773, %v772
          %v777 = vpack.c.b16 %v775, %v774
          %v781 = vsel %vm725, %v754, 0
          %783 = vmatprep.subr.bf16.mxu0 0
          %784 = vmatpush1.bf16.msra.mxu0 0
          %785 = vmatprep.subr.bf16.mxu0 0
          %786 = vmatpush1.bf16.msra.mxu0 0
          %787 = vmatprep.subr.bf16.mxu0 0
          %788 = vmatpush1.bf16.msra.mxu0 0
          %789 = vmatprep.subr.bf16.mxu0 0
          %790 = vmatpush1.bf16.msra.mxu0 0
          %791 = vmatprep.subr.bf16.mxu0 0
          %792 = vmatpush1.bf16.msra.mxu0 0
          %793 = vmatprep.subr.bf16.mxu0 0
          %794 = vmatpush1.bf16.msra.mxu0 0
          %795 = vmatprep.subr.bf16.mxu0 0
          %796 = vmatpush1.bf16.msra.mxu0 %v777
          %797 = vmatprep.subr.bf16.mxu0 0
          %798 = vmatpush1.bf16.msra.mxu0 %v776
          %799 = vmatprep.subr.bf16.mxu0 0
          %800 = vmatpush2.bf16.msra.mxu0 0
          %801 = vmatprep.subr.bf16.mxu0 0
          %802 = vmatpush2.bf16.msra.mxu0 0
          %803 = vmatprep.subr.bf16.mxu0 0
          %804 = vmatpush2.bf16.msra.mxu0 0
          %805 = vmatprep.subr.bf16.mxu0 0
          %806 = vmatpush2.bf16.msra.mxu0 0
          %807 = vmatprep.subr.bf16.mxu0 0
          %808 = vmatpush2.bf16.msra.mxu0 0
          %809 = vmatprep.subr.bf16.mxu0 0
          %810 = vmatpush2.bf16.msra.mxu0 0
          %811 = vmatprep.subr.bf16.mxu0 0
          %812 = vmatpush2.bf16.msra.mxu0 0
          %813 = vmatprep.subr.bf16.mxu0 0
          %814 = vmatpush2.bf16.msra.mxu0 0
          %815 = vmatprep.mubr.bf16.mxu0 0
          %816 = vmatmul.mubr.bf16.gmra.mxu0 %v781
          %v817 = vpop.f32.mrf.mxu0
          %v818 = vadd.f32 %v766, %v817
          %v819 = vpop.f32.mrf.mxu0
          %v820 = vpop.f32.mrf.mxu0
          %v821 = vpop.f32.mrf.mxu0
          %822 = vdwg.mxu0
          %v823 = vld [vmem:[#allocation16] sm:$0xf]
          %v824 = vld [vmem:[#allocation16 + $0x4] sm:$0xf]
          %v825 = vld [vmem:[#allocation16 + $0x8] sm:$0xf]
          %v826 = vld [vmem:[#allocation16 + $0xc] sm:$0xf]
          %v827 = vld [vmem:[#allocation18] sm:$0x1]
          %v829 = vlaneseq
          %v830 = vshrl.u32 %v829, 7
          %v831 = vsub.s32 0, %v830
          %v832 = vrot.slane %v827, %v831
          %v838 = vunpack.c.l.b16 %v823
          %v839 = vunpack.c.l.b16 %v824
          %v840 = vunpack.c.l.b16 %v825
          %v841 = vunpack.c.l.b16 %v826
          %v842 = vpack.c.b16 %v839, %v838
          %v843 = vpack.c.b16 %v841, %v840
          %846 = vmatprep.subr.bf16.mxu0 0
          %847 = vmatpush1.bf16.msra.mxu0 0
          %848 = vmatprep.subr.bf16.mxu0 0
          %849 = vmatpush1.bf16.msra.mxu0 0
          %850 = vmatprep.subr.bf16.mxu0 0
          %851 = vmatpush1.bf16.msra.mxu0 0
          %852 = vmatprep.subr.bf16.mxu0 0
          %853 = vmatpush1.bf16.msra.mxu0 0
          %854 = vmatprep.subr.bf16.mxu0 0
          %855 = vmatpush1.bf16.msra.mxu0 0
          %856 = vmatprep.subr.bf16.mxu0 0
          %857 = vmatpush1.bf16.msra.mxu0 0
          %858 = vmatprep.subr.bf16.mxu0 0
          %859 = vmatpush1.bf16.msra.mxu0 %v843
          %860 = vmatprep.subr.bf16.mxu0 0
          %861 = vmatpush1.bf16.msra.mxu0 %v842
          %862 = vmatprep.subr.bf16.mxu0 0
          %863 = vmatpush2.bf16.msra.mxu0 0
          %864 = vmatprep.subr.bf16.mxu0 0
          %865 = vmatpush2.bf16.msra.mxu0 0
          %866 = vmatprep.subr.bf16.mxu0 0
          %867 = vmatpush2.bf16.msra.mxu0 0
          %868 = vmatprep.subr.bf16.mxu0 0
          %869 = vmatpush2.bf16.msra.mxu0 0
          %870 = vmatprep.subr.bf16.mxu0 0
          %871 = vmatpush2.bf16.msra.mxu0 0
          %872 = vmatprep.subr.bf16.mxu0 0
          %873 = vmatpush2.bf16.msra.mxu0 0
          %874 = vmatprep.subr.bf16.mxu0 0
          %875 = vmatpush2.bf16.msra.mxu0 0
          %876 = vmatprep.subr.bf16.mxu0 0
          %877 = vmatpush2.bf16.msra.mxu0 0
          %878 = vmatprep.mubr.bf16.mxu0 0
          %879 = vmatmul.mubr.bf16.gmra.mxu0 %v781
          %v880 = vpop.f32.mrf.mxu0
          %v881 = vadd.f32 %v832, %v880
          %v882 = vpop.f32.mrf.mxu0
          %v883 = vpop.f32.mrf.mxu0
          %v884 = vpop.f32.mrf.mxu0
          %885 = vdwg.mxu0
          %v886 = vpack.c.bf16 %v818, %v818
          %vm887 = vcmask 60416
          %888 = vst.msk [vmem:[#allocation3] sm:$0xf] %vm887, %v886
          %v889 = vpack.c.bf16 %v881, %v881
          %890 = vst.msk [vmem:[#allocation4] sm:$0xf] %vm887, %v889
          %v892 = vunpack.c.l.b16 %v886
          %v893 = vpack.c.b16 %v892, %v892
          %894 = vrot.lane.b32.xlu0 %v893, 120
          %v895 = vpop.permute.xlu0 %894
          %s897 = sadd.s32 0, 1
          %s898 = smul.addr %s897, 4
          %s899 = scalar_lea.vmem [#allocation3], %s898
          %900 = vst.msk [vmem:[%s899] sm:$0xf] %vm887, %v895
          %v902 = vunpack.c.l.b16 %v889
          %v903 = vpack.c.b16 %v902, %v902
          %904 = vrot.lane.b32.xlu0 %v903, 120
          %v905 = vpop.permute.xlu0 %904
          %s907 = smul.addr %s897, 4
          %s908 = scalar_lea.vmem [#allocation4], %s907
          %909 = vst.msk [vmem:[%s908] sm:$0xf] %vm887, %v905
          %910 = vrot.lane.b32.xlu0 %v893, 112
          %v911 = vpop.permute.xlu0 %910
          %s913 = sadd.s32 0, 2
          %s914 = smul.addr %s913, 4
          %s915 = scalar_lea.vmem [#allocation3], %s914
          %916 = vst.msk [vmem:[%s915] sm:$0xf] %vm887, %v911
          %917 = vrot.lane.b32.xlu0 %v903, 112
          %v918 = vpop.permute.xlu0 %917
          %s920 = smul.addr %s913, 4
          %s921 = scalar_lea.vmem [#allocation4], %s920
          %922 = vst.msk [vmem:[%s921] sm:$0xf] %vm887, %v918
          %923 = vrot.lane.b32.xlu0 %v893, 104
          %v924 = vpop.permute.xlu0 %923
          %s926 = sadd.s32 0, 3
          %s927 = smul.addr %s926, 4
          %s928 = scalar_lea.vmem [#allocation3], %s927
          %929 = vst.msk [vmem:[%s928] sm:$0xf] %vm887, %v924
          %930 = vrot.lane.b32.xlu0 %v903, 104
          %v931 = vpop.permute.xlu0 %930
          %s933 = smul.addr %s926, 4
          %s934 = scalar_lea.vmem [#allocation4], %s933
          %935 = vst.msk [vmem:[%s934] sm:$0xf] %vm887, %v931
        $region128: #{tpu_custom_call.1} parent=91 // pred_fallthru
          _
        %s936 = smul.u32 %s44, 8
        %s937 = sshra.s32 %s936, 3
        %s938 = sand.u32 %s936, 7
        %s939 = smul.addr %s937, 4
        %s940 = scalar_lea.vmem [#allocation2], %s939
        %v941 = vld [vmem:[%s940] sm:$0xf]
        %v942 = vld [vmem:[%s4] sm:$0xf]
        %v943 = vld [vmem:[%s4 + $0x4] sm:$0xf]
        %v944 = vld [vmem:[%s4 + $0x8] sm:$0xf]
        %v945 = vld [vmem:[%s4 + $0xc] sm:$0xf]
        %v946 = vld [vmem:[#allocation13] sm:$0x1]
        %v948 = vlaneseq
        %v949 = vshrl.u32 %v948, 7
        %v950 = vsub.s32 0, %v949
        %v951 = vrot.slane %v946, %v950
        %v957 = vunpack.c.l.b16 %v942
        %v958 = vunpack.c.l.b16 %v943
        %v959 = vunpack.c.l.b16 %v944
        %v960 = vunpack.c.l.b16 %v945
        %v961 = vpack.c.b16 %v958, %v957
        %v962 = vpack.c.b16 %v960, %v959
        %vm965 = vcmask 261120
        %v967 = vsel %vm965, %v941, 0
        %969 = vmatprep.subr.bf16.mxu0 0
        %970 = vmatpush1.bf16.msra.mxu0 0
        %971 = vmatprep.subr.bf16.mxu0 0
        %972 = vmatpush1.bf16.msra.mxu0 0
        %973 = vmatprep.subr.bf16.mxu0 0
        %974 = vmatpush1.bf16.msra.mxu0 0
        %975 = vmatprep.subr.bf16.mxu0 0
        %976 = vmatpush1.bf16.msra.mxu0 0
        %977 = vmatprep.subr.bf16.mxu0 0
        %978 = vmatpush1.bf16.msra.mxu0 0
        %979 = vmatprep.subr.bf16.mxu0 0
        %980 = vmatpush1.bf16.msra.mxu0 0
        %981 = vmatprep.subr.bf16.mxu0 0
        %982 = vmatpush1.bf16.msra.mxu0 %v962
        %983 = vmatprep.subr.bf16.mxu0 0
        %984 = vmatpush1.bf16.msra.mxu0 %v961
        %985 = vmatprep.subr.bf16.mxu0 0
        %986 = vmatpush2.bf16.msra.mxu0 0
        %987 = vmatprep.subr.bf16.mxu0 0
        %988 = vmatpush2.bf16.msra.mxu0 0
        %989 = vmatprep.subr.bf16.mxu0 0
        %990 = vmatpush2.bf16.msra.mxu0 0
        %991 = vmatprep.subr.bf16.mxu0 0
        %992 = vmatpush2.bf16.msra.mxu0 0
        %993 = vmatprep.subr.bf16.mxu0 0
        %994 = vmatpush2.bf16.msra.mxu0 0
        %995 = vmatprep.subr.bf16.mxu0 0
        %996 = vmatpush2.bf16.msra.mxu0 0
        %997 = vmatprep.subr.bf16.mxu0 0
        %998 = vmatpush2.bf16.msra.mxu0 0
        %999 = vmatprep.subr.bf16.mxu0 0
        %1000 = vmatpush2.bf16.msra.mxu0 0
        %1001 = vmatprep.mubr.bf16.mxu0 0
        %1002 = vmatmul.mubr.bf16.gmra.mxu0 %v967
        %v1003 = vpop.f32.mrf.mxu0
        %v1004 = vadd.f32 %v951, %v1003
        %v1005 = vpop.f32.mrf.mxu0
        %v1006 = vpop.f32.mrf.mxu0
        %v1007 = vpop.f32.mrf.mxu0
        %1008 = vdwg.mxu0
        %v1009 = vmul.f32 %v1004, 0.35355338
        %v1010 = vpack.c.bf16 %v1009, %v1009
        %vm1011 = vcmask 60416
        %1012 = vst.msk [vmem:[#allocation5] sm:$0xf] %vm1011, %v1010
        %v1014 = vunpack.c.l.b16 %v1010
        %v1015 = vpack.c.b16 %v1014, %v1014
        %1016 = vrot.lane.b32.xlu0 %v1015, 120
        %v1017 = vpop.permute.xlu0 %1016
        %s1019 = scalar_lea.vmem [#allocation5], 4
        %1020 = vst.msk [vmem:[%s1019] sm:$0xf] %vm1011, %v1017
        %1021 = vrot.lane.b32.xlu0 %v1015, 112
        %v1022 = vpop.permute.xlu0 %1021
        %s1024 = scalar_lea.vmem [#allocation5], 8
        %1025 = vst.msk [vmem:[%s1024] sm:$0xf] %vm1011, %v1022
        %1026 = vrot.lane.b32.xlu0 %v1015, 104
        %v1027 = vpop.permute.xlu0 %1026
        %s1029 = scalar_lea.vmem [#allocation5], 12
        %1030 = vst.msk [vmem:[%s1029] sm:$0xf] %vm1011, %v1027
        %v1031 = vld [vmem:[#allocation5] sm:$0xf]
        %v1032 = vld [vmem:[#allocation5 + $0x4] sm:$0xf]
        %v1033 = vld [vmem:[#allocation5 + $0x8] sm:$0xf]
        %v1034 = vld [vmem:[#allocation5 + $0xc] sm:$0xf]
        %v1035 = vld [vmem:[#allocation3] sm:$0xf]
        %v1036 = vld [vmem:[#allocation3 + $0x4] sm:$0xf]
        %v1037 = vld [vmem:[#allocation3 + $0x8] sm:$0xf]
        %v1038 = vld [vmem:[#allocation3 + $0xc] sm:$0xf]
        %v1039 = vld [vmem:[%s628] sm:$0x3]
        %v1040 = vunpack.c.0.s8 %v1039
        %v1041 = vcvt.s32.f32 %v1040
        %v1042 = vmul.f32 %v1041, -1e+30
        %vm1043 = vcmask 64512
        %v1045 = vsel %vm1043, %v1031, 0
        %v1048 = vsel %vm1043, %v1035, 0
        %1050 = vmatprep.subr.bf16.mxu0 0
        %1051 = vmatpush1.bf16.xpose.msra.mxu0 0
        %1052 = vmatprep.subr.bf16.mxu0 0
        %1053 = vmatpush1.bf16.xpose.msra.mxu0 0
        %1054 = vmatprep.subr.bf16.mxu0 0
        %1055 = vmatpush1.bf16.xpose.msra.mxu0 0
        %1056 = vmatprep.subr.bf16.mxu0 0
        %1057 = vmatpush1.bf16.xpose.msra.mxu0 0
        %1058 = vmatprep.subr.bf16.mxu0 0
        %1059 = vmatpush1.bf16.xpose.msra.mxu0 0
        %1060 = vmatprep.subr.bf16.mxu0 0
        %1061 = vmatpush1.bf16.xpose.msra.mxu0 0
        %1062 = vmatprep.subr.bf16.mxu0 0
        %1063 = vmatpush1.bf16.xpose.msra.mxu0 0
        %1064 = vmatprep.subr.bf16.mxu0 0
        %1065 = vmatpush1.bf16.xpose.msra.mxu0 %v1048
        %1066 = vmatprep.subr.bf16.mxu0 0
        %1067 = vmatpush2.bf16.xpose.msra.mxu0 0
        %1068 = vmatprep.subr.bf16.mxu0 0
        %1069 = vmatpush2.bf16.xpose.msra.mxu0 0
        %1070 = vmatprep.subr.bf16.mxu0 0
        %1071 = vmatpush2.bf16.xpose.msra.mxu0 0
        %1072 = vmatprep.subr.bf16.mxu0 0
        %1073 = vmatpush2.bf16.xpose.msra.mxu0 0
        %1074 = vmatprep.subr.bf16.mxu0 0
        %1075 = vmatpush2.bf16.xpose.msra.mxu0 0
        %1076 = vmatprep.subr.bf16.mxu0 0
        %1077 = vmatpush2.bf16.xpose.msra.mxu0 0
        %1078 = vmatprep.subr.bf16.mxu0 0
        %1079 = vmatpush2.bf16.xpose.msra.mxu0 0
        %1080 = vmatprep.subr.bf16.mxu0 0
        %1081 = vmatpush2.bf16.xpose.msra.mxu0 0
        %1082 = vmatprep.mubr.bf16.mxu0 0
        %1083 = vmatmul.mubr.bf16.gmra.mxu0 %v1045
        %v1084 = vpop.f32.mrf.mxu0
        %v1085 = vadd.f32 %v1042, %v1084
        %v1086 = vpop.f32.mrf.mxu0
        %v1087 = vpop.f32.mrf.mxu0
        %v1088 = vpop.f32.mrf.mxu0
        %1089 = vdwg.mxu0
        %v1091 = vsel %vm1043, %v1032, 0
        %v1094 = vsel %vm1043, %v1036, 0
        %1096 = vmatprep.subr.bf16.mxu0 0
        %1097 = vmatpush1.bf16.xpose.msra.mxu0 0
        %1098 = vmatprep.subr.bf16.mxu0 0
        %1099 = vmatpush1.bf16.xpose.msra.mxu0 0
        %1100 = vmatprep.subr.bf16.mxu0 0
        %1101 = vmatpush1.bf16.xpose.msra.mxu0 0
        %1102 = vmatprep.subr.bf16.mxu0 0
        %1103 = vmatpush1.bf16.xpose.msra.mxu0 0
        %1104 = vmatprep.subr.bf16.mxu0 0
        %1105 = vmatpush1.bf16.xpose.msra.mxu0 0
        %1106 = vmatprep.subr.bf16.mxu0 0
        %1107 = vmatpush1.bf16.xpose.msra.mxu0 0
        %1108 = vmatprep.subr.bf16.mxu0 0
        %1109 = vmatpush1.bf16.xpose.msra.mxu0 0
        %1110 = vmatprep.subr.bf16.mxu0 0
        %1111 = vmatpush1.bf16.xpose.msra.mxu0 %v1094
        %1112 = vmatprep.subr.bf16.mxu0 0
        %1113 = vmatpush2.bf16.xpose.msra.mxu0 0
        %1114 = vmatprep.subr.bf16.mxu0 0
        %1115 = vmatpush2.bf16.xpose.msra.mxu0 0
        %1116 = vmatprep.subr.bf16.mxu0 0
        %1117 = vmatpush2.bf16.xpose.msra.mxu0 0
        %1118 = vmatprep.subr.bf16.mxu0 0
        %1119 = vmatpush2.bf16.xpose.msra.mxu0 0
        %1120 = vmatprep.subr.bf16.mxu0 0
        %1121 = vmatpush2.bf16.xpose.msra.mxu0 0
        %1122 = vmatprep.subr.bf16.mxu0 0
        %1123 = vmatpush2.bf16.xpose.msra.mxu0 0
        %1124 = vmatprep.subr.bf16.mxu0 0
        %1125 = vmatpush2.bf16.xpose.msra.mxu0 0
        %1126 = vmatprep.subr.bf16.mxu0 0
        %1127 = vmatpush2.bf16.xpose.msra.mxu0 0
        %1128 = vmatprep.mubr.bf16.mxu0 0
        %1129 = vmatmul.mubr.bf16.gmra.mxu0 %v1091
        %v1130 = vpop.f32.mrf.mxu0
        %v1131 = vadd.f32 %v1042, %v1130
        %v1132 = vpop.f32.mrf.mxu0
        %v1133 = vpop.f32.mrf.mxu0
        %v1134 = vpop.f32.mrf.mxu0
        %1135 = vdwg.mxu0
        %v1137 = vsel %vm1043, %v1033, 0
        %v1140 = vsel %vm1043, %v1037, 0
        %1142 = vmatprep.subr.bf16.mxu0 0
        %1143 = vmatpush1.bf16.xpose.msra.mxu0 0
        %1144 = vmatprep.subr.bf16.mxu0 0
        %1145 = vmatpush1.bf16.xpose.msra.mxu0 0
        %1146 = vmatprep.subr.bf16.mxu0 0
        %1147 = vmatpush1.bf16.xpose.msra.mxu0 0
        %1148 = vmatprep.subr.bf16.mxu0 0
        %1149 = vmatpush1.bf16.xpose.msra.mxu0 0
        %1150 = vmatprep.subr.bf16.mxu0 0
        %1151 = vmatpush1.bf16.xpose.msra.mxu0 0
        %1152 = vmatprep.subr.bf16.mxu0 0
        %1153 = vmatpush1.bf16.xpose.msra.mxu0 0
        %1154 = vmatprep.subr.bf16.mxu0 0
        %1155 = vmatpush1.bf16.xpose.msra.mxu0 0
        %1156 = vmatprep.subr.bf16.mxu0 0
        %1157 = vmatpush1.bf16.xpose.msra.mxu0 %v1140
        %1158 = vmatprep.subr.bf16.mxu0 0
        %1159 = vmatpush2.bf16.xpose.msra.mxu0 0
        %1160 = vmatprep.subr.bf16.mxu0 0
        %1161 = vmatpush2.bf16.xpose.msra.mxu0 0
        %1162 = vmatprep.subr.bf16.mxu0 0
        %1163 = vmatpush2.bf16.xpose.msra.mxu0 0
        %1164 = vmatprep.subr.bf16.mxu0 0
        %1165 = vmatpush2.bf16.xpose.msra.mxu0 0
        %1166 = vmatprep.subr.bf16.mxu0 0
        %1167 = vmatpush2.bf16.xpose.msra.mxu0 0
        %1168 = vmatprep.subr.bf16.mxu0 0
        %1169 = vmatpush2.bf16.xpose.msra.mxu0 0
        %1170 = vmatprep.subr.bf16.mxu0 0
        %1171 = vmatpush2.bf16.xpose.msra.mxu0 0
        %1172 = vmatprep.subr.bf16.mxu0 0
        %1173 = vmatpush2.bf16.xpose.msra.mxu0 0
        %1174 = vmatprep.mubr.bf16.mxu0 0
        %1175 = vmatmul.mubr.bf16.gmra.mxu0 %v1137
        %v1176 = vpop.f32.mrf.mxu0
        %v1177 = vadd.f32 %v1042, %v1176
        %v1178 = vpop.f32.mrf.mxu0
        %v1179 = vpop.f32.mrf.mxu0
        %v1180 = vpop.f32.mrf.mxu0
        %1181 = vdwg.mxu0
        %v1183 = vsel %vm1043, %v1034, 0
        %v1186 = vsel %vm1043, %v1038, 0
        %1188 = vmatprep.subr.bf16.mxu0 0
        %1189 = vmatpush1.bf16.xpose.msra.mxu0 0
        %1190 = vmatprep.subr.bf16.mxu0 0
        %1191 = vmatpush1.bf16.xpose.msra.mxu0 0
        %1192 = vmatprep.subr.bf16.mxu0 0
        %1193 = vmatpush1.bf16.xpose.msra.mxu0 0
        %1194 = vmatprep.subr.bf16.mxu0 0
        %1195 = vmatpush1.bf16.xpose.msra.mxu0 0
        %1196 = vmatprep.subr.bf16.mxu0 0
        %1197 = vmatpush1.bf16.xpose.msra.mxu0 0
        %1198 = vmatprep.subr.bf16.mxu0 0
        %1199 = vmatpush1.bf16.xpose.msra.mxu0 0
        %1200 = vmatprep.subr.bf16.mxu0 0
        %1201 = vmatpush1.bf16.xpose.msra.mxu0 0
        %1202 = vmatprep.subr.bf16.mxu0 0
        %1203 = vmatpush1.bf16.xpose.msra.mxu0 %v1186
        %1204 = vmatprep.subr.bf16.mxu0 0
        %1205 = vmatpush2.bf16.xpose.msra.mxu0 0
        %1206 = vmatprep.subr.bf16.mxu0 0
        %1207 = vmatpush2.bf16.xpose.msra.mxu0 0
        %1208 = vmatprep.subr.bf16.mxu0 0
        %1209 = vmatpush2.bf16.xpose.msra.mxu0 0
        %1210 = vmatprep.subr.bf16.mxu0 0
        %1211 = vmatpush2.bf16.xpose.msra.mxu0 0
        %1212 = vmatprep.subr.bf16.mxu0 0
        %1213 = vmatpush2.bf16.xpose.msra.mxu0 0
        %1214 = vmatprep.subr.bf16.mxu0 0
        %1215 = vmatpush2.bf16.xpose.msra.mxu0 0
        %1216 = vmatprep.subr.bf16.mxu0 0
        %1217 = vmatpush2.bf16.xpose.msra.mxu0 0
        %1218 = vmatprep.subr.bf16.mxu0 0
        %1219 = vmatpush2.bf16.xpose.msra.mxu0 0
        %1220 = vmatprep.mubr.bf16.mxu0 0
        %1221 = vmatmul.mubr.bf16.gmra.mxu0 %v1183
        %v1222 = vpop.f32.mrf.mxu0
        %v1223 = vadd.f32 %v1042, %v1222
        %v1224 = vpop.f32.mrf.mxu0
        %v1225 = vpop.f32.mrf.mxu0
        %v1226 = vpop.f32.mrf.mxu0
        %1227 = vdwg.mxu0
        %v1228 = vsel %vm1043, %v1085, -inf
        %1229 = vmax.xlane.f32.xlu0 %v1228
        %v1230 = vpop.xlane.xlu0 %1229
        %v1231 = vsel %vm1043, %v1131, -inf
        %1232 = vmax.xlane.f32.xlu0 %v1231
        %v1233 = vpop.xlane.xlu0 %1232
        %v1234 = vsel %vm1043, %v1177, -inf
        %1235 = vmax.xlane.f32.xlu0 %v1234
        %v1236 = vpop.xlane.xlu0 %1235
        %v1237 = vsel %vm1043, %v1223, -inf
        %1238 = vmax.xlane.f32.xlu0 %v1237
        %v1239 = vpop.xlane.xlu0 %1238
        %v1240 = vsub.f32 %v1085, %v1230
        %v1241 = vsub.f32 %v1131, %v1233
        %v1242 = vsub.f32 %v1177, %v1236
        %v1243 = vsub.f32 %v1223, %v1239
        %v1244 = vmul.f32 %v1240, 1.442695
        %v1245 = vpow.pop %v1244
        %v1246 = vmul.f32 %v1241, 1.442695
        %v1247 = vpow.pop %v1246
        %v1248 = vmul.f32 %v1242, 1.442695
        %v1249 = vpow.pop %v1248
        %v1250 = vmul.f32 %v1243, 1.442695
        %v1251 = vpow.pop %v1250
        %v1252 = vsel %vm1043, %v1245, 0.0
        %1253 = vadd.xlane.f32.xlu0 %v1252
        %v1254 = vpop.xlane.xlu0 %1253
        %v1255 = vsel %vm1043, %v1247, 0.0
        %1256 = vadd.xlane.f32.xlu0 %v1255
        %v1257 = vpop.xlane.xlu0 %1256
        %v1258 = vsel %vm1043, %v1249, 0.0
        %1259 = vadd.xlane.f32.xlu0 %v1258
        %v1260 = vpop.xlane.xlu0 %1259
        %v1261 = vsel %vm1043, %v1251, 0.0
        %1262 = vadd.xlane.f32.xlu0 %v1261
        %v1263 = vpop.xlane.xlu0 %1262
        %v1264 = vrcp.pop %v1254
        %v1265 = vrcp.pop %v1257
        %v1266 = vrcp.pop %v1260
        %v1267 = vrcp.pop %v1263
        %v1268 = vmul.f32 %v1245, %v1264
        %v1269 = vmul.f32 %v1247, %v1265
        %v1270 = vmul.f32 %v1249, %v1266
        %v1271 = vmul.f32 %v1251, %v1267
        %v1272 = vpack.c.bf16 %v1268, %v1268
        %v1273 = vpack.c.bf16 %v1269, %v1269
        %v1274 = vpack.c.bf16 %v1270, %v1270
        %v1275 = vpack.c.bf16 %v1271, %v1271
        %v1276 = vld [vmem:[#allocation4] sm:$0xf]
        %v1277 = vld [vmem:[#allocation4 + $0x4] sm:$0xf]
        %v1278 = vld [vmem:[#allocation4 + $0x8] sm:$0xf]
        %v1279 = vld [vmem:[#allocation4 + $0xc] sm:$0xf]
        %v1281 = vsel %vm1043, %v1272, 0
        %vm1283 = vcmask 1043456
        %v1285 = vsel %vm1283, %v1276, 0
        %1287 = vmatprep.subr.bf16.mxu0 0
        %1288 = vmatpush1.bf16.msra.mxu0 0
        %1289 = vmatprep.subr.bf16.mxu0 0
        %1290 = vmatpush1.bf16.msra.mxu0 0
        %1291 = vmatprep.subr.bf16.mxu0 0
        %1292 = vmatpush1.bf16.msra.mxu0 0
        %1293 = vmatprep.subr.bf16.mxu0 0
        %1294 = vmatpush1.bf16.msra.mxu0 0
        %1295 = vmatprep.subr.bf16.mxu0 0
        %1296 = vmatpush1.bf16.msra.mxu0 0
        %1297 = vmatprep.subr.bf16.mxu0 0
        %1298 = vmatpush1.bf16.msra.mxu0 0
        %1299 = vmatprep.subr.bf16.mxu0 0
        %1300 = vmatpush1.bf16.msra.mxu0 0
        %1301 = vmatprep.subr.bf16.mxu0 0
        %1302 = vmatpush1.bf16.msra.mxu0 %v1285
        %1303 = vmatprep.subr.bf16.mxu0 0
        %1304 = vmatpush2.bf16.msra.mxu0 0
        %1305 = vmatprep.subr.bf16.mxu0 0
        %1306 = vmatpush2.bf16.msra.mxu0 0
        %1307 = vmatprep.subr.bf16.mxu0 0
        %1308 = vmatpush2.bf16.msra.mxu0 0
        %1309 = vmatprep.subr.bf16.mxu0 0
        %1310 = vmatpush2.bf16.msra.mxu0 0
        %1311 = vmatprep.subr.bf16.mxu0 0
        %1312 = vmatpush2.bf16.msra.mxu0 0
        %1313 = vmatprep.subr.bf16.mxu0 0
        %1314 = vmatpush2.bf16.msra.mxu0 0
        %1315 = vmatprep.subr.bf16.mxu0 0
        %1316 = vmatpush2.bf16.msra.mxu0 0
        %1317 = vmatprep.subr.bf16.mxu0 0
        %1318 = vmatpush2.bf16.msra.mxu0 0
        %1319 = vmatprep.mubr.bf16.mxu0 0
        %1320 = vmatmul.mubr.bf16.gmra.mxu0 %v1281
        %v1321 = vpop.f32.mrf.mxu0
        %v1322 = vadd.f32 0.0, %v1321
        %v1323 = vpop.f32.mrf.mxu0
        %v1324 = vpop.f32.mrf.mxu0
        %v1325 = vpop.f32.mrf.mxu0
        %1326 = vdwg.mxu0
        %v1328 = vsel %vm1043, %v1273, 0
        %v1331 = vsel %vm1283, %v1277, 0
        %1333 = vmatprep.subr.bf16.mxu0 0
        %1334 = vmatpush1.bf16.msra.mxu0 0
        %1335 = vmatprep.subr.bf16.mxu0 0
        %1336 = vmatpush1.bf16.msra.mxu0 0
        %1337 = vmatprep.subr.bf16.mxu0 0
        %1338 = vmatpush1.bf16.msra.mxu0 0
        %1339 = vmatprep.subr.bf16.mxu0 0
        %1340 = vmatpush1.bf16.msra.mxu0 0
        %1341 = vmatprep.subr.bf16.mxu0 0
        %1342 = vmatpush1.bf16.msra.mxu0 0
        %1343 = vmatprep.subr.bf16.mxu0 0
        %1344 = vmatpush1.bf16.msra.mxu0 0
        %1345 = vmatprep.subr.bf16.mxu0 0
        %1346 = vmatpush1.bf16.msra.mxu0 0
        %1347 = vmatprep.subr.bf16.mxu0 0
        %1348 = vmatpush1.bf16.msra.mxu0 %v1331
        %1349 = vmatprep.subr.bf16.mxu0 0
        %1350 = vmatpush2.bf16.msra.mxu0 0
        %1351 = vmatprep.subr.bf16.mxu0 0
        %1352 = vmatpush2.bf16.msra.mxu0 0
        %1353 = vmatprep.subr.bf16.mxu0 0
        %1354 = vmatpush2.bf16.msra.mxu0 0
        %1355 = vmatprep.subr.bf16.mxu0 0
        %1356 = vmatpush2.bf16.msra.mxu0 0
        %1357 = vmatprep.subr.bf16.mxu0 0
        %1358 = vmatpush2.bf16.msra.mxu0 0
        %1359 = vmatprep.subr.bf16.mxu0 0
        %1360 = vmatpush2.bf16.msra.mxu0 0
        %1361 = vmatprep.subr.bf16.mxu0 0
        %1362 = vmatpush2.bf16.msra.mxu0 0
        %1363 = vmatprep.subr.bf16.mxu0 0
        %1364 = vmatpush2.bf16.msra.mxu0 0
        %1365 = vmatprep.mubr.bf16.mxu0 0
        %1366 = vmatmul.mubr.bf16.gmra.mxu0 %v1328
        %v1367 = vpop.f32.mrf.mxu0
        %v1368 = vadd.f32 0.0, %v1367
        %v1369 = vpop.f32.mrf.mxu0
        %v1370 = vpop.f32.mrf.mxu0
        %v1371 = vpop.f32.mrf.mxu0
        %1372 = vdwg.mxu0
        %v1374 = vsel %vm1043, %v1274, 0
        %v1377 = vsel %vm1283, %v1278, 0
        %1379 = vmatprep.subr.bf16.mxu0 0
        %1380 = vmatpush1.bf16.msra.mxu0 0
        %1381 = vmatprep.subr.bf16.mxu0 0
        %1382 = vmatpush1.bf16.msra.mxu0 0
        %1383 = vmatprep.subr.bf16.mxu0 0
        %1384 = vmatpush1.bf16.msra.mxu0 0
        %1385 = vmatprep.subr.bf16.mxu0 0
        %1386 = vmatpush1.bf16.msra.mxu0 0
        %1387 = vmatprep.subr.bf16.mxu0 0
        %1388 = vmatpush1.bf16.msra.mxu0 0
        %1389 = vmatprep.subr.bf16.mxu0 0
        %1390 = vmatpush1.bf16.msra.mxu0 0
        %1391 = vmatprep.subr.bf16.mxu0 0
        %1392 = vmatpush1.bf16.msra.mxu0 0
        %1393 = vmatprep.subr.bf16.mxu0 0
        %1394 = vmatpush1.bf16.msra.mxu0 %v1377
        %1395 = vmatprep.subr.bf16.mxu0 0
        %1396 = vmatpush2.bf16.msra.mxu0 0
        %1397 = vmatprep.subr.bf16.mxu0 0
        %1398 = vmatpush2.bf16.msra.mxu0 0
        %1399 = vmatprep.subr.bf16.mxu0 0
        %1400 = vmatpush2.bf16.msra.mxu0 0
        %1401 = vmatprep.subr.bf16.mxu0 0
        %1402 = vmatpush2.bf16.msra.mxu0 0
        %1403 = vmatprep.subr.bf16.mxu0 0
        %1404 = vmatpush2.bf16.msra.mxu0 0
        %1405 = vmatprep.subr.bf16.mxu0 0
        %1406 = vmatpush2.bf16.msra.mxu0 0
        %1407 = vmatprep.subr.bf16.mxu0 0
        %1408 = vmatpush2.bf16.msra.mxu0 0
        %1409 = vmatprep.subr.bf16.mxu0 0
        %1410 = vmatpush2.bf16.msra.mxu0 0
        %1411 = vmatprep.mubr.bf16.mxu0 0
        %1412 = vmatmul.mubr.bf16.gmra.mxu0 %v1374
        %v1413 = vpop.f32.mrf.mxu0
        %v1414 = vadd.f32 0.0, %v1413
        %v1415 = vpop.f32.mrf.mxu0
        %v1416 = vpop.f32.mrf.mxu0
        %v1417 = vpop.f32.mrf.mxu0
        %1418 = vdwg.mxu0
        %v1420 = vsel %vm1043, %v1275, 0
        %v1423 = vsel %vm1283, %v1279, 0
        %1425 = vmatprep.subr.bf16.mxu0 0
        %1426 = vmatpush1.bf16.msra.mxu0 0
        %1427 = vmatprep.subr.bf16.mxu0 0
        %1428 = vmatpush1.bf16.msra.mxu0 0
        %1429 = vmatprep.subr.bf16.mxu0 0
        %1430 = vmatpush1.bf16.msra.mxu0 0
        %1431 = vmatprep.subr.bf16.mxu0 0
        %1432 = vmatpush1.bf16.msra.mxu0 0
        %1433 = vmatprep.subr.bf16.mxu0 0
        %1434 = vmatpush1.bf16.msra.mxu0 0
        %1435 = vmatprep.subr.bf16.mxu0 0
        %1436 = vmatpush1.bf16.msra.mxu0 0
        %1437 = vmatprep.subr.bf16.mxu0 0
        %1438 = vmatpush1.bf16.msra.mxu0 0
        %1439 = vmatprep.subr.bf16.mxu0 0
        %1440 = vmatpush1.bf16.msra.mxu0 %v1423
        %1441 = vmatprep.subr.bf16.mxu0 0
        %1442 = vmatpush2.bf16.msra.mxu0 0
        %1443 = vmatprep.subr.bf16.mxu0 0
        %1444 = vmatpush2.bf16.msra.mxu0 0
        %1445 = vmatprep.subr.bf16.mxu0 0
        %1446 = vmatpush2.bf16.msra.mxu0 0
        %1447 = vmatprep.subr.bf16.mxu0 0
        %1448 = vmatpush2.bf16.msra.mxu0 0
        %1449 = vmatprep.subr.bf16.mxu0 0
        %1450 = vmatpush2.bf16.msra.mxu0 0
        %1451 = vmatprep.subr.bf16.mxu0 0
        %1452 = vmatpush2.bf16.msra.mxu0 0
        %1453 = vmatprep.subr.bf16.mxu0 0
        %1454 = vmatpush2.bf16.msra.mxu0 0
        %1455 = vmatprep.subr.bf16.mxu0 0
        %1456 = vmatpush2.bf16.msra.mxu0 0
        %1457 = vmatprep.mubr.bf16.mxu0 0
        %1458 = vmatmul.mubr.bf16.gmra.mxu0 %v1420
        %v1459 = vpop.f32.mrf.mxu0
        %v1460 = vadd.f32 0.0, %v1459
        %v1461 = vpop.f32.mrf.mxu0
        %v1462 = vpop.f32.mrf.mxu0
        %v1463 = vpop.f32.mrf.mxu0
        %1464 = vdwg.mxu0
        %v1465 = vpack.c.bf16 %v1322, %v1322
        %1466 = vst.msk [vmem:[#allocation6] sm:$0xf] %vm1011, %v1465
        %v1467 = vpack.c.bf16 %v1368, %v1368
        %v1469 = vunpack.c.l.b16 %v1467
        %v1470 = vpack.c.b16 %v1469, %v1469
        %1471 = vrot.lane.b32.xlu0 %v1470, 8
        %v1472 = vpop.permute.xlu0 %1471
        %vm1474 = vcmask 126016
        %1475 = vst.msk [vmem:[#allocation6] sm:$0xf] %vm1474, %v1472
        %v1476 = vpack.c.bf16 %v1414, %v1414
        %v1478 = vunpack.c.l.b16 %v1476
        %v1479 = vpack.c.b16 %v1478, %v1478
        %1480 = vrot.lane.b32.xlu0 %v1479, 16
        %v1481 = vpop.permute.xlu0 %1480
        %vm1483 = vcmask 191616
        %1484 = vst.msk [vmem:[#allocation6] sm:$0xf] %vm1483, %v1481
        %v1485 = vpack.c.bf16 %v1460, %v1460
        %v1487 = vunpack.c.l.b16 %v1485
        %v1488 = vpack.c.b16 %v1487, %v1487
        %1489 = vrot.lane.b32.xlu0 %v1488, 24
        %v1490 = vpop.permute.xlu0 %1489
        %vm1492 = vcmask 257216
        %1493 = vst.msk [vmem:[#allocation6] sm:$0xf] %vm1492, %v1490
        %v1494 = vld [vmem:[#allocation6] sm:$0xf]
        %v1495 = vld [vmem:[%s10] sm:$0xf]
        %v1496 = vld [vmem:[%s10 + $0x4] sm:$0xf]
        %v1497 = vld [vmem:[%s10 + $0x8] sm:$0xf]
        %v1498 = vld [vmem:[%s10 + $0xc] sm:$0xf]
        %v1499 = vld [vmem:[%s11] sm:$0x1]
        %v1501 = vlaneseq
        %v1502 = vshrl.u32 %v1501, 7
        %v1503 = vsub.s32 0, %v1502
        %v1504 = vrot.slane %v1499, %v1503
        %v1510 = vunpack.c.l.b16 %v1495
        %v1511 = vunpack.c.l.b16 %v1496
        %v1512 = vunpack.c.l.b16 %v1497
        %v1513 = vunpack.c.l.b16 %v1498
        %v1514 = vpack.c.b16 %v1511, %v1510
        %v1515 = vpack.c.b16 %v1513, %v1512
        %v1519 = vsel %vm965, %v1494, 0
        %1521 = vmatprep.subr.bf16.mxu0 0
        %1522 = vmatpush1.bf16.msra.mxu0 0
        %1523 = vmatprep.subr.bf16.mxu0 0
        %1524 = vmatpush1.bf16.msra.mxu0 0
        %1525 = vmatprep.subr.bf16.mxu0 0
        %1526 = vmatpush1.bf16.msra.mxu0 0
        %1527 = vmatprep.subr.bf16.mxu0 0
        %1528 = vmatpush1.bf16.msra.mxu0 0
        %1529 = vmatprep.subr.bf16.mxu0 0
        %1530 = vmatpush1.bf16.msra.mxu0 0
        %1531 = vmatprep.subr.bf16.mxu0 0
        %1532 = vmatpush1.bf16.msra.mxu0 0
        %1533 = vmatprep.subr.bf16.mxu0 0
        %1534 = vmatpush1.bf16.msra.mxu0 %v1515
        %1535 = vmatprep.subr.bf16.mxu0 0
        %1536 = vmatpush1.bf16.msra.mxu0 %v1514
        %1537 = vmatprep.subr.bf16.mxu0 0
        %1538 = vmatpush2.bf16.msra.mxu0 0
        %1539 = vmatprep.subr.bf16.mxu0 0
        %1540 = vmatpush2.bf16.msra.mxu0 0
        %1541 = vmatprep.subr.bf16.mxu0 0
        %1542 = vmatpush2.bf16.msra.mxu0 0
        %1543 = vmatprep.subr.bf16.mxu0 0
        %1544 = vmatpush2.bf16.msra.mxu0 0
        %1545 = vmatprep.subr.bf16.mxu0 0
        %1546 = vmatpush2.bf16.msra.mxu0 0
        %1547 = vmatprep.subr.bf16.mxu0 0
        %1548 = vmatpush2.bf16.msra.mxu0 0
        %1549 = vmatprep.subr.bf16.mxu0 0
        %1550 = vmatpush2.bf16.msra.mxu0 0
        %1551 = vmatprep.subr.bf16.mxu0 0
        %1552 = vmatpush2.bf16.msra.mxu0 0
        %1553 = vmatprep.mubr.bf16.mxu0 0
        %1554 = vmatmul.mubr.bf16.gmra.mxu0 %v1519
        %v1555 = vpop.f32.mrf.mxu0
        %v1556 = vadd.f32 %v1504, %v1555
        %v1557 = vpop.f32.mrf.mxu0
        %v1558 = vpop.f32.mrf.mxu0
        %v1559 = vpop.f32.mrf.mxu0
        %1560 = vdwg.mxu0
        %s1561 = scalar_lea.vmem %s716, %s936
        %v1562 = vld [vmem:[%s1561] sm:$0xff]
        %v1563 = vadd.f32 %v1562, %v1556
        %v1564 = vld [vmem:[%s12] sm:$0x1]
        %v1565 = vld [vmem:[%s13] sm:$0x1]
        %v1566 = vsel %vm965, %v1563, 0.0
        %1567 = vadd.xlane.f32.xlu0 %v1566
        %v1568 = vpop.xlane.xlu0 %1567
        %v1569 = vrcp.pop 32.0
        %v1570 = vmul.f32 %v1568, %v1569
        %v1571 = vsub.f32 %v1563, %v1570
        %v1572 = vmul.f32 %v1571, %v1571
        %v1573 = vsel %vm965, %v1572, 0.0
        %1574 = vadd.xlane.f32.xlu0 %v1573
        %v1575 = vpop.xlane.xlu0 %1574
        %v1576 = vmul.f32 %v1575, %v1569
        %v1577 = vadd.f32 %v1576, 1e-05
        %v1578 = vrsqrt.pop %v1577
        %v1579 = vmul.f32 %v1571, %v1578
        %v1581 = vlaneseq
        %v1582 = vshrl.u32 %v1581, 7
        %v1583 = vsub.s32 0, %v1582
        %v1584 = vrot.slane %v1564, %v1583
        %v1586 = vmul.f32 %v1579, %v1584
        %v1588 = vlaneseq
        %v1589 = vshrl.u32 %v1588, 7
        %v1590 = vsub.s32 0, %v1589
        %v1591 = vrot.slane %v1565, %v1590
        %v1593 = vadd.f32 %v1586, %v1591
        %v1594 = vpack.c.bf16 %v1593, %v1593
        %v1595 = vld [vmem:[#allocation19] sm:$0xf]
        %v1596 = vld [vmem:[#allocation19 + $0x4] sm:$0xf]
        %v1597 = vld [vmem:[#allocation19 + $0x8] sm:$0xf]
        %v1598 = vld [vmem:[#allocation19 + $0xc] sm:$0xf]
        %v1599 = vld [vmem:[%s15] sm:$0x1]
        %v1601 = vlaneseq
        %v1602 = vshrl.u32 %v1601, 7
        %v1603 = vsub.s32 0, %v1602
        %v1604 = vrot.slane %v1599, %v1603
        %v1610 = vunpack.c.l.b16 %v1595
        %v1611 = vunpack.c.l.b16 %v1596
        %v1612 = vunpack.c.l.b16 %v1597
        %v1613 = vunpack.c.l.b16 %v1598
        %v1614 = vpack.c.b16 %v1611, %v1610
        %v1615 = vpack.c.b16 %v1613, %v1612
        %v1619 = vsel %vm965, %v1594, 0
        %1621 = vmatprep.subr.bf16.mxu0 0
        %1622 = vmatpush1.bf16.msra.mxu0 0
        %1623 = vmatprep.subr.bf16.mxu0 0
        %1624 = vmatpush1.bf16.msra.mxu0 0
        %1625 = vmatprep.subr.bf16.mxu0 0
        %1626 = vmatpush1.bf16.msra.mxu0 0
        %1627 = vmatprep.subr.bf16.mxu0 0
        %1628 = vmatpush1.bf16.msra.mxu0 0
        %1629 = vmatprep.subr.bf16.mxu0 0
        %1630 = vmatpush1.bf16.msra.mxu0 0
        %1631 = vmatprep.subr.bf16.mxu0 0
        %1632 = vmatpush1.bf16.msra.mxu0 0
        %1633 = vmatprep.subr.bf16.mxu0 0
        %1634 = vmatpush1.bf16.msra.mxu0 %v1615
        %1635 = vmatprep.subr.bf16.mxu0 0
        %1636 = vmatpush1.bf16.msra.mxu0 %v1614
        %1637 = vmatprep.subr.bf16.mxu0 0
        %1638 = vmatpush2.bf16.msra.mxu0 0
        %1639 = vmatprep.subr.bf16.mxu0 0
        %1640 = vmatpush2.bf16.msra.mxu0 0
        %1641 = vmatprep.subr.bf16.mxu0 0
        %1642 = vmatpush2.bf16.msra.mxu0 0
        %1643 = vmatprep.subr.bf16.mxu0 0
        %1644 = vmatpush2.bf16.msra.mxu0 0
        %1645 = vmatprep.subr.bf16.mxu0 0
        %1646 = vmatpush2.bf16.msra.mxu0 0
        %1647 = vmatprep.subr.bf16.mxu0 0
        %1648 = vmatpush2.bf16.msra.mxu0 0
        %1649 = vmatprep.subr.bf16.mxu0 0
        %1650 = vmatpush2.bf16.msra.mxu0 0
        %1651 = vmatprep.subr.bf16.mxu0 0
        %1652 = vmatpush2.bf16.msra.mxu0 0
        %1653 = vmatprep.mubr.bf16.mxu0 0
        %1654 = vmatmul.mubr.bf16.gmra.mxu0 %v1619
        %v1655 = vpop.f32.mrf.mxu0
        %v1656 = vadd.f32 %v1604, %v1655
        %v1657 = vpop.f32.mrf.mxu0
        %v1658 = vpop.f32.mrf.mxu0
        %v1659 = vpop.f32.mrf.mxu0
        %1660 = vdwg.mxu0
        %v1661 = vmax.f32 %v1656, 0.0
        %v1662 = vpack.c.bf16 %v1661, %v1661
        %v1663 = vld [vmem:[%s16] sm:$0xf]
        %v1664 = vld [vmem:[%s16 + $0x4] sm:$0xf]
        %v1665 = vld [vmem:[%s16 + $0x8] sm:$0xf]
        %v1666 = vld [vmem:[%s16 + $0xc] sm:$0xf]
        %v1667 = vld [vmem:[%s16 + $0x10] sm:$0xf]
        %v1668 = vld [vmem:[%s16 + $0x14] sm:$0xf]
        %v1669 = vld [vmem:[%s16 + $0x18] sm:$0xf]
        %v1670 = vld [vmem:[%s16 + $0x1c] sm:$0xf]
        %v1671 = vld [vmem:[%s17] sm:$0x1]
        %v1673 = vlaneseq
        %v1674 = vshrl.u32 %v1673, 7
        %v1675 = vsub.s32 0, %v1674
        %v1676 = vrot.slane %v1671, %v1675
        %v1686 = vunpack.c.l.b16 %v1663
        %v1687 = vunpack.c.l.b16 %v1664
        %v1688 = vunpack.c.l.b16 %v1665
        %v1689 = vunpack.c.l.b16 %v1666
        %v1690 = vunpack.c.l.b16 %v1667
        %v1691 = vunpack.c.l.b16 %v1668
        %v1692 = vunpack.c.l.b16 %v1669
        %v1693 = vunpack.c.l.b16 %v1670
        %v1694 = vpack.c.b16 %v1687, %v1686
        %v1695 = vpack.c.b16 %v1689, %v1688
        %v1696 = vpack.c.b16 %v1691, %v1690
        %v1697 = vpack.c.b16 %v1693, %v1692
        %vm1702 = vcmask 523264
        %v1704 = vsel %vm1702, %v1662, 0
        %1706 = vmatprep.subr.bf16.mxu0 0
        %1707 = vmatpush1.bf16.msra.mxu0 0
        %1708 = vmatprep.subr.bf16.mxu0 0
        %1709 = vmatpush1.bf16.msra.mxu0 0
        %1710 = vmatprep.subr.bf16.mxu0 0
        %1711 = vmatpush1.bf16.msra.mxu0 0
        %1712 = vmatprep.subr.bf16.mxu0 0
        %1713 = vmatpush1.bf16.msra.mxu0 0
        %1714 = vmatprep.subr.bf16.mxu0 0
        %1715 = vmatpush1.bf16.msra.mxu0 %v1697
        %1716 = vmatprep.subr.bf16.mxu0 0
        %1717 = vmatpush1.bf16.msra.mxu0 %v1696
        %1718 = vmatprep.subr.bf16.mxu0 0
        %1719 = vmatpush1.bf16.msra.mxu0 %v1695
        %1720 = vmatprep.subr.bf16.mxu0 0
        %1721 = vmatpush1.bf16.msra.mxu0 %v1694
        %1722 = vmatprep.subr.bf16.mxu0 0
        %1723 = vmatpush2.bf16.msra.mxu0 0
        %1724 = vmatprep.subr.bf16.mxu0 0
        %1725 = vmatpush2.bf16.msra.mxu0 0
        %1726 = vmatprep.subr.bf16.mxu0 0
        %1727 = vmatpush2.bf16.msra.mxu0 0
        %1728 = vmatprep.subr.bf16.mxu0 0
        %1729 = vmatpush2.bf16.msra.mxu0 0
        %1730 = vmatprep.subr.bf16.mxu0 0
        %1731 = vmatpush2.bf16.msra.mxu0 0
        %1732 = vmatprep.subr.bf16.mxu0 0
        %1733 = vmatpush2.bf16.msra.mxu0 0
        %1734 = vmatprep.subr.bf16.mxu0 0
        %1735 = vmatpush2.bf16.msra.mxu0 0
        %1736 = vmatprep.subr.bf16.mxu0 0
        %1737 = vmatpush2.bf16.msra.mxu0 0
        %1738 = vmatprep.mubr.bf16.mxu0 0
        %1739 = vmatmul.mubr.bf16.gmra.mxu0 %v1704
        %v1740 = vpop.f32.mrf.mxu0
        %v1741 = vadd.f32 %v1676, %v1740
        %v1742 = vpop.f32.mrf.mxu0
        %v1743 = vpop.f32.mrf.mxu0
        %v1744 = vpop.f32.mrf.mxu0
        %1745 = vdwg.mxu0
        %v1746 = vadd.f32 %v1563, %v1741
        %1747 = vst.msk [vmem:[%s712] sm:$0xff] %vm965, %v1746
        %s1748 = sand.u32 %s451, 1
        %s1749 = scalar_lea.sflag [#allocation9], %s1748
        %s1750 = sand.u32 %s451, 1
        %s1751 = smul.addr %s1750, 8
        %s1752 = scalar_lea.vmem [#allocation21], %s1751
        // Predicated region
        $region129: #{tpu_custom_call.1} parent=91 // pred_check
          %p1753 = pneg %p461
        $region130: #{tpu_custom_call.1} parent=91 // pred_check_branch
          %1755 = sbr.rel (%p1753) target = $region132
        $region131: #{tpu_custom_call.1} parent=91 // pred_region
          %s1757 = ssub.s32 128, 128
          %1758 = vsyncadd %s1749, %s1757
          %s1759 = sadd.s32 %s44, %s43
          %s1760 = smul.addr %s1759, 128
          %s1761 = scalar_lea.hbm %s18, %s1760
          %s1763 = sshll.u32 %s1752, 4
          %s1764 = int_to_ptr.vmem [resolvable:$true] %s1763
          %1766 = dma.vmem_to_hbm [thread:$0]  %s1764, 128, %s1761, %s1749
        $region132: #{tpu_custom_call.1} parent=91 // pred_fallthru
          _
      $region92: #{tpu_custom_call.1} parent=5 // pred_fallthru
        _
      %p1767 = scmp.le.s32.totalorder 2, %s34
      // Predicated region
      $region133: #{tpu_custom_call.1} parent=5 // pred_check
        %p1768 = pneg %p1767
      $region134: #{tpu_custom_call.1} parent=5 // pred_check_branch
        %1770 = sbr.rel (%p1768) target = $region136
      $region135: #{tpu_custom_call.1} parent=5 // pred_region
        %s1771 = ssub.s32 %s34, 2
        // Predicated region
        $region137: #{tpu_custom_call.1} parent=135 // pred_check
          %p1772 = pneg %p467
        $region138: #{tpu_custom_call.1} parent=135 // pred_check_branch
          %1774 = sbr.rel (%p1772) target = $region140
        $region139: #{tpu_custom_call.1} parent=135 // pred_region
          %s1775 = sand.u32 %s452, 1
          %s1776 = scalar_lea.sflag [#allocation9], %s1775
          %s1777 = sand.u32 %s452, 1
          %s1778 = smul.addr %s1777, 8
          %s1779 = scalar_lea.vmem [#allocation21], %s1778
          %1780 = dma.done %s1776, 128
        $region140: #{tpu_custom_call.1} parent=135 // pred_fallthru
          _
      $region136: #{tpu_custom_call.1} parent=5 // pred_fallthru
        _
    $region6: #{tpu_custom_call.1} parent=1 // loop_footer
      %s38 = sadd.s32 1, %s34
    $region7: #{tpu_custom_call.1} parent=1 // loop_footer_branch
      %33 = sbr.rel target = $region3
    $region8: #{tpu_custom_call.1} parent=1 // loop_exit
      _
    %1781 = vsyncpa [#allocation8], 1
    %s1782 = scalar_lea.sflag [#allocation8], 1
    %1783 = vsyncpa %s1782, 1
    %1784 = vsyncpa [#allocation11], 1
    %1785 = vsyncpa [#allocation14], 1
    %1786 = vsyncpa [#allocation17], 1
    %1787 = vsyncpa [#allocation20], 1
    %1788 = vsyncpa [#allocation9], 1
    %s1789 = scalar_lea.sflag [#allocation9], 1
    %1790 = vsyncpa %s1789, 1

</llo_original>
